<compile_context>
chip_gen: v7x
topology: tpu7x:2x2x1
jax: 0.10.0
libtpu: 0.0.40
codegen_flags: <defaults>
</compile_context>

<pallas_src>
import jax
import jax.numpy as jnp
from jax import lax
from jax.experimental import pallas as pl
from jax.experimental.pallas import tpu as pltpu


_LANE = 128            # TPU lane width: head output padded to a multiple of this
_SINGLE_TILE_MAX = 512  # N <= this -> fused single-tile path (covers SSD-head sizes)


# ----------------------------------------------------------------------------
# Fused kernel, single-tile path (whole image per grid step, grid = (B,))
# ----------------------------------------------------------------------------
def _fused_head_single_kernel(x_ref, mw_ref, w3t_ref, hw_ref, hb_ref, out_ref):
    # x_ref  : (1, N, C)  bf16  channels-last feature map
    # mw_ref : (C, C)     f32   fused score projection M = w1^T @ w2
    # w3t_ref: (C, C)     bf16  value projection w3^T
    # hw_ref : (C, P)     bf16  [loc_w | conf_w]^T zero-padded to P lanes
    # hb_ref : (1, P)     f32   [loc_b | conf_b] zero-padded
    # out_ref: (1, N, P)  f32   per-position [loc | conf | pad]
    x16 = x_ref[0]                                   # [N, C] bf16
    x32 = x16.astype(jnp.float32)

    # Scores: s = (x @ M) @ x^T  (M kept in f32; score matmul on bf16 MXU).
    q = jnp.dot(x32, mw_ref[...], preferred_element_type=jnp.float32)   # [N, C]
    s = lax.dot_general(q.astype(jnp.bfloat16), x16,
                        dimension_numbers=(((1,), (1,)), ((), ())),
                        preferred_element_type=jnp.float32)             # [N, N]

    # Single-pass softmax (no online rescale machinery needed -- one kv tile).
    m = jnp.max(s, axis=-1, keepdims=True)
    p = jnp.exp(s - m)
    l = jnp.sum(p, axis=-1, keepdims=True)

    # Deferred value projection: o = (beta @ x) @ w3^T ; exact normalization.
    wx = jnp.dot(p.astype(jnp.bfloat16), x16,
                 preferred_element_type=jnp.float32) / l                # [N, C]
    o = jnp.dot(wx.astype(jnp.bfloat16), w3t_ref[...],
                preferred_element_type=jnp.float32)
    a = o + x32                                                          # residual

    # Fused loc/conf 1x1 convs (lane-dense padded output) + bias.
    y = jnp.dot(a.astype(jnp.bfloat16), hw_ref[...],
                preferred_element_type=jnp.float32) + hb_ref[...]
    out_ref[0] = y.astype(out_ref.dtype)


# ----------------------------------------------------------------------------
# Fused kernel, flash path (online softmax over kv tiles) for large N
# ----------------------------------------------------------------------------
def _fused_head_flash_kernel(xq_ref, xk_ref, mw_ref, w3t_ref, hw_ref, hb_ref,
                             out_ref, q_sc, m_sc, l_sc, acc_sc):
    # xq_ref : (1, tq, C) bf16   query-side tile of x
    # xk_ref : (1, tk, C) bf16   key/value-side tile of x
    # out_ref: (1, tq, P) f32    per-position [loc | conf | pad]
    # scratch: q_sc (tq,C) bf16, m_sc/l_sc (tq,1) f32, acc_sc (tq,C) f32
    ki = pl.program_id(2)

    @pl.when(ki == 0)
    def _init():
        xq32 = xq_ref[0].astype(jnp.float32)
        q = jnp.dot(xq32, mw_ref[...], preferred_element_type=jnp.float32)
        q_sc[...] = q.astype(jnp.bfloat16)
        m_sc[...] = jnp.full_like(m_sc, -jnp.inf)
        l_sc[...] = jnp.zeros_like(l_sc)
        acc_sc[...] = jnp.zeros_like(acc_sc)

    xk = xk_ref[0]                                                       # bf16
    s = lax.dot_general(q_sc[...], xk,
                        dimension_numbers=(((1,), (1,)), ((), ())),
                        preferred_element_type=jnp.float32)              # [tq, tk]

    # Online softmax update (f32 elementwise).
    m_prev = m_sc[...]
    m_new = jnp.maximum(m_prev, jnp.max(s, axis=-1, keepdims=True))
    alpha = jnp.exp(m_prev - m_new)
    p = jnp.exp(s - m_new)
    l_sc[...] = alpha * l_sc[...] + jnp.sum(p, axis=-1, keepdims=True)
    acc_sc[...] = alpha * acc_sc[...] + jnp.dot(
        p.astype(jnp.bfloat16), xk, preferred_element_type=jnp.float32)
    m_sc[...] = m_new

    @pl.when(ki == pl.num_programs(2) - 1)
    def _finalize():
        wx = acc_sc[...] / l_sc[...]                       # exact normalization
        o = jnp.dot(wx.astype(jnp.bfloat16), w3t_ref[...],
                    preferred_element_type=jnp.float32)
        a = o + xq_ref[0].astype(jnp.float32)              # residual
        y = jnp.dot(a.astype(jnp.bfloat16), hw_ref[...],
                    preferred_element_type=jnp.float32) + hb_ref[...]
        out_ref[0] = y.astype(out_ref.dtype)


def _choose_tile(n, target):
    """Largest multiple-of-8 divisor of n that is <= target."""
    if n <= target:
        return n
    for t in range(target - (target % 8), 7, -8):
        if n % t == 0:
            return t
    # TODO(synk): add kv-position masking so awkward (prime-ish) N can be tiled
    # with non-dividing blocks instead of a monolithic fallback (v7x VMEM cap).
    return n


# ----------------------------------------------------------------------------
# Wrapper: one fused pallas_call per level
# ----------------------------------------------------------------------------
def _fused_attention_head_bnc(x_bnc, mw, w3t, hw, hb):
    """x_bnc [B,N,C] bf16 -> padded head output [B,N,P] f32 ([loc|conf|0])."""
    B, N, C = x_bnc.shape
    P = hw.shape[1]

    cost = pl.CostEstimate(
        flops=int(2 * B * (2 * N * C * C + 2 * N * N * C + N * C * P)),
        transcendentals=int(B * N * N),
        bytes_accessed=int(B * N * C * 2 + B * N * P * 4
                           + C * C * 4 + C * C * 2 + C * P * 2 + P * 4),
    )
    out_shape = jax.ShapeDtypeStruct((B, N, P), jnp.float32)

    if N <= _SINGLE_TILE_MAX:
        # Single grid step per image; leading "parallel" batch axis keeps both
        # v7x TensorCores busy; x is DMA'd exactly once.
        return pl.pallas_call(
            _fused_head_single_kernel,
            out_shape=out_shape,
            grid_spec=pltpu.PrefetchScalarGridSpec(
                num_scalar_prefetch=0,
                grid=(B,),
                in_specs=[
                    pl.BlockSpec((1, N, C), lambda b: (b, 0, 0)),   # x
                    pl.BlockSpec((C, C), lambda b: (0, 0)),          # M (f32)
                    pl.BlockSpec((C, C), lambda b: (0, 0)),          # w3^T
                    pl.BlockSpec((C, P), lambda b: (0, 0)),          # head weights
                    pl.BlockSpec((1, P), lambda b: (0, 0)),          # head bias
                ],
                out_specs=pl.BlockSpec((1, N, P), lambda b: (b, 0, 0)),
            ),
            compiler_params=pltpu.CompilerParams(
                dimension_semantics=("parallel",)),
            cost_estimate=cost,
        )(x_bnc, mw, w3t, hw, hb)

    # Flash path for large feature maps (v7x-safe tile caps).
    tq = _choose_tile(N, 256)
    tk = _choose_tile(N, 512)
    nq, nk = N // tq, N // tk
    return pl.pallas_call(
        _fused_head_flash_kernel,
        out_shape=out_shape,
        grid_spec=pltpu.PrefetchScalarGridSpec(
            num_scalar_prefetch=0,
            grid=(B, nq, nk),
            in_specs=[
                pl.BlockSpec((1, tq, C), lambda b, qi, ki: (b, qi, 0)),  # x (q)
                pl.BlockSpec((1, tk, C), lambda b, qi, ki: (b, ki, 0)),  # x (kv)
                pl.BlockSpec((C, C), lambda b, qi, ki: (0, 0)),          # M (f32)
                pl.BlockSpec((C, C), lambda b, qi, ki: (0, 0)),          # w3^T
                pl.BlockSpec((C, P), lambda b, qi, ki: (0, 0)),          # head W
                pl.BlockSpec((1, P), lambda b, qi, ki: (0, 0)),          # head b
            ],
            out_specs=pl.BlockSpec((1, tq, P), lambda b, qi, ki: (b, qi, 0)),
            scratch_shapes=[
                pltpu.VMEM((tq, C), jnp.bfloat16),   # q = x @ M (bf16 operand)
                pltpu.VMEM((tq, 1), jnp.float32),    # running max
                pltpu.VMEM((tq, 1), jnp.float32),    # running denom
                pltpu.VMEM((tq, C), jnp.float32),    # running beta @ x
            ],
        ),
        compiler_params=pltpu.CompilerParams(
            dimension_semantics=("parallel", "parallel", "arbitrary")),
        cost_estimate=cost,
    )(x_bnc, x_bnc, mw, w3t, hw, hb)


@jax.jit
def _level_forward(x_nchw, w1, w2, w3, loc_w, loc_b, conf_w, conf_b):
    """One pyramid level: attention + loc/conf heads, fused in one kernel."""
    B, C, H, W = x_nchw.shape
    N = H * W
    n_loc, n_conf = loc_w.shape[0], conf_w.shape[0]
    ctot = n_loc + n_conf
    P = ((ctot + _LANE - 1) // _LANE) * _LANE

    # NCHW -> [B, N, C] channels-last (lane-dense C), bf16 matmul operand.
    x_bnc = jnp.transpose(x_nchw.reshape(B, C, N), (0, 2, 1)).astype(jnp.bfloat16)

    # Fused score projection M = w1^T @ w2 computed and kept in f32.
    mw = jnp.dot(w1.T, w2).astype(jnp.float32)                      # [C, C]
    w3t = w3.T.astype(jnp.bfloat16)                                 # [C, C]

    # Concatenate + zero-pad the loc/conf 1x1-conv weights to a lane-dense slab.
    hw = jnp.concatenate([loc_w, conf_w], axis=0).T                 # [C, ctot]
    hw = jnp.pad(hw, ((0, 0), (0, P - ctot))).astype(jnp.bfloat16)  # [C, P]
    hb = jnp.pad(jnp.concatenate([loc_b, conf_b]), (0, P - ctot))
    hb = hb.astype(jnp.float32).reshape(1, P)

    out = _fused_attention_head_bnc(x_bnc, mw, w3t, hw, hb)         # [B, N, P]
    loc = out[:, :, :n_loc].reshape(B, -1)                          # NHWC flatten
    conf = out[:, :, n_loc:ctot].reshape(B, -1)
    return loc, conf


def attention_head_pallas(features, params):
    """features: list of NCHW arrays.  params: list of dicts with keys
    w1, w2, w3 (attention), loc_w, loc_b, conf_w, conf_b.
    Returns (loc, conf) exactly like the PyTorch module."""
    locs, confs = [], []
    for x_nchw, p in zip(features, params):
        loc, conf = _level_forward(x_nchw, p["w1"], p["w2"], p["w3"],
                                   p["loc_w"], p["loc_b"],
                                   p["conf_w"], p["conf_b"])
        locs.append(loc)
        confs.append(conf)
    return jnp.concatenate(locs, axis=1), jnp.concatenate(confs, axis=1)


# ----------------------------------------------------------------------------
# Pure-JAX reference mirroring the PyTorch forward exactly (f32)
# ----------------------------------------------------------------------------
def _attention_ref(x_nchw, w1, w2, w3):
    B, C, H, W = x_nchw.shape
    N = H * W
    f = jnp.einsum("bchw,oc->bohw", x_nchw, w1).reshape(B, -1, N)
    g = jnp.einsum("bchw,oc->bohw", x_nchw, w2).reshape(B, -1, N)
    h = jnp.einsum("bchw,oc->bohw", x_nchw, w3).reshape(B, C, N)
    f = jnp.transpose(f, (0, 2, 1))
    h = jnp.transpose(h, (0, 2, 1))
    s = jnp.matmul(f, g)
    beta = jax.nn.softmax(s, axis=-1)
    o = jnp.matmul(beta, h)
    o = jnp.transpose(o, (0, 2, 1)).reshape(x_nchw.shape)
    return o + x_nchw


def _conv1x1_bias_ref(x_nchw, w, b):
    return jnp.einsum("bchw,oc->bohw", x_nchw, w) + b[None, :, None, None]


def attention_head_ref(features, params):
    locs, confs = [], []
    for x, p in zip(features, params):
        a = _attention_ref(x, p["w1"], p["w2"], p["w3"])
        loc = _conv1x1_bias_ref(a, p["loc_w"], p["loc_b"])
        conf = _conv1x1_bias_ref(a, p["conf_w"], p["conf_b"])
        B = x.shape[0]
        locs.append(jnp.transpose(loc, (0, 2, 3, 1)).reshape(B, -1))
        confs.append(jnp.transpose(conf, (0, 2, 3, 1)).reshape(B, -1))
    return jnp.concatenate(locs, axis=1), jnp.concatenate(confs, axis=1)


def _check(name, got, ref):
    # Tolerances account for bf16 MXU operands (x, w3^T, head weights, softmax
    # probabilities); structural errors would be orders of magnitude larger.
    err = got.astype(jnp.float32) - ref
    rel = float(jnp.linalg.norm(err) / (jnp.linalg.norm(ref) + 1e-12))
    mx = float(jnp.max(jnp.abs(err)))
    assert rel < 2e-2, f"{name} mismatch: relative error {rel}"
    assert mx < 1.2e-1, f"{name} mismatch: max abs error {mx}"


# ----------------------------------------------------------------------------
if __name__ == "__main__":
    key = jax.random.PRNGKey(0)
    B = 2
    anchors = 6
    num_classes = 4
    # 6 pyramid levels; channel plan fixed by the module (128,128,128,256,256,256).
    # The first level is spatially larger so the flash (multi-kv-tile) path is
    # exercised alongside the fused single-tile path used by the small levels.
    level_cfg = [(128, 32, 32), (128, 8, 8), (128, 8, 8),
                 (256, 4, 4), (256, 4, 4), (256, 4, 4)]

    features, params = [], []
    for (C, H, W) in level_cfg:
        key, kx, k1, k2, k3, kl, klb, kc, kcb = jax.random.split(key, 9)
        features.append(jax.random.normal(kx, (B, C, H, W), jnp.float32))
        params.append(dict(
            w1=jax.random.normal(k1, (C // 8, C), jnp.float32) * 0.05,
            w2=jax.random.normal(k2, (C // 8, C), jnp.float32) * 0.05,
            w3=jax.random.normal(k3, (C, C), jnp.float32) * 0.1,
            loc_w=jax.random.normal(kl, (anchors * 4, C), jnp.float32) * 0.1,
            loc_b=jax.random.normal(klb, (anchors * 4,), jnp.float32) * 0.1,
            conf_w=jax.random.normal(kc, (anchors * num_classes, C), jnp.float32) * 0.1,
            conf_b=jax.random.normal(kcb, (anchors * num_classes,), jnp.float32) * 0.1,
        ))

    loc, conf = attention_head_pallas(features, params)
    jax.block_until_ready((loc, conf))

    loc_ref, conf_ref = attention_head_ref(features, params)
    assert loc.shape == loc_ref.shape and conf.shape == conf_ref.shape
    _check("loc", loc, loc_ref)
    _check("conf", conf, conf_ref)

    print("KERNEL_OK")
</pallas_src>

<mosaic_0001>
module attributes {stable_mosaic.version = 11 : i64} {
  func.func @_fused_head_flash_kernel(%arg0: i32, %arg1: i32, %arg2: i32, %arg3: memref<1x256x128xbf16, #tpu.memory_space<vmem>>, %arg4: memref<1x512x128xbf16, #tpu.memory_space<vmem>>, %arg5: memref<128x128xf32, #tpu.memory_space<vmem>>, %arg6: memref<128x128xbf16, #tpu.memory_space<vmem>>, %arg7: memref<128x128xbf16, #tpu.memory_space<vmem>>, %arg8: memref<1x128xf32, #tpu.memory_space<vmem>>, %arg9: memref<1x256x128xf32, #tpu.memory_space<vmem>>, %arg10: memref<256x128xbf16, #tpu.memory_space<vmem>>, %arg11: memref<256x1xf32, #tpu.memory_space<vmem>>, %arg12: memref<256x1xf32, #tpu.memory_space<vmem>>, %arg13: memref<256x128xf32, #tpu.memory_space<vmem>>) attributes {dimension_semantics = [#tpu.dimension_semantics<parallel>, #tpu.dimension_semantics<parallel>, #tpu.dimension_semantics<arbitrary>], iteration_bounds = array<i64: 2, 4, 2>, scalar_prefetch = 0 : i64, scratch_operands = 4 : i64, tpu.core_type = #tpu.core_type<tc>, window_params = [{transform_indices = @transform_0, window_bounds = array<i64: 1, 256, 128>}, {transform_indices = @transform_1, window_bounds = array<i64: 1, 512, 128>}, {pipeline_mode = #tpu.pipeline_mode<synchronous>, transform_indices = @transform_2, window_bounds = array<i64: 128, 128>}, {pipeline_mode = #tpu.pipeline_mode<synchronous>, transform_indices = @transform_3, window_bounds = array<i64: 128, 128>}, {pipeline_mode = #tpu.pipeline_mode<synchronous>, transform_indices = @transform_4, window_bounds = array<i64: 128, 128>}, {pipeline_mode = #tpu.pipeline_mode<synchronous>, transform_indices = @transform_5, window_bounds = array<i64: 1, 128>}, {transform_indices = @transform_6, window_bounds = array<i64: 1, 256, 128>}]} {
    %c0_i32 = arith.constant 0 : i32
    %0 = arith.cmpi eq, %arg2, %c0_i32 : i32
    %1 = arith.extui %0 : i1 to i32
    %c0_i32_0 = arith.constant 0 : i32
    %2 = arith.cmpi ne, %1, %c0_i32_0 : i32
    scf.if %2 {
      %c0_21 = arith.constant 0 : index
      %c0_22 = arith.constant 0 : index
      %c0_23 = arith.constant 0 : index
      %33 = vector.load %arg3[%c0_21, %c0_22, %c0_23] : memref<1x256x128xbf16, #tpu.memory_space<vmem>>, vector<1x256x128xbf16>
      %34 = vector.shape_cast %33 : vector<1x256x128xbf16> to vector<256x128xbf16>
      %35 = arith.extf %34 : vector<256x128xbf16> to vector<256x128xf32>
      %c0_24 = arith.constant 0 : index
      %c0_25 = arith.constant 0 : index
      %36 = vector.load %arg5[%c0_24, %c0_25] : memref<128x128xf32, #tpu.memory_space<vmem>>, vector<128x128xf32>
      %cst_26 = arith.constant dense<0.000000e+00> : vector<256x128xf32>
      %37 = tpu.matmul %35, %36, %cst_26 {dimension_numbers = #tpu.dot_dimension_numbers<[1], [0], [0], [1], [0, 0, 1, 1], [], []>} : vector<256x128xf32>, vector<128x128xf32>, vector<256x128xf32> -> vector<256x128xf32>
      %38 = arith.truncf %37 : vector<256x128xf32> to vector<256x128xbf16>
      %c0_27 = arith.constant 0 : index
      %c0_28 = arith.constant 0 : index
      %39 = vector.load %arg10[%c0_27, %c0_28] : memref<256x128xbf16, #tpu.memory_space<vmem>>, vector<256x128xbf16>
      tpu.vector_store %arg10[%c0_27, %c0_28], %38 {strides = array<i32>} : memref<256x128xbf16, #tpu.memory_space<vmem>>, vector<256x128xbf16>,
      %cst_29 = arith.constant 0xFF800000 : f32
      %40 = vector.broadcast %cst_29 : f32 to vector<256x1xf32>
      %c0_30 = arith.constant 0 : index
      %c0_31 = arith.constant 0 : index
      %41 = vector.load %arg11[%c0_30, %c0_31] : memref<256x1xf32, #tpu.memory_space<vmem>>, vector<256x1xf32>
      tpu.vector_store %arg11[%c0_30, %c0_31], %40 {strides = array<i32>} : memref<256x1xf32, #tpu.memory_space<vmem>>, vector<256x1xf32>,
      %cst_32 = arith.constant 0.000000e+00 : f32
      %42 = vector.broadcast %cst_32 : f32 to vector<256x1xf32>
      %c0_33 = arith.constant 0 : index
      %c0_34 = arith.constant 0 : index
      %43 = vector.load %arg12[%c0_33, %c0_34] : memref<256x1xf32, #tpu.memory_space<vmem>>, vector<256x1xf32>
      tpu.vector_store %arg12[%c0_33, %c0_34], %42 {strides = array<i32>} : memref<256x1xf32, #tpu.memory_space<vmem>>, vector<256x1xf32>,
      %cst_35 = arith.constant 0.000000e+00 : f32
      %44 = vector.broadcast %cst_35 : f32 to vector<256x128xf32>
      %c0_36 = arith.constant 0 : index
      %c0_37 = arith.constant 0 : index
      %45 = vector.load %arg13[%c0_36, %c0_37] : memref<256x128xf32, #tpu.memory_space<vmem>>, vector<256x128xf32>
      tpu.vector_store %arg13[%c0_36, %c0_37], %44 {strides = array<i32>} : memref<256x128xf32, #tpu.memory_space<vmem>>, vector<256x128xf32>,
    } else {
    }
    %c0 = arith.constant 0 : index
    %c0_1 = arith.constant 0 : index
    %c0_2 = arith.constant 0 : index
    %3 = vector.load %arg4[%c0, %c0_1, %c0_2] : memref<1x512x128xbf16, #tpu.memory_space<vmem>>, vector<1x512x128xbf16>
    %4 = vector.shape_cast %3 : vector<1x512x128xbf16> to vector<512x128xbf16>
    %c0_3 = arith.constant 0 : index
    %c0_4 = arith.constant 0 : index
    %5 = vector.load %arg10[%c0_3, %c0_4] : memref<256x128xbf16, #tpu.memory_space<vmem>>, vector<256x128xbf16>
    %cst = arith.constant dense<0.000000e+00> : vector<256x512xf32>
    %6 = tpu.matmul %5, %4, %cst {dimension_numbers = #tpu.dot_dimension_numbers<[1], [1], [0], [0], [0, 0, 1, 0], [], []>} : vector<256x128xbf16>, vector<512x128xbf16>, vector<256x512xf32> -> vector<256x512xf32>
    %c0_5 = arith.constant 0 : index
    %c0_6 = arith.constant 0 : index
    %7 = vector.load %arg11[%c0_5, %c0_6] : memref<256x1xf32, #tpu.memory_space<vmem>>, vector<256x1xf32>
    %cst_7 = arith.constant dense<0xFF800000> : vector<256xf32>
    %8 = vector.multi_reduction <maximumf>, %6, %cst_7 [1] : vector<256x512xf32> to vector<256xf32>
    %9 = vector.shape_cast %8 : vector<256xf32> to vector<256x1xf32>
    %10 = arith.maximumf %7, %9 : vector<256x1xf32>
    %11 = arith.subf %7, %10 : vector<256x1xf32>
    %12 = math.exp %11 : vector<256x1xf32>
    %13 = vector.broadcast %10 : vector<256x1xf32> to vector<256x512xf32>
    %14 = arith.subf %6, %13 : vector<256x512xf32>
    %15 = math.exp %14 : vector<256x512xf32>
    %c0_8 = arith.constant 0 : index
    %c0_9 = arith.constant 0 : index
    %16 = vector.load %arg12[%c0_8, %c0_9] : memref<256x1xf32, #tpu.memory_space<vmem>>, vector<256x1xf32>
    %17 = arith.mulf %12, %16 : vector<256x1xf32>
    %cst_10 = arith.constant dense<0.000000e+00> : vector<256xf32>
    %18 = vector.multi_reduction <add>, %15, %cst_10 [1] : vector<256x512xf32> to vector<256xf32>
    %19 = vector.shape_cast %18 : vector<256xf32> to vector<256x1xf32>
    %20 = arith.addf %17, %19 : vector<256x1xf32>
    %c0_11 = arith.constant 0 : index
    %c0_12 = arith.constant 0 : index
    %21 = vector.load %arg12[%c0_11, %c0_12] : memref<256x1xf32, #tpu.memory_space<vmem>>, vector<256x1xf32>
    tpu.vector_store %arg12[%c0_11, %c0_12], %20 {strides = array<i32>} : memref<256x1xf32, #tpu.memory_space<vmem>>, vector<256x1xf32>,
    %c0_13 = arith.constant 0 : index
    %c0_14 = arith.constant 0 : index
    %22 = vector.load %arg13[%c0_13, %c0_14] : memref<256x128xf32, #tpu.memory_space<vmem>>, vector<256x128xf32>
    %23 = vector.broadcast %12 : vector<256x1xf32> to vector<256x128xf32>
    %24 = arith.mulf %23, %22 : vector<256x128xf32>
    %25 = arith.truncf %15 : vector<256x512xf32> to vector<256x512xbf16>
    %cst_15 = arith.constant dense<0.000000e+00> : vector<256x128xf32>
    %26 = tpu.matmul %25, %4, %cst_15 {dimension_numbers = #tpu.dot_dimension_numbers<[1], [0], [0], [1], [0, 0, 1, 1], [], []>} : vector<256x512xbf16>, vector<512x128xbf16>, vector<256x128xf32> -> vector<256x128xf32>
    %27 = arith.addf %24, %26 : vector<256x128xf32>
    %c0_16 = arith.constant 0 : index
    %c0_17 = arith.constant 0 : index
    %28 = vector.load %arg13[%c0_16, %c0_17] : memref<256x128xf32, #tpu.memory_space<vmem>>, vector<256x128xf32>
    tpu.vector_store %arg13[%c0_16, %c0_17], %27 {strides = array<i32>} : memref<256x128xf32, #tpu.memory_space<vmem>>, vector<256x128xf32>,
    %c0_18 = arith.constant 0 : index
    %c0_19 = arith.constant 0 : index
    %29 = vector.load %arg11[%c0_18, %c0_19] : memref<256x1xf32, #tpu.memory_space<vmem>>, vector<256x1xf32>
    tpu.vector_store %arg11[%c0_18, %c0_19], %10 {strides = array<i32>} : memref<256x1xf32, #tpu.memory_space<vmem>>, vector<256x1xf32>,
    %c1_i32 = arith.constant 1 : i32
    %30 = arith.cmpi eq, %arg2, %c1_i32 : i32
    %31 = arith.extui %30 : i1 to i32
    %c0_i32_20 = arith.constant 0 : i32
    %32 = arith.cmpi ne, %31, %c0_i32_20 : i32
    scf.if %32 {
      %c0_21 = arith.constant 0 : index
      %c0_22 = arith.constant 0 : index
      %33 = vector.load %arg13[%c0_21, %c0_22] : memref<256x128xf32, #tpu.memory_space<vmem>>, vector<256x128xf32>
      %c0_23 = arith.constant 0 : index
      %c0_24 = arith.constant 0 : index
      %34 = vector.load %arg12[%c0_23, %c0_24] : memref<256x1xf32, #tpu.memory_space<vmem>>, vector<256x1xf32>
      %35 = vector.broadcast %34 : vector<256x1xf32> to vector<256x128xf32>
      %36 = arith.divf %33, %35 : vector<256x128xf32>
      %37 = arith.truncf %36 : vector<256x128xf32> to vector<256x128xbf16>
      %c0_25 = arith.constant 0 : index
      %c0_26 = arith.constant 0 : index
      %38 = vector.load %arg6[%c0_25, %c0_26] : memref<128x128xbf16, #tpu.memory_space<vmem>>, vector<128x128xbf16>
      %cst_27 = arith.constant dense<0.000000e+00> : vector<256x128xf32>
      %39 = tpu.matmul %37, %38, %cst_27 {dimension_numbers = #tpu.dot_dimension_numbers<[1], [0], [0], [1], [0, 0, 1, 1], [], []>} : vector<256x128xbf16>, vector<128x128xbf16>, vector<256x128xf32> -> vector<256x128xf32>
      %c0_28 = arith.constant 0 : index
      %c0_29 = arith.constant 0 : index
      %c0_30 = arith.constant 0 : index
      %40 = vector.load %arg3[%c0_28, %c0_29, %c0_30] : memref<1x256x128xbf16, #tpu.memory_space<vmem>>, vector<1x256x128xbf16>
      %41 = vector.shape_cast %40 : vector<1x256x128xbf16> to vector<256x128xbf16>
      %42 = arith.extf %41 : vector<256x128xbf16> to vector<256x128xf32>
      %43 = arith.addf %39, %42 : vector<256x128xf32>
      %44 = arith.truncf %43 : vector<256x128xf32> to vector<256x128xbf16>
      %c0_31 = arith.constant 0 : index
      %c0_32 = arith.constant 0 : index
      %45 = vector.load %arg7[%c0_31, %c0_32] : memref<128x128xbf16, #tpu.memory_space<vmem>>, vector<128x128xbf16>
      %cst_33 = arith.constant dense<0.000000e+00> : vector<256x128xf32>
      %46 = tpu.matmul %44, %45, %cst_33 {dimension_numbers = #tpu.dot_dimension_numbers<[1], [0], [0], [1], [0, 0, 1, 1], [], []>} : vector<256x128xbf16>, vector<128x128xbf16>, vector<256x128xf32> -> vector<256x128xf32>
      %c0_34 = arith.constant 0 : index
      %c0_35 = arith.constant 0 : index
      %47 = vector.load %arg8[%c0_34, %c0_35] : memref<1x128xf32, #tpu.memory_space<vmem>>, vector<1x128xf32>
      %48 = vector.broadcast %47 : vector<1x128xf32> to vector<256x128xf32>
      %49 = arith.addf %46, %48 : vector<256x128xf32>
      %c0_36 = arith.constant 0 : index
      %c0_37 = arith.constant 0 : index
      %c0_38 = arith.constant 0 : index
      %50 = vector.load %arg9[%c0_36, %c0_37, %c0_38] : memref<1x256x128xf32, #tpu.memory_space<vmem>>, vector<1x256x128xf32>
      %51 = vector.shape_cast %50 : vector<1x256x128xf32> to vector<256x128xf32>
      %52 = vector.shape_cast %49 : vector<256x128xf32> to vector<1x256x128xf32>
      tpu.vector_store %arg9[%c0_36, %c0_37, %c0_38], %52 {strides = array<i32>} : memref<1x256x128xf32, #tpu.memory_space<vmem>>, vector<1x256x128xf32>,
    } else {
    }
    return
  }
  func.func @transform_0(%arg0: i32, %arg1: i32, %arg2: i32) -> (i32, i32, i32) {
    %c0_i32 = arith.constant 0 : i32
    %c0_i32_0 = arith.constant 0 : i32
    return %arg0, %arg1, %c0_i32 : i32, i32, i32
  }
  func.func @transform_1(%arg0: i32, %arg1: i32, %arg2: i32) -> (i32, i32, i32) {
    %c0_i32 = arith.constant 0 : i32
    %c0_i32_0 = arith.constant 0 : i32
    return %arg0, %arg2, %c0_i32 : i32, i32, i32
  }
  func.func @transform_2(%arg0: i32, %arg1: i32, %arg2: i32) -> (i32, i32) {
    %c0_i32 = arith.constant 0 : i32
    %c0_i32_0 = arith.constant 0 : i32
    %c0_i32_1 = arith.constant 0 : i32
    return %c0_i32, %c0_i32_0 : i32, i32
  }
  func.func @transform_3(%arg0: i32, %arg1: i32, %arg2: i32) -> (i32, i32) {
    %c0_i32 = arith.constant 0 : i32
    %c0_i32_0 = arith.constant 0 : i32
    %c0_i32_1 = arith.constant 0 : i32
    return %c0_i32, %c0_i32_0 : i32, i32
  }
  func.func @transform_4(%arg0: i32, %arg1: i32, %arg2: i32) -> (i32, i32) {
    %c0_i32 = arith.constant 0 : i32
    %c0_i32_0 = arith.constant 0 : i32
    %c0_i32_1 = arith.constant 0 : i32
    return %c0_i32, %c0_i32_0 : i32, i32
  }
  func.func @transform_5(%arg0: i32, %arg1: i32, %arg2: i32) -> (i32, i32) {
    %c0_i32 = arith.constant 0 : i32
    %c0_i32_0 = arith.constant 0 : i32
    %c0_i32_1 = arith.constant 0 : i32
    return %c0_i32, %c0_i32_0 : i32, i32
  }
  func.func @transform_6(%arg0: i32, %arg1: i32, %arg2: i32) -> (i32, i32, i32) {
    %c0_i32 = arith.constant 0 : i32
    %c0_i32_0 = arith.constant 0 : i32
    return %arg0, %arg1, %c0_i32 : i32, i32, i32
  }
}

</mosaic_0001>

<llo_original>
// kernel: _level_forward.1
$region0: #{_level_forward.1}
  #allocation0 [shape = 'u32[]', space=smem, size = 0x4, offset = 0x4, fixed_abs, tag = 'smem constant byte address 0x4 - core index']
  #allocation1 [shape = 'u32[144,128]{1,0:T(1,128)}', space=vmem, size = 0x12000, scoped, tag = 'internal scratch']
  #allocation2 [shape = 'bf16[256,128]{1,0:T(16,128)(2,1)}', space=vmem, size = 0x10000, scoped, tag = 'scratch operand']
  #allocation3 [shape = 'f32[256,1]{1,0:T(8,128)}', space=vmem, size = 0x20000, scoped, tag = 'scratch operand']
  #allocation4 [shape = 'f32[256,1]{1,0:T(8,128)}', space=vmem, size = 0x20000, scoped, tag = 'scratch operand']
  #allocation5 [shape = 'f32[256,128]{1,0:T(8,128)}', space=vmem, size = 0x20000, scoped, tag = 'scratch operand']
  %s0 = inlined_call_operand.vmem [shape: bf16[2,1024,128], index: 0, kind: input, shape index: {}, may-alias: {0,1}]
  %s1 = inlined_call_operand.vmem [shape: bf16[2,1024,128], index: 1, kind: input, shape index: {}, may-alias: {0,1}]
  %s2 = inlined_call_operand.vmem [shape: f32[128,128], index: 2, kind: input, shape index: {}]
  %s3 = inlined_call_operand.vmem [shape: bf16[128,128], index: 3, kind: input, shape index: {}]
  %s4 = inlined_call_operand.vmem [shape: bf16[128,128], index: 4, kind: input, shape index: {}]
  %s5 = inlined_call_operand.vmem [shape: f32[1,128], index: 5, kind: input, shape index: {}]
  %s6 = inlined_call_operand.vmem [shape: f32[2,1024,128], index: 6, kind: output, shape index: {}]
  %s7 = sld [smem:[#allocation0]]
  $region65: #{_level_forward.1} parent=0
    _
  %s9 = ssub.s32 1, %s7
  %s10 = scalar_select 0, %s9, %s7
  loop: start=0, step=1, limit=18
  $region2: #{_level_forward.1} parent=0 // loop_pre_header
    _
  $region3: #{_level_forward.1} parent=0 // loop_header
    %s12 = sphi 0, %s16
    %p13 = scmp.ge.s32.totalorder %s12, 18
    %s19 = sphi 0, %s38
    %s20 = sphi 0, %s34
    %s21 = sphi 0, %s30
    %s22 = sphi 0, %s19
    %s23 = sphi 0, %s20
    %s24 = sphi 0, %s21
    %s25 = sphi 0, %s22
    %s26 = sphi 0, %s23
    %s27 = sphi 0, %s24
    %s43 = sphi 0, %s45
    %s46 = sphi 0, %s43
    %s47 = sphi 0, %s46
    %s63 = sphi 0, %s47
    %s71 = sphi 0, %s73
    %s74 = sphi 0, %s71
    %s75 = sphi 0, %s74
    %s91 = sphi 0, %s75
    %s95 = sphi 0, %s95
    %s97 = sphi 0, %s95
    %s98 = sphi 0, %s97
    %s112 = sphi 0, %s98
    %s116 = sphi 0, %s116
    %s118 = sphi 0, %s116
    %s119 = sphi 0, %s118
    %s133 = sphi 0, %s119
    %s137 = sphi 0, %s137
    %s139 = sphi 0, %s137
    %s140 = sphi 0, %s139
    %s154 = sphi 0, %s140
    %s158 = sphi 0, %s158
    %s160 = sphi 0, %s158
    %s161 = sphi 0, %s160
    %s175 = sphi 0, %s161
    %s183 = sphi 0, %s185
    %s186 = sphi 0, %s183
    %s187 = sphi 0, %s186
    %s203 = sphi 0, %s187
  $region4: #{_level_forward.1} parent=0 // loop_header_branch
    %15 = sbr.rel (%p13) target = $region8
  $region5: #{_level_forward.1} parent=0 // loop_body
    %s17 = ssub.s32 %s12, 1
    %s18 = ssub.s32 %s12, 2
    %s28 = sadd.s32 1, %s21
    %p29 = scmp.ge.s32.totalorder %s28, 2
    %s30 = scalar_select %p29, 0, %s28
    %s31 = sadd.s32 1, %s20
    %s32 = scalar_select %p29, %s31, %s20
    %p33 = scmp.ge.s32.totalorder %s32, 4
    %s34 = scalar_select %p33, 0, %s32
    %s35 = sadd.s32 1, %s19
    %s36 = scalar_select %p33, %s35, %s19
    %p37 = scmp.ge.s32.totalorder %s36, 2
    %s38 = scalar_select %p37, 0, %s36
    %s39 = ssub.s32 %s19, %s38
    %s40 = ssub.s32 %s20, %s34
    %s41 = sor.u32 %s39, %s40
    %p42 = scmp.eq.s32.totalorder %s41, 0
    %s44 = sadd.s32 %s43, 1
    %s45 = scalar_select %p42, %s43, %s44
    %p48 = pneg %p42
    %p49 = scmp.eq.s32.totalorder %s12, 15
    %p50 = por %p48, %p49
    %p51 = scmp.ne.s32.totalorder %s43, %s46
    %p52 = scmp.eq.s32.totalorder %s12, 0
    %p53 = por %p51, %p52
    %p54 = scmp.ne.s32.totalorder %s43, %s46
    %p55 = scmp.eq.s32.totalorder %s17, 15
    %p56 = por %p54, %p55
    %p57 = scmp.ne.s32.totalorder %s46, %s47
    %p58 = scmp.eq.s32.totalorder %s17, 0
    %p59 = por %p57, %p58
    %p60 = scmp.ne.s32.totalorder %s46, %s47
    %p61 = scmp.eq.s32.totalorder %s18, 15
    %p62 = por %p60, %p61
    %p64 = scmp.ne.s32.totalorder %s47, %s63
    %p65 = scmp.eq.s32.totalorder %s18, 0
    %p66 = por %p64, %p65
    %s67 = ssub.s32 %s19, %s38
    %s68 = ssub.s32 %s21, %s30
    %s69 = sor.u32 %s67, %s68
    %p70 = scmp.eq.s32.totalorder %s69, 0
    %s72 = sadd.s32 %s71, 1
    %s73 = scalar_select %p70, %s71, %s72
    %p76 = pneg %p70
    %p77 = scmp.eq.s32.totalorder %s12, 15
    %p78 = por %p76, %p77
    %p79 = scmp.ne.s32.totalorder %s71, %s74
    %p80 = scmp.eq.s32.totalorder %s12, 0
    %p81 = por %p79, %p80
    %p82 = scmp.ne.s32.totalorder %s71, %s74
    %p83 = scmp.eq.s32.totalorder %s17, 15
    %p84 = por %p82, %p83
    %p85 = scmp.ne.s32.totalorder %s74, %s75
    %p86 = scmp.eq.s32.totalorder %s17, 0
    %p87 = por %p85, %p86
    %p88 = scmp.ne.s32.totalorder %s74, %s75
    %p89 = scmp.eq.s32.totalorder %s18, 15
    %p90 = por %p88, %p89
    %p92 = scmp.ne.s32.totalorder %s75, %s91
    %p93 = scmp.eq.s32.totalorder %s18, 0
    %p94 = por %p92, %p93
    %s96 = sadd.s32 %s95, 1
    %p99 = scmp.eq.s32.totalorder %s12, 15
    %p100 = scmp.ne.s32.totalorder %s95, %s97
    %p101 = scmp.eq.s32.totalorder %s12, 0
    %p102 = por %p100, %p101
    %p103 = scmp.ne.s32.totalorder %s95, %s97
    %p104 = scmp.eq.s32.totalorder %s17, 15
    %p105 = por %p103, %p104
    %p106 = scmp.ne.s32.totalorder %s97, %s98
    %p107 = scmp.eq.s32.totalorder %s17, 0
    %p108 = por %p106, %p107
    %p109 = scmp.ne.s32.totalorder %s97, %s98
    %p110 = scmp.eq.s32.totalorder %s18, 15
    %p111 = por %p109, %p110
    %p113 = scmp.ne.s32.totalorder %s98, %s112
    %p114 = scmp.eq.s32.totalorder %s18, 0
    %p115 = por %p113, %p114
    %s117 = sadd.s32 %s116, 1
    %p120 = scmp.eq.s32.totalorder %s12, 15
    %p121 = scmp.ne.s32.totalorder %s116, %s118
    %p122 = scmp.eq.s32.totalorder %s12, 0
    %p123 = por %p121, %p122
    %p124 = scmp.ne.s32.totalorder %s116, %s118
    %p125 = scmp.eq.s32.totalorder %s17, 15
    %p126 = por %p124, %p125
    %p127 = scmp.ne.s32.totalorder %s118, %s119
    %p128 = scmp.eq.s32.totalorder %s17, 0
    %p129 = por %p127, %p128
    %p130 = scmp.ne.s32.totalorder %s118, %s119
    %p131 = scmp.eq.s32.totalorder %s18, 15
    %p132 = por %p130, %p131
    %p134 = scmp.ne.s32.totalorder %s119, %s133
    %p135 = scmp.eq.s32.totalorder %s18, 0
    %p136 = por %p134, %p135
    %s138 = sadd.s32 %s137, 1
    %p141 = scmp.eq.s32.totalorder %s12, 15
    %p142 = scmp.ne.s32.totalorder %s137, %s139
    %p143 = scmp.eq.s32.totalorder %s12, 0
    %p144 = por %p142, %p143
    %p145 = scmp.ne.s32.totalorder %s137, %s139
    %p146 = scmp.eq.s32.totalorder %s17, 15
    %p147 = por %p145, %p146
    %p148 = scmp.ne.s32.totalorder %s139, %s140
    %p149 = scmp.eq.s32.totalorder %s17, 0
    %p150 = por %p148, %p149
    %p151 = scmp.ne.s32.totalorder %s139, %s140
    %p152 = scmp.eq.s32.totalorder %s18, 15
    %p153 = por %p151, %p152
    %p155 = scmp.ne.s32.totalorder %s140, %s154
    %p156 = scmp.eq.s32.totalorder %s18, 0
    %p157 = por %p155, %p156
    %s159 = sadd.s32 %s158, 1
    %p162 = scmp.eq.s32.totalorder %s12, 15
    %p163 = scmp.ne.s32.totalorder %s158, %s160
    %p164 = scmp.eq.s32.totalorder %s12, 0
    %p165 = por %p163, %p164
    %p166 = scmp.ne.s32.totalorder %s158, %s160
    %p167 = scmp.eq.s32.totalorder %s17, 15
    %p168 = por %p166, %p167
    %p169 = scmp.ne.s32.totalorder %s160, %s161
    %p170 = scmp.eq.s32.totalorder %s17, 0
    %p171 = por %p169, %p170
    %p172 = scmp.ne.s32.totalorder %s160, %s161
    %p173 = scmp.eq.s32.totalorder %s18, 15
    %p174 = por %p172, %p173
    %p176 = scmp.ne.s32.totalorder %s161, %s175
    %p177 = scmp.eq.s32.totalorder %s18, 0
    %p178 = por %p176, %p177
    %s179 = ssub.s32 %s19, %s38
    %s180 = ssub.s32 %s20, %s34
    %s181 = sor.u32 %s179, %s180
    %p182 = scmp.eq.s32.totalorder %s181, 0
    %s184 = sadd.s32 %s183, 1
    %s185 = scalar_select %p182, %s183, %s184
    %p188 = pneg %p182
    %p189 = scmp.eq.s32.totalorder %s12, 15
    %p190 = por %p188, %p189
    %p191 = scmp.ne.s32.totalorder %s183, %s186
    %p192 = scmp.eq.s32.totalorder %s12, 0
    %p193 = por %p191, %p192
    %p194 = scmp.ne.s32.totalorder %s183, %s186
    %p195 = scmp.eq.s32.totalorder %s17, 15
    %p196 = por %p194, %p195
    %p197 = scmp.ne.s32.totalorder %s186, %s187
    %p198 = scmp.eq.s32.totalorder %s17, 0
    %p199 = por %p197, %p198
    %p200 = scmp.ne.s32.totalorder %s186, %s187
    %p201 = scmp.eq.s32.totalorder %s18, 15
    %p202 = por %p200, %p201
    %p204 = scmp.ne.s32.totalorder %s187, %s203
    %p205 = scmp.eq.s32.totalorder %s18, 0
    %p206 = por %p204, %p205
    %p207 = scmp.le.s32.totalorder 1, %s12
    %p208 = scmp.lt.s32.totalorder %s12, 17
    %p209 = pnand %p207, %p208
    %p210 = pneg %p209
    // Predicated region
    $region9: #{_level_forward.1} parent=5 // pred_check
      _
    $region10: #{_level_forward.1} parent=5 // pred_check_branch
      %212 = sbr.rel (%p209) target = $region12
    $region11: #{_level_forward.1} parent=5 // pred_region
      %s213 = ssub.s32 %s12, 1
      // Predicated region
      $region13: #{_level_forward.1} parent=11 // pred_check
        %p214 = pneg %p108
      $region14: #{_level_forward.1} parent=11 // pred_check_branch
        %216 = sbr.rel (%p214) target = $region16
      $region15: #{_level_forward.1} parent=11 // pred_region
        _
      $region16: #{_level_forward.1} parent=11 // pred_fallthru
        _
      // Predicated region
      $region17: #{_level_forward.1} parent=11 // pred_check
        %p217 = pneg %p129
      $region18: #{_level_forward.1} parent=11 // pred_check_branch
        %219 = sbr.rel (%p217) target = $region20
      $region19: #{_level_forward.1} parent=11 // pred_region
        _
      $region20: #{_level_forward.1} parent=11 // pred_fallthru
        _
      // Predicated region
      $region21: #{_level_forward.1} parent=11 // pred_check
        %p220 = pneg %p150
      $region22: #{_level_forward.1} parent=11 // pred_check_branch
        %222 = sbr.rel (%p220) target = $region24
      $region23: #{_level_forward.1} parent=11 // pred_region
        _
      $region24: #{_level_forward.1} parent=11 // pred_fallthru
        _
      // Predicated region
      $region25: #{_level_forward.1} parent=11 // pred_check
        %p223 = pneg %p171
      $region26: #{_level_forward.1} parent=11 // pred_check_branch
        %225 = sbr.rel (%p223) target = $region28
      $region27: #{_level_forward.1} parent=11 // pred_region
        _
      $region28: #{_level_forward.1} parent=11 // pred_fallthru
        _
    $region12: #{_level_forward.1} parent=5 // pred_fallthru
      _
    %p226 = scmp.lt.s32.totalorder %s12, 16
    // Predicated region
    $region29: #{_level_forward.1} parent=5 // pred_check
      %p227 = pneg %p226
    $region30: #{_level_forward.1} parent=5 // pred_check_branch
      %229 = sbr.rel (%p227) target = $region32
    $region31: #{_level_forward.1} parent=5 // pred_region
      // Predicated region
      $region33: #{_level_forward.1} parent=31 // pred_check
        %p230 = pneg %p53
      $region34: #{_level_forward.1} parent=31 // pred_check_branch
        %232 = sbr.rel (%p230) target = $region36
      $region35: #{_level_forward.1} parent=31 // pred_region
        %s233 = smul.u32 32, %s20
        %p234 = scmp.lt.s32.totalorder %s19, 1
        %s235 = scalar_select %p234, %s19, 1
        %p236 = scmp.lt.s32.totalorder %s233, 127
        %s237 = scalar_select %p236, %s233, 127
        %s238 = smul.addr %s235, 128
        %s239 = sadd.s32 %s237, %s238
        %s240 = smul.addr %s239, 4
        %s241 = scalar_lea.vmem %s0, %s240
        %s242 = smul.u32 32, %s20
      $region36: #{_level_forward.1} parent=31 // pred_fallthru
        _
      // Predicated region
      $region37: #{_level_forward.1} parent=31 // pred_check
        %p243 = pneg %p81
      $region38: #{_level_forward.1} parent=31 // pred_check_branch
        %245 = sbr.rel (%p243) target = $region40
      $region39: #{_level_forward.1} parent=31 // pred_region
        %s246 = smul.u32 64, %s21
        %p247 = scmp.lt.s32.totalorder %s19, 1
        %s248 = scalar_select %p247, %s19, 1
        %p249 = scmp.lt.s32.totalorder %s246, 127
        %s250 = scalar_select %p249, %s246, 127
        %s251 = smul.addr %s248, 128
        %s252 = sadd.s32 %s250, %s251
        %s253 = smul.addr %s252, 4
        %s254 = scalar_lea.vmem %s1, %s253
        %s255 = smul.u32 64, %s21
      $region40: #{_level_forward.1} parent=31 // pred_fallthru
        _
    $region32: #{_level_forward.1} parent=5 // pred_fallthru
      _
    %p256 = scmp.le.s32.totalorder 1, %s12
    %p257 = scmp.lt.s32.totalorder %s12, 17
    %p258 = pnand %p256, %p257
    %p259 = pneg %p258
    // Predicated region
    $region41: #{_level_forward.1} parent=5 // pred_check
      _
    $region42: #{_level_forward.1} parent=5 // pred_check_branch
      %261 = sbr.rel (%p258) target = $region44
    $region43: #{_level_forward.1} parent=5 // pred_region
      %s262 = ssub.s32 %s12, 1
      %s263 = smul.u32 32, %s23
      %p264 = scmp.lt.s32.totalorder %s22, 1
      %s265 = scalar_select %p264, %s22, 1
      %p266 = scmp.lt.s32.totalorder %s263, 127
      %s267 = scalar_select %p266, %s263, 127
      %s268 = smul.addr %s265, 128
      %s269 = sadd.s32 %s267, %s268
      %s270 = smul.addr %s269, 4
      %s271 = scalar_lea.vmem %s0, %s270
      %p272 = pneg %p59
      %p273 = pneg %p56
      %s274 = smul.u32 64, %s24
      %p275 = scmp.lt.s32.totalorder %s22, 1
      %s276 = scalar_select %p275, %s22, 1
      %p277 = scmp.lt.s32.totalorder %s274, 127
      %s278 = scalar_select %p277, %s274, 127
      %s279 = smul.addr %s276, 128
      %s280 = sadd.s32 %s278, %s279
      %s281 = smul.addr %s280, 4
      %s282 = scalar_lea.vmem %s1, %s281
      %p283 = pneg %p87
      %p284 = pneg %p84
      %p285 = pneg %p108
      %p286 = pneg %p105
      %p287 = pneg %p129
      %p288 = pneg %p126
      %p289 = pneg %p150
      %p290 = pneg %p147
      %p291 = pneg %p171
      %p292 = pneg %p168
      %p293 = pneg %p199
      %p294 = pneg %p196
      %s295 = smul.u32 32, %s23
      %p296 = scmp.lt.s32.totalorder %s22, 1
      %s297 = scalar_select %p296, %s22, 1
      %p298 = scmp.lt.s32.totalorder %s295, 127
      %s299 = scalar_select %p298, %s295, 127
      %s300 = smul.addr %s297, 128
      %s301 = sadd.s32 %s299, %s300
      %s302 = smul.addr %s301, 8
      %s303 = scalar_lea.vmem %s6, %s302
      %s304 = smul.u32 32, %s23
      %p305 = scmp.lt.s32.totalorder %s22, 1
      %s306 = scalar_select %p305, %s22, 1
      %p307 = scmp.lt.s32.totalorder %s304, 127
      %s308 = scalar_select %p307, %s304, 127
      %s309 = smul.addr %s306, 128
      %s310 = sadd.s32 %s308, %s309
      %s311 = smul.addr %s310, 4
      %s312 = scalar_lea.vmem %s0, %s311
      %s313 = smul.u32 32, %s23
      %s314 = smul.u32 64, %s24
      %p315 = scmp.lt.s32.totalorder %s22, 1
      %s316 = scalar_select %p315, %s22, 1
      %p317 = scmp.lt.s32.totalorder %s314, 127
      %s318 = scalar_select %p317, %s314, 127
      %s319 = smul.addr %s316, 128
      %s320 = sadd.s32 %s318, %s319
      %s321 = smul.addr %s320, 4
      %s322 = scalar_lea.vmem %s1, %s321
      %s323 = smul.u32 64, %s24
      %s324 = smul.u32 32, %s23
      %p325 = scmp.lt.s32.totalorder %s22, 1
      %s326 = scalar_select %p325, %s22, 1
      %p327 = scmp.lt.s32.totalorder %s324, 127
      %s328 = scalar_select %p327, %s324, 127
      %s329 = smul.addr %s326, 128
      %s330 = sadd.s32 %s328, %s329
      %s331 = smul.addr %s330, 8
      %s332 = scalar_lea.vmem %s6, %s331
      %s333 = smul.u32 32, %s23
      %p335 = scmp.eq.s32.totalorder %s24, 0
      // Predicated region
      $region45: #{_level_forward.1} parent=43 // pred_check
        %p336 = pneg %p335
      $region46: #{_level_forward.1} parent=43 // pred_check_branch
        %338 = sbr.rel (%p336) target = $region48
      $region47: #{_level_forward.1} parent=43 // pred_region
        %v339 = vld [vmem:[%s312] sm:$0xf]
        %v340 = vld [vmem:[%s312 + $0x4] sm:$0xf]
        %v341 = vld [vmem:[%s312 + $0x8] sm:$0xf]
        %v342 = vld [vmem:[%s312 + $0xc] sm:$0xf]
        %v343 = vld [vmem:[%s312 + $0x10] sm:$0xf]
        %v344 = vld [vmem:[%s312 + $0x14] sm:$0xf]
        %v345 = vld [vmem:[%s312 + $0x18] sm:$0xf]
        %v346 = vld [vmem:[%s312 + $0x1c] sm:$0xf]
        %v347 = vld [vmem:[%s312 + $0x20] sm:$0xf]
        %v348 = vld [vmem:[%s312 + $0x24] sm:$0xf]
        %v349 = vld [vmem:[%s312 + $0x28] sm:$0xf]
        %v350 = vld [vmem:[%s312 + $0x2c] sm:$0xf]
        %v351 = vld [vmem:[%s312 + $0x30] sm:$0xf]
        %v352 = vld [vmem:[%s312 + $0x34] sm:$0xf]
        %v353 = vld [vmem:[%s312 + $0x38] sm:$0xf]
        %v354 = vld [vmem:[%s312 + $0x3c] sm:$0xf]
        %v355 = vld [vmem:[%s312 + $0x40] sm:$0xf]
        %v356 = vld [vmem:[%s312 + $0x44] sm:$0xf]
        %v357 = vld [vmem:[%s312 + $0x48] sm:$0xf]
        %v358 = vld [vmem:[%s312 + $0x4c] sm:$0xf]
        %v359 = vld [vmem:[%s312 + $0x50] sm:$0xf]
        %v360 = vld [vmem:[%s312 + $0x54] sm:$0xf]
        %v361 = vld [vmem:[%s312 + $0x58] sm:$0xf]
        %v362 = vld [vmem:[%s312 + $0x5c] sm:$0xf]
        %v363 = vld [vmem:[%s312 + $0x60] sm:$0xf]
        %v364 = vld [vmem:[%s312 + $0x64] sm:$0xf]
        %v365 = vld [vmem:[%s312 + $0x68] sm:$0xf]
        %v366 = vld [vmem:[%s312 + $0x6c] sm:$0xf]
        %v367 = vld [vmem:[%s312 + $0x70] sm:$0xf]
        %v368 = vld [vmem:[%s312 + $0x74] sm:$0xf]
        %v369 = vld [vmem:[%s312 + $0x78] sm:$0xf]
        %v370 = vld [vmem:[%s312 + $0x7c] sm:$0xf]
        %v371 = vunpack.c.l.bf16 %v339
        %v372 = vunpack.c.l.bf16 %v340
        %v373 = vunpack.c.l.bf16 %v341
        %v374 = vunpack.c.l.bf16 %v342
        %v375 = vunpack.c.l.bf16 %v343
        %v376 = vunpack.c.l.bf16 %v344
        %v377 = vunpack.c.l.bf16 %v345
        %v378 = vunpack.c.l.bf16 %v346
        %v379 = vunpack.c.l.bf16 %v347
        %v380 = vunpack.c.l.bf16 %v348
        %v381 = vunpack.c.l.bf16 %v349
        %v382 = vunpack.c.l.bf16 %v350
        %v383 = vunpack.c.l.bf16 %v351
        %v384 = vunpack.c.l.bf16 %v352
        %v385 = vunpack.c.l.bf16 %v353
        %v386 = vunpack.c.l.bf16 %v354
        %v387 = vunpack.c.l.bf16 %v355
        %v388 = vunpack.c.l.bf16 %v356
        %v389 = vunpack.c.l.bf16 %v357
        %v390 = vunpack.c.l.bf16 %v358
        %v391 = vunpack.c.l.bf16 %v359
        %v392 = vunpack.c.l.bf16 %v360
        %v393 = vunpack.c.l.bf16 %v361
        %v394 = vunpack.c.l.bf16 %v362
        %v395 = vunpack.c.l.bf16 %v363
        %v396 = vunpack.c.l.bf16 %v364
        %v397 = vunpack.c.l.bf16 %v365
        %v398 = vunpack.c.l.bf16 %v366
        %v399 = vunpack.c.l.bf16 %v367
        %v400 = vunpack.c.l.bf16 %v368
        %v401 = vunpack.c.l.bf16 %v369
        %v402 = vunpack.c.l.bf16 %v370
        %v403 = vld [vmem:[%s2] sm:$0xff]
        %v404 = vld [vmem:[%s2 + $0x8] sm:$0xff]
        %v405 = vld [vmem:[%s2 + $0x10] sm:$0xff]
        %v406 = vld [vmem:[%s2 + $0x18] sm:$0xff]
        %v407 = vld [vmem:[%s2 + $0x20] sm:$0xff]
        %v408 = vld [vmem:[%s2 + $0x28] sm:$0xff]
        %v409 = vld [vmem:[%s2 + $0x30] sm:$0xff]
        %v410 = vld [vmem:[%s2 + $0x38] sm:$0xff]
        %v411 = vld [vmem:[%s2 + $0x40] sm:$0xff]
        %v412 = vld [vmem:[%s2 + $0x48] sm:$0xff]
        %v413 = vld [vmem:[%s2 + $0x50] sm:$0xff]
        %v414 = vld [vmem:[%s2 + $0x58] sm:$0xff]
        %v415 = vld [vmem:[%s2 + $0x60] sm:$0xff]
        %v416 = vld [vmem:[%s2 + $0x68] sm:$0xff]
        %v417 = vld [vmem:[%s2 + $0x70] sm:$0xff]
        %v418 = vld [vmem:[%s2 + $0x78] sm:$0xff]
        %419 = vmatprep.subr.mxu0 0.0
        %420 = vmatpush1.msra.mxu0 %v403
        %421 = vmatprep.subr.mxu0 0.0
        %422 = vmatpush1.msra.mxu0 %v404
        %423 = vmatprep.subr.mxu0 0.0
        %424 = vmatpush1.msra.mxu0 %v405
        %425 = vmatprep.subr.mxu0 0.0
        %426 = vmatpush1.msra.mxu0 %v406
        %427 = vmatprep.subr.mxu0 0.0
        %428 = vmatpush1.msra.mxu0 %v407
        %429 = vmatprep.subr.mxu0 0.0
        %430 = vmatpush1.msra.mxu0 %v408
        %431 = vmatprep.subr.mxu0 0.0
        %432 = vmatpush1.msra.mxu0 %v409
        %433 = vmatprep.subr.mxu0 0.0
        %434 = vmatpush1.msra.mxu0 %v410
        %435 = vmatprep.subr.mxu0 0.0
        %436 = vmatpush1.msra.mxu0 %v411
        %437 = vmatprep.subr.mxu0 0.0
        %438 = vmatpush1.msra.mxu0 %v412
        %439 = vmatprep.subr.mxu0 0.0
        %440 = vmatpush1.msra.mxu0 %v413
        %441 = vmatprep.subr.mxu0 0.0
        %442 = vmatpush1.msra.mxu0 %v414
        %443 = vmatprep.subr.mxu0 0.0
        %444 = vmatpush1.msra.mxu0 %v415
        %445 = vmatprep.subr.mxu0 0.0
        %446 = vmatpush1.msra.mxu0 %v416
        %447 = vmatprep.subr.mxu0 0.0
        %448 = vmatpush1.msra.mxu0 %v417
        %449 = vmatprep.subr.mxu0 0.0
        %450 = vmatpush1.msra.mxu0 %v418
        %451 = vmatprep.subr.mxu0 0.0
        %452 = vmatpush1.msra.mxu0 0.0
        %453 = vmatprep.subr.mxu0 0.0
        %454 = vmatpush1.msra.mxu0 0.0
        %455 = vmatprep.subr.mxu0 0.0
        %456 = vmatpush1.msra.mxu0 0.0
        %457 = vmatprep.subr.mxu0 0.0
        %458 = vmatpush1.msra.mxu0 0.0
        %459 = vmatprep.subr.mxu0 0.0
        %460 = vmatpush1.msra.mxu0 0.0
        %461 = vmatprep.subr.mxu0 0.0
        %462 = vmatpush1.msra.mxu0 0.0
        %463 = vmatprep.subr.mxu0 0.0
        %464 = vmatpush1.msra.mxu0 0.0
        %465 = vmatprep.subr.mxu0 0.0
        %466 = vmatpush1.msra.mxu0 0.0
        %467 = vmatprep.subr.mxu0 0.0
        %468 = vmatpush1.msra.mxu0 0.0
        %469 = vmatprep.subr.mxu0 0.0
        %470 = vmatpush1.msra.mxu0 0.0
        %471 = vmatprep.subr.mxu0 0.0
        %472 = vmatpush1.msra.mxu0 0.0
        %473 = vmatprep.subr.mxu0 0.0
        %474 = vmatpush1.msra.mxu0 0.0
        %475 = vmatprep.subr.mxu0 0.0
        %476 = vmatpush1.msra.mxu0 0.0
        %477 = vmatprep.subr.mxu0 0.0
        %478 = vmatpush1.msra.mxu0 0.0
        %479 = vmatprep.subr.mxu0 0.0
        %480 = vmatpush1.msra.mxu0 0.0
        %481 = vmatprep.subr.mxu0 0.0
        %482 = vmatpush1.msra.mxu0 0.0
        %483 = vmatprep.mubr.f32.mxu0 0.0
        %484 = vmatmul.mubr.f32.gmra.mrb[0].mxu0 %v371
        %v485 = vpop.f32.mrb[0].mxu0
        %v486 = vadd.f32 0.0, %v485
        %v487 = vpop.f32.mrb[0].mxu0
        %488 = vmatprep.mubr.f32.mxu0 0.0
        %489 = vmatmul.mubr.f32.gmra.mrb[0].mxu0 %v372
        %v490 = vpop.f32.mrb[0].mxu0
        %v491 = vadd.f32 0.0, %v490
        %v492 = vpop.f32.mrb[0].mxu0
        %493 = vmatprep.mubr.f32.mxu0 0.0
        %494 = vmatmul.mubr.f32.gmra.mrb[0].mxu0 %v373
        %v495 = vpop.f32.mrb[0].mxu0
        %v496 = vadd.f32 0.0, %v495
        %v497 = vpop.f32.mrb[0].mxu0
        %498 = vmatprep.mubr.f32.mxu0 0.0
        %499 = vmatmul.mubr.f32.gmra.mrb[0].mxu0 %v374
        %v500 = vpop.f32.mrb[0].mxu0
        %v501 = vadd.f32 0.0, %v500
        %v502 = vpop.f32.mrb[0].mxu0
        %503 = vmatprep.mubr.f32.mxu0 0.0
        %504 = vmatmul.mubr.f32.gmra.mrb[0].mxu0 %v375
        %v505 = vpop.f32.mrb[0].mxu0
        %v506 = vadd.f32 0.0, %v505
        %v507 = vpop.f32.mrb[0].mxu0
        %508 = vmatprep.mubr.f32.mxu0 0.0
        %509 = vmatmul.mubr.f32.gmra.mrb[0].mxu0 %v376
        %v510 = vpop.f32.mrb[0].mxu0
        %v511 = vadd.f32 0.0, %v510
        %v512 = vpop.f32.mrb[0].mxu0
        %513 = vmatprep.mubr.f32.mxu0 0.0
        %514 = vmatmul.mubr.f32.gmra.mrb[0].mxu0 %v377
        %v515 = vpop.f32.mrb[0].mxu0
        %v516 = vadd.f32 0.0, %v515
        %v517 = vpop.f32.mrb[0].mxu0
        %518 = vmatprep.mubr.f32.mxu0 0.0
        %519 = vmatmul.mubr.f32.gmra.mrb[0].mxu0 %v378
        %v520 = vpop.f32.mrb[0].mxu0
        %v521 = vadd.f32 0.0, %v520
        %v522 = vpop.f32.mrb[0].mxu0
        %523 = vmatprep.mubr.f32.mxu0 0.0
        %524 = vmatmul.mubr.f32.gmra.mrb[0].mxu0 %v379
        %v525 = vpop.f32.mrb[0].mxu0
        %v526 = vadd.f32 0.0, %v525
        %v527 = vpop.f32.mrb[0].mxu0
        %528 = vmatprep.mubr.f32.mxu0 0.0
        %529 = vmatmul.mubr.f32.gmra.mrb[0].mxu0 %v380
        %v530 = vpop.f32.mrb[0].mxu0
        %v531 = vadd.f32 0.0, %v530
        %v532 = vpop.f32.mrb[0].mxu0
        %533 = vmatprep.mubr.f32.mxu0 0.0
        %534 = vmatmul.mubr.f32.gmra.mrb[0].mxu0 %v381
        %v535 = vpop.f32.mrb[0].mxu0
        %v536 = vadd.f32 0.0, %v535
        %v537 = vpop.f32.mrb[0].mxu0
        %538 = vmatprep.mubr.f32.mxu0 0.0
        %539 = vmatmul.mubr.f32.gmra.mrb[0].mxu0 %v382
        %v540 = vpop.f32.mrb[0].mxu0
        %v541 = vadd.f32 0.0, %v540
        %v542 = vpop.f32.mrb[0].mxu0
        %543 = vmatprep.mubr.f32.mxu0 0.0
        %544 = vmatmul.mubr.f32.gmra.mrb[0].mxu0 %v383
        %v545 = vpop.f32.mrb[0].mxu0
        %v546 = vadd.f32 0.0, %v545
        %v547 = vpop.f32.mrb[0].mxu0
        %548 = vmatprep.mubr.f32.mxu0 0.0
        %549 = vmatmul.mubr.f32.gmra.mrb[0].mxu0 %v384
        %v550 = vpop.f32.mrb[0].mxu0
        %v551 = vadd.f32 0.0, %v550
        %v552 = vpop.f32.mrb[0].mxu0
        %553 = vmatprep.mubr.f32.mxu0 0.0
        %554 = vmatmul.mubr.f32.gmra.mrb[0].mxu0 %v385
        %v555 = vpop.f32.mrb[0].mxu0
        %v556 = vadd.f32 0.0, %v555
        %v557 = vpop.f32.mrb[0].mxu0
        %558 = vmatprep.mubr.f32.mxu0 0.0
        %559 = vmatmul.mubr.f32.gmra.mrb[0].mxu0 %v386
        %v560 = vpop.f32.mrb[0].mxu0
        %v561 = vadd.f32 0.0, %v560
        %v562 = vpop.f32.mrb[0].mxu0
        %563 = vmatprep.mubr.f32.mxu0 0.0
        %564 = vmatmul.mubr.f32.gmra.mrb[0].mxu0 %v387
        %v565 = vpop.f32.mrb[0].mxu0
        %v566 = vadd.f32 0.0, %v565
        %v567 = vpop.f32.mrb[0].mxu0
        %568 = vmatprep.mubr.f32.mxu0 0.0
        %569 = vmatmul.mubr.f32.gmra.mrb[0].mxu0 %v388
        %v570 = vpop.f32.mrb[0].mxu0
        %v571 = vadd.f32 0.0, %v570
        %v572 = vpop.f32.mrb[0].mxu0
        %573 = vmatprep.mubr.f32.mxu0 0.0
        %574 = vmatmul.mubr.f32.gmra.mrb[0].mxu0 %v389
        %v575 = vpop.f32.mrb[0].mxu0
        %v576 = vadd.f32 0.0, %v575
        %v577 = vpop.f32.mrb[0].mxu0
        %578 = vmatprep.mubr.f32.mxu0 0.0
        %579 = vmatmul.mubr.f32.gmra.mrb[0].mxu0 %v390
        %v580 = vpop.f32.mrb[0].mxu0
        %v581 = vadd.f32 0.0, %v580
        %v582 = vpop.f32.mrb[0].mxu0
        %583 = vmatprep.mubr.f32.mxu0 0.0
        %584 = vmatmul.mubr.f32.gmra.mrb[0].mxu0 %v391
        %v585 = vpop.f32.mrb[0].mxu0
        %v586 = vadd.f32 0.0, %v585
        %v587 = vpop.f32.mrb[0].mxu0
        %588 = vmatprep.mubr.f32.mxu0 0.0
        %589 = vmatmul.mubr.f32.gmra.mrb[0].mxu0 %v392
        %v590 = vpop.f32.mrb[0].mxu0
        %v591 = vadd.f32 0.0, %v590
        %v592 = vpop.f32.mrb[0].mxu0
        %593 = vmatprep.mubr.f32.mxu0 0.0
        %594 = vmatmul.mubr.f32.gmra.mrb[0].mxu0 %v393
        %v595 = vpop.f32.mrb[0].mxu0
        %v596 = vadd.f32 0.0, %v595
        %v597 = vpop.f32.mrb[0].mxu0
        %598 = vmatprep.mubr.f32.mxu0 0.0
        %599 = vmatmul.mubr.f32.gmra.mrb[0].mxu0 %v394
        %v600 = vpop.f32.mrb[0].mxu0
        %v601 = vadd.f32 0.0, %v600
        %v602 = vpop.f32.mrb[0].mxu0
        %603 = vmatprep.mubr.f32.mxu0 0.0
        %604 = vmatmul.mubr.f32.gmra.mrb[0].mxu0 %v395
        %v605 = vpop.f32.mrb[0].mxu0
        %v606 = vadd.f32 0.0, %v605
        %v607 = vpop.f32.mrb[0].mxu0
        %608 = vmatprep.mubr.f32.mxu0 0.0
        %609 = vmatmul.mubr.f32.gmra.mrb[0].mxu0 %v396
        %v610 = vpop.f32.mrb[0].mxu0
        %v611 = vadd.f32 0.0, %v610
        %v612 = vpop.f32.mrb[0].mxu0
        %613 = vmatprep.mubr.f32.mxu0 0.0
        %614 = vmatmul.mubr.f32.gmra.mrb[0].mxu0 %v397
        %v615 = vpop.f32.mrb[0].mxu0
        %v616 = vadd.f32 0.0, %v615
        %v617 = vpop.f32.mrb[0].mxu0
        %618 = vmatprep.mubr.f32.mxu0 0.0
        %619 = vmatmul.mubr.f32.gmra.mrb[0].mxu0 %v398
        %v620 = vpop.f32.mrb[0].mxu0
        %v621 = vadd.f32 0.0, %v620
        %v622 = vpop.f32.mrb[0].mxu0
        %623 = vmatprep.mubr.f32.mxu0 0.0
        %624 = vmatmul.mubr.f32.gmra.mrb[0].mxu0 %v399
        %v625 = vpop.f32.mrb[0].mxu0
        %v626 = vadd.f32 0.0, %v625
        %v627 = vpop.f32.mrb[0].mxu0
        %628 = vmatprep.mubr.f32.mxu0 0.0
        %629 = vmatmul.mubr.f32.gmra.mrb[0].mxu0 %v400
        %v630 = vpop.f32.mrb[0].mxu0
        %v631 = vadd.f32 0.0, %v630
        %v632 = vpop.f32.mrb[0].mxu0
        %633 = vmatprep.mubr.f32.mxu0 0.0
        %634 = vmatmul.mubr.f32.gmra.mrb[0].mxu0 %v401
        %v635 = vpop.f32.mrb[0].mxu0
        %v636 = vadd.f32 0.0, %v635
        %v637 = vpop.f32.mrb[0].mxu0
        %638 = vmatprep.mubr.f32.mxu0 0.0
        %639 = vmatmul.mubr.f32.gmra.mrb[0].mxu0 %v402
        %v640 = vpop.f32.mrb[0].mxu0
        %v641 = vadd.f32 0.0, %v640
        %v642 = vpop.f32.mrb[0].mxu0
        %643 = vdwg.mxu0
        %v644 = vpack.c.bf16 %v491, %v486
        %v645 = vpack.c.bf16 %v501, %v496
        %v646 = vpack.c.bf16 %v511, %v506
        %v647 = vpack.c.bf16 %v521, %v516
        %v648 = vpack.c.bf16 %v531, %v526
        %v649 = vpack.c.bf16 %v541, %v536
        %v650 = vpack.c.bf16 %v551, %v546
        %v651 = vpack.c.bf16 %v561, %v556
        %v652 = vpack.c.bf16 %v571, %v566
        %v653 = vpack.c.bf16 %v581, %v576
        %v654 = vpack.c.bf16 %v591, %v586
        %v655 = vpack.c.bf16 %v601, %v596
        %v656 = vpack.c.bf16 %v611, %v606
        %v657 = vpack.c.bf16 %v621, %v616
        %v658 = vpack.c.bf16 %v631, %v626
        %v659 = vpack.c.bf16 %v641, %v636
        %660 = vst [vmem:[#allocation2] sm:$0xff] %v644
        %661 = vst [vmem:[#allocation2 + $0x8] sm:$0xff] %v645
        %662 = vst [vmem:[#allocation2 + $0x10] sm:$0xff] %v646
        %663 = vst [vmem:[#allocation2 + $0x18] sm:$0xff] %v647
        %664 = vst [vmem:[#allocation2 + $0x20] sm:$0xff] %v648
        %665 = vst [vmem:[#allocation2 + $0x28] sm:$0xff] %v649
        %666 = vst [vmem:[#allocation2 + $0x30] sm:$0xff] %v650
        %667 = vst [vmem:[#allocation2 + $0x38] sm:$0xff] %v651
        %668 = vst [vmem:[#allocation2 + $0x40] sm:$0xff] %v652
        %669 = vst [vmem:[#allocation2 + $0x48] sm:$0xff] %v653
        %670 = vst [vmem:[#allocation2 + $0x50] sm:$0xff] %v654
        %671 = vst [vmem:[#allocation2 + $0x58] sm:$0xff] %v655
        %672 = vst [vmem:[#allocation2 + $0x60] sm:$0xff] %v656
        %673 = vst [vmem:[#allocation2 + $0x68] sm:$0xff] %v657
        %674 = vst [vmem:[#allocation2 + $0x70] sm:$0xff] %v658
        %675 = vst [vmem:[#allocation2 + $0x78] sm:$0xff] %v659
        %vm676 = vcmask 7168
        %677 = vst.msk [vmem:[#allocation3] sm:$0xff] %vm676, -inf
        %678 = vst.msk [vmem:[#allocation3 + $0x8] sm:$0xff] %vm676, -inf
        %679 = vst.msk [vmem:[#allocation3 + $0x10] sm:$0xff] %vm676, -inf
        %680 = vst.msk [vmem:[#allocation3 + $0x18] sm:$0xff] %vm676, -inf
        %681 = vst.msk [vmem:[#allocation3 + $0x20] sm:$0xff] %vm676, -inf
        %682 = vst.msk [vmem:[#allocation3 + $0x28] sm:$0xff] %vm676, -inf
        %683 = vst.msk [vmem:[#allocation3 + $0x30] sm:$0xff] %vm676, -inf
        %684 = vst.msk [vmem:[#allocation3 + $0x38] sm:$0xff] %vm676, -inf
        %685 = vst.msk [vmem:[#allocation3 + $0x40] sm:$0xff] %vm676, -inf
        %686 = vst.msk [vmem:[#allocation3 + $0x48] sm:$0xff] %vm676, -inf
        %687 = vst.msk [vmem:[#allocation3 + $0x50] sm:$0xff] %vm676, -inf
        %688 = vst.msk [vmem:[#allocation3 + $0x58] sm:$0xff] %vm676, -inf
        %689 = vst.msk [vmem:[#allocation3 + $0x60] sm:$0xff] %vm676, -inf
        %690 = vst.msk [vmem:[#allocation3 + $0x68] sm:$0xff] %vm676, -inf
        %691 = vst.msk [vmem:[#allocation3 + $0x70] sm:$0xff] %vm676, -inf
        %692 = vst.msk [vmem:[#allocation3 + $0x78] sm:$0xff] %vm676, -inf
        %693 = vst.msk [vmem:[#allocation3 + $0x80] sm:$0xff] %vm676, -inf
        %694 = vst.msk [vmem:[#allocation3 + $0x88] sm:$0xff] %vm676, -inf
        %695 = vst.msk [vmem:[#allocation3 + $0x90] sm:$0xff] %vm676, -inf
        %696 = vst.msk [vmem:[#allocation3 + $0x98] sm:$0xff] %vm676, -inf
        %697 = vst.msk [vmem:[#allocation3 + $0xa0] sm:$0xff] %vm676, -inf
        %698 = vst.msk [vmem:[#allocation3 + $0xa8] sm:$0xff] %vm676, -inf
        %699 = vst.msk [vmem:[#allocation3 + $0xb0] sm:$0xff] %vm676, -inf
        %700 = vst.msk [vmem:[#allocation3 + $0xb8] sm:$0xff] %vm676, -inf
        %701 = vst.msk [vmem:[#allocation3 + $0xc0] sm:$0xff] %vm676, -inf
        %702 = vst.msk [vmem:[#allocation3 + $0xc8] sm:$0xff] %vm676, -inf
        %703 = vst.msk [vmem:[#allocation3 + $0xd0] sm:$0xff] %vm676, -inf
        %704 = vst.msk [vmem:[#allocation3 + $0xd8] sm:$0xff] %vm676, -inf
        %705 = vst.msk [vmem:[#allocation3 + $0xe0] sm:$0xff] %vm676, -inf
        %706 = vst.msk [vmem:[#allocation3 + $0xe8] sm:$0xff] %vm676, -inf
        %707 = vst.msk [vmem:[#allocation3 + $0xf0] sm:$0xff] %vm676, -inf
        %708 = vst.msk [vmem:[#allocation3 + $0xf8] sm:$0xff] %vm676, -inf
        %709 = vst.msk [vmem:[#allocation4] sm:$0xff] %vm676, 0.0
        %710 = vst.msk [vmem:[#allocation4 + $0x8] sm:$0xff] %vm676, 0.0
        %711 = vst.msk [vmem:[#allocation4 + $0x10] sm:$0xff] %vm676, 0.0
        %712 = vst.msk [vmem:[#allocation4 + $0x18] sm:$0xff] %vm676, 0.0
        %713 = vst.msk [vmem:[#allocation4 + $0x20] sm:$0xff] %vm676, 0.0
        %714 = vst.msk [vmem:[#allocation4 + $0x28] sm:$0xff] %vm676, 0.0
        %715 = vst.msk [vmem:[#allocation4 + $0x30] sm:$0xff] %vm676, 0.0
        %716 = vst.msk [vmem:[#allocation4 + $0x38] sm:$0xff] %vm676, 0.0
        %717 = vst.msk [vmem:[#allocation4 + $0x40] sm:$0xff] %vm676, 0.0
        %718 = vst.msk [vmem:[#allocation4 + $0x48] sm:$0xff] %vm676, 0.0
        %719 = vst.msk [vmem:[#allocation4 + $0x50] sm:$0xff] %vm676, 0.0
        %720 = vst.msk [vmem:[#allocation4 + $0x58] sm:$0xff] %vm676, 0.0
        %721 = vst.msk [vmem:[#allocation4 + $0x60] sm:$0xff] %vm676, 0.0
        %722 = vst.msk [vmem:[#allocation4 + $0x68] sm:$0xff] %vm676, 0.0
        %723 = vst.msk [vmem:[#allocation4 + $0x70] sm:$0xff] %vm676, 0.0
        %724 = vst.msk [vmem:[#allocation4 + $0x78] sm:$0xff] %vm676, 0.0
        %725 = vst.msk [vmem:[#allocation4 + $0x80] sm:$0xff] %vm676, 0.0
        %726 = vst.msk [vmem:[#allocation4 + $0x88] sm:$0xff] %vm676, 0.0
        %727 = vst.msk [vmem:[#allocation4 + $0x90] sm:$0xff] %vm676, 0.0
        %728 = vst.msk [vmem:[#allocation4 + $0x98] sm:$0xff] %vm676, 0.0
        %729 = vst.msk [vmem:[#allocation4 + $0xa0] sm:$0xff] %vm676, 0.0
        %730 = vst.msk [vmem:[#allocation4 + $0xa8] sm:$0xff] %vm676, 0.0
        %731 = vst.msk [vmem:[#allocation4 + $0xb0] sm:$0xff] %vm676, 0.0
        %732 = vst.msk [vmem:[#allocation4 + $0xb8] sm:$0xff] %vm676, 0.0
        %733 = vst.msk [vmem:[#allocation4 + $0xc0] sm:$0xff] %vm676, 0.0
        %734 = vst.msk [vmem:[#allocation4 + $0xc8] sm:$0xff] %vm676, 0.0
        %735 = vst.msk [vmem:[#allocation4 + $0xd0] sm:$0xff] %vm676, 0.0
        %736 = vst.msk [vmem:[#allocation4 + $0xd8] sm:$0xff] %vm676, 0.0
        %737 = vst.msk [vmem:[#allocation4 + $0xe0] sm:$0xff] %vm676, 0.0
        %738 = vst.msk [vmem:[#allocation4 + $0xe8] sm:$0xff] %vm676, 0.0
        %739 = vst.msk [vmem:[#allocation4 + $0xf0] sm:$0xff] %vm676, 0.0
        %740 = vst.msk [vmem:[#allocation4 + $0xf8] sm:$0xff] %vm676, 0.0
        %741 = vst [vmem:[#allocation5] sm:$0xff] 0.0
        %742 = vst [vmem:[#allocation5 + $0x8] sm:$0xff] 0.0
        %743 = vst [vmem:[#allocation5 + $0x10] sm:$0xff] 0.0
        %744 = vst [vmem:[#allocation5 + $0x18] sm:$0xff] 0.0
        %745 = vst [vmem:[#allocation5 + $0x20] sm:$0xff] 0.0
        %746 = vst [vmem:[#allocation5 + $0x28] sm:$0xff] 0.0
        %747 = vst [vmem:[#allocation5 + $0x30] sm:$0xff] 0.0
        %748 = vst [vmem:[#allocation5 + $0x38] sm:$0xff] 0.0
        %749 = vst [vmem:[#allocation5 + $0x40] sm:$0xff] 0.0
        %750 = vst [vmem:[#allocation5 + $0x48] sm:$0xff] 0.0
        %751 = vst [vmem:[#allocation5 + $0x50] sm:$0xff] 0.0
        %752 = vst [vmem:[#allocation5 + $0x58] sm:$0xff] 0.0
        %753 = vst [vmem:[#allocation5 + $0x60] sm:$0xff] 0.0
        %754 = vst [vmem:[#allocation5 + $0x68] sm:$0xff] 0.0
        %755 = vst [vmem:[#allocation5 + $0x70] sm:$0xff] 0.0
        %756 = vst [vmem:[#allocation5 + $0x78] sm:$0xff] 0.0
        %757 = vst [vmem:[#allocation5 + $0x80] sm:$0xff] 0.0
        %758 = vst [vmem:[#allocation5 + $0x88] sm:$0xff] 0.0
        %759 = vst [vmem:[#allocation5 + $0x90] sm:$0xff] 0.0
        %760 = vst [vmem:[#allocation5 + $0x98] sm:$0xff] 0.0
        %761 = vst [vmem:[#allocation5 + $0xa0] sm:$0xff] 0.0
        %762 = vst [vmem:[#allocation5 + $0xa8] sm:$0xff] 0.0
        %763 = vst [vmem:[#allocation5 + $0xb0] sm:$0xff] 0.0
        %764 = vst [vmem:[#allocation5 + $0xb8] sm:$0xff] 0.0
        %765 = vst [vmem:[#allocation5 + $0xc0] sm:$0xff] 0.0
        %766 = vst [vmem:[#allocation5 + $0xc8] sm:$0xff] 0.0
        %767 = vst [vmem:[#allocation5 + $0xd0] sm:$0xff] 0.0
        %768 = vst [vmem:[#allocation5 + $0xd8] sm:$0xff] 0.0
        %769 = vst [vmem:[#allocation5 + $0xe0] sm:$0xff] 0.0
        %770 = vst [vmem:[#allocation5 + $0xe8] sm:$0xff] 0.0
        %771 = vst [vmem:[#allocation5 + $0xf0] sm:$0xff] 0.0
        %772 = vst [vmem:[#allocation5 + $0xf8] sm:$0xff] 0.0
      $region48: #{_level_forward.1} parent=43 // pred_fallthru
        _
      %v773 = vld [vmem:[%s322] sm:$0xf]
      %v774 = vld [vmem:[%s322 + $0x4] sm:$0xf]
      %v775 = vld [vmem:[%s322 + $0x8] sm:$0xf]
      %v776 = vld [vmem:[%s322 + $0xc] sm:$0xf]
      %v777 = vld [vmem:[%s322 + $0x10] sm:$0xf]
      %v778 = vld [vmem:[%s322 + $0x14] sm:$0xf]
      %v779 = vld [vmem:[%s322 + $0x18] sm:$0xf]
      %v780 = vld [vmem:[%s322 + $0x1c] sm:$0xf]
      %v781 = vld [vmem:[%s322 + $0x20] sm:$0xf]
      %v782 = vld [vmem:[%s322 + $0x24] sm:$0xf]
      %v783 = vld [vmem:[%s322 + $0x28] sm:$0xf]
      %v784 = vld [vmem:[%s322 + $0x2c] sm:$0xf]
      %v785 = vld [vmem:[%s322 + $0x30] sm:$0xf]
      %v786 = vld [vmem:[%s322 + $0x34] sm:$0xf]
      %v787 = vld [vmem:[%s322 + $0x38] sm:$0xf]
      %v788 = vld [vmem:[%s322 + $0x3c] sm:$0xf]
      %v789 = vld [vmem:[%s322 + $0x40] sm:$0xf]
      %v790 = vld [vmem:[%s322 + $0x44] sm:$0xf]
      %v791 = vld [vmem:[%s322 + $0x48] sm:$0xf]
      %v792 = vld [vmem:[%s322 + $0x4c] sm:$0xf]
      %v793 = vld [vmem:[%s322 + $0x50] sm:$0xf]
      %v794 = vld [vmem:[%s322 + $0x54] sm:$0xf]
      %v795 = vld [vmem:[%s322 + $0x58] sm:$0xf]
      %v796 = vld [vmem:[%s322 + $0x5c] sm:$0xf]
      %v797 = vld [vmem:[%s322 + $0x60] sm:$0xf]
      %v798 = vld [vmem:[%s322 + $0x64] sm:$0xf]
      %v799 = vld [vmem:[%s322 + $0x68] sm:$0xf]
      %v800 = vld [vmem:[%s322 + $0x6c] sm:$0xf]
      %v801 = vld [vmem:[%s322 + $0x70] sm:$0xf]
      %v802 = vld [vmem:[%s322 + $0x74] sm:$0xf]
      %v803 = vld [vmem:[%s322 + $0x78] sm:$0xf]
      %v804 = vld [vmem:[%s322 + $0x7c] sm:$0xf]
      %v805 = vld [vmem:[%s322 + $0x80] sm:$0xf]
      %v806 = vld [vmem:[%s322 + $0x84] sm:$0xf]
      %v807 = vld [vmem:[%s322 + $0x88] sm:$0xf]
      %v808 = vld [vmem:[%s322 + $0x8c] sm:$0xf]
      %v809 = vld [vmem:[%s322 + $0x90] sm:$0xf]
      %v810 = vld [vmem:[%s322 + $0x94] sm:$0xf]
      %v811 = vld [vmem:[%s322 + $0x98] sm:$0xf]
      %v812 = vld [vmem:[%s322 + $0x9c] sm:$0xf]
      %v813 = vld [vmem:[%s322 + $0xa0] sm:$0xf]
      %v814 = vld [vmem:[%s322 + $0xa4] sm:$0xf]
      %v815 = vld [vmem:[%s322 + $0xa8] sm:$0xf]
      %v816 = vld [vmem:[%s322 + $0xac] sm:$0xf]
      %v817 = vld [vmem:[%s322 + $0xb0] sm:$0xf]
      %v818 = vld [vmem:[%s322 + $0xb4] sm:$0xf]
      %v819 = vld [vmem:[%s322 + $0xb8] sm:$0xf]
      %v820 = vld [vmem:[%s322 + $0xbc] sm:$0xf]
      %v821 = vld [vmem:[%s322 + $0xc0] sm:$0xf]
      %v822 = vld [vmem:[%s322 + $0xc4] sm:$0xf]
      %v823 = vld [vmem:[%s322 + $0xc8] sm:$0xf]
      %v824 = vld [vmem:[%s322 + $0xcc] sm:$0xf]
      %v825 = vld [vmem:[%s322 + $0xd0] sm:$0xf]
      %v826 = vld [vmem:[%s322 + $0xd4] sm:$0xf]
      %v827 = vld [vmem:[%s322 + $0xd8] sm:$0xf]
      %v828 = vld [vmem:[%s322 + $0xdc] sm:$0xf]
      %v829 = vld [vmem:[%s322 + $0xe0] sm:$0xf]
      %v830 = vld [vmem:[%s322 + $0xe4] sm:$0xf]
      %v831 = vld [vmem:[%s322 + $0xe8] sm:$0xf]
      %v832 = vld [vmem:[%s322 + $0xec] sm:$0xf]
      %v833 = vld [vmem:[%s322 + $0xf0] sm:$0xf]
      %v834 = vld [vmem:[%s322 + $0xf4] sm:$0xf]
      %v835 = vld [vmem:[%s322 + $0xf8] sm:$0xf]
      %v836 = vld [vmem:[%s322 + $0xfc] sm:$0xf]
      %v837 = vld [vmem:[#allocation2] sm:$0xff]
      %v838 = vld [vmem:[#allocation2 + $0x8] sm:$0xff]
      %v839 = vld [vmem:[#allocation2 + $0x10] sm:$0xff]
      %v840 = vld [vmem:[#allocation2 + $0x18] sm:$0xff]
      %v841 = vld [vmem:[#allocation2 + $0x20] sm:$0xff]
      %v842 = vld [vmem:[#allocation2 + $0x28] sm:$0xff]
      %v843 = vld [vmem:[#allocation2 + $0x30] sm:$0xff]
      %v844 = vld [vmem:[#allocation2 + $0x38] sm:$0xff]
      %v845 = vld [vmem:[#allocation2 + $0x40] sm:$0xff]
      %v846 = vld [vmem:[#allocation2 + $0x48] sm:$0xff]
      %v847 = vld [vmem:[#allocation2 + $0x50] sm:$0xff]
      %v848 = vld [vmem:[#allocation2 + $0x58] sm:$0xff]
      %v849 = vld [vmem:[#allocation2 + $0x60] sm:$0xff]
      %v850 = vld [vmem:[#allocation2 + $0x68] sm:$0xff]
      %v851 = vld [vmem:[#allocation2 + $0x70] sm:$0xff]
      %v852 = vld [vmem:[#allocation2 + $0x78] sm:$0xff]
      %v917 = vunpack.c.l.b16 %v773
      %v918 = vunpack.c.l.b16 %v774
      %v919 = vunpack.c.l.b16 %v775
      %v920 = vunpack.c.l.b16 %v776
      %v921 = vunpack.c.l.b16 %v777
      %v922 = vunpack.c.l.b16 %v778
      %v923 = vunpack.c.l.b16 %v779
      %v924 = vunpack.c.l.b16 %v780
      %v925 = vunpack.c.l.b16 %v781
      %v926 = vunpack.c.l.b16 %v782
      %v927 = vunpack.c.l.b16 %v783
      %v928 = vunpack.c.l.b16 %v784
      %v929 = vunpack.c.l.b16 %v785
      %v930 = vunpack.c.l.b16 %v786
      %v931 = vunpack.c.l.b16 %v787
      %v932 = vunpack.c.l.b16 %v788
      %v933 = vunpack.c.l.b16 %v789
      %v934 = vunpack.c.l.b16 %v790
      %v935 = vunpack.c.l.b16 %v791
      %v936 = vunpack.c.l.b16 %v792
      %v937 = vunpack.c.l.b16 %v793
      %v938 = vunpack.c.l.b16 %v794
      %v939 = vunpack.c.l.b16 %v795
      %v940 = vunpack.c.l.b16 %v796
      %v941 = vunpack.c.l.b16 %v797
      %v942 = vunpack.c.l.b16 %v798
      %v943 = vunpack.c.l.b16 %v799
      %v944 = vunpack.c.l.b16 %v800
      %v945 = vunpack.c.l.b16 %v801
      %v946 = vunpack.c.l.b16 %v802
      %v947 = vunpack.c.l.b16 %v803
      %v948 = vunpack.c.l.b16 %v804
      %v949 = vunpack.c.l.b16 %v805
      %v950 = vunpack.c.l.b16 %v806
      %v951 = vunpack.c.l.b16 %v807
      %v952 = vunpack.c.l.b16 %v808
      %v953 = vunpack.c.l.b16 %v809
      %v954 = vunpack.c.l.b16 %v810
      %v955 = vunpack.c.l.b16 %v811
      %v956 = vunpack.c.l.b16 %v812
      %v957 = vunpack.c.l.b16 %v813
      %v958 = vunpack.c.l.b16 %v814
      %v959 = vunpack.c.l.b16 %v815
      %v960 = vunpack.c.l.b16 %v816
      %v961 = vunpack.c.l.b16 %v817
      %v962 = vunpack.c.l.b16 %v818
      %v963 = vunpack.c.l.b16 %v819
      %v964 = vunpack.c.l.b16 %v820
      %v965 = vunpack.c.l.b16 %v821
      %v966 = vunpack.c.l.b16 %v822
      %v967 = vunpack.c.l.b16 %v823
      %v968 = vunpack.c.l.b16 %v824
      %v969 = vunpack.c.l.b16 %v825
      %v970 = vunpack.c.l.b16 %v826
      %v971 = vunpack.c.l.b16 %v827
      %v972 = vunpack.c.l.b16 %v828
      %v973 = vunpack.c.l.b16 %v829
      %v974 = vunpack.c.l.b16 %v830
      %v975 = vunpack.c.l.b16 %v831
      %v976 = vunpack.c.l.b16 %v832
      %v977 = vunpack.c.l.b16 %v833
      %v978 = vunpack.c.l.b16 %v834
      %v979 = vunpack.c.l.b16 %v835
      %v980 = vunpack.c.l.b16 %v836
      %v981 = vpack.c.b16 %v918, %v917
      %v982 = vpack.c.b16 %v920, %v919
      %v983 = vpack.c.b16 %v922, %v921
      %v984 = vpack.c.b16 %v924, %v923
      %v985 = vpack.c.b16 %v926, %v925
      %v986 = vpack.c.b16 %v928, %v927
      %v987 = vpack.c.b16 %v930, %v929
      %v988 = vpack.c.b16 %v932, %v931
      %v989 = vpack.c.b16 %v934, %v933
      %v990 = vpack.c.b16 %v936, %v935
      %v991 = vpack.c.b16 %v938, %v937
      %v992 = vpack.c.b16 %v940, %v939
      %v993 = vpack.c.b16 %v942, %v941
      %v994 = vpack.c.b16 %v944, %v943
      %v995 = vpack.c.b16 %v946, %v945
      %v996 = vpack.c.b16 %v948, %v947
      %v997 = vpack.c.b16 %v950, %v949
      %v998 = vpack.c.b16 %v952, %v951
      %v999 = vpack.c.b16 %v954, %v953
      %v1000 = vpack.c.b16 %v956, %v955
      %v1001 = vpack.c.b16 %v958, %v957
      %v1002 = vpack.c.b16 %v960, %v959
      %v1003 = vpack.c.b16 %v962, %v961
      %v1004 = vpack.c.b16 %v964, %v963
      %v1005 = vpack.c.b16 %v966, %v965
      %v1006 = vpack.c.b16 %v968, %v967
      %v1007 = vpack.c.b16 %v970, %v969
      %v1008 = vpack.c.b16 %v972, %v971
      %v1009 = vpack.c.b16 %v974, %v973
      %v1010 = vpack.c.b16 %v976, %v975
      %v1011 = vpack.c.b16 %v978, %v977
      %v1012 = vpack.c.b16 %v980, %v979
      %1045 = vmatprep.subr.bf16.mxu0 0
      %1046 = vmatpush1.bf16.xpose.msra.mxu0 %v981
      %1047 = vmatprep.subr.bf16.mxu0 0
      %1048 = vmatpush1.bf16.xpose.msra.mxu0 %v982
      %1049 = vmatprep.subr.bf16.mxu0 0
      %1050 = vmatpush1.bf16.xpose.msra.mxu0 %v983
      %1051 = vmatprep.subr.bf16.mxu0 0
      %1052 = vmatpush1.bf16.xpose.msra.mxu0 %v984
      %1053 = vmatprep.subr.bf16.mxu0 0
      %1054 = vmatpush1.bf16.xpose.msra.mxu0 %v985
      %1055 = vmatprep.subr.bf16.mxu0 0
      %1056 = vmatpush1.bf16.xpose.msra.mxu0 %v986
      %1057 = vmatprep.subr.bf16.mxu0 0
      %1058 = vmatpush1.bf16.xpose.msra.mxu0 %v987
      %1059 = vmatprep.subr.bf16.mxu0 0
      %1060 = vmatpush1.bf16.xpose.msra.mxu0 %v988
      %1061 = vmatprep.subr.bf16.mxu0 0
      %1062 = vmatpush1.bf16.xpose.msra.mxu0 %v989
      %1063 = vmatprep.subr.bf16.mxu0 0
      %1064 = vmatpush1.bf16.xpose.msra.mxu0 %v990
      %1065 = vmatprep.subr.bf16.mxu0 0
      %1066 = vmatpush1.bf16.xpose.msra.mxu0 %v991
      %1067 = vmatprep.subr.bf16.mxu0 0
      %1068 = vmatpush1.bf16.xpose.msra.mxu0 %v992
      %1069 = vmatprep.subr.bf16.mxu0 0
      %1070 = vmatpush1.bf16.xpose.msra.mxu0 %v993
      %1071 = vmatprep.subr.bf16.mxu0 0
      %1072 = vmatpush1.bf16.xpose.msra.mxu0 %v994
      %1073 = vmatprep.subr.bf16.mxu0 0
      %1074 = vmatpush1.bf16.xpose.msra.mxu0 %v995
      %1075 = vmatprep.subr.bf16.mxu0 0
      %1076 = vmatpush1.bf16.xpose.msra.mxu0 %v996
      %1077 = vmatprep.mubr.bf16.mxu0 0
      %1078 = vmatmul.mubr.bf16.gmra.mrb[0].mxu0 %v837
      %v1079 = vpop.f32.mrb[0].mxu0
      %v1080 = vadd.f32 0.0, %v1079
      %v1081 = vpop.f32.mrb[0].mxu0
      %v1082 = vadd.f32 0.0, %v1081
      %v1083 = vpop.f32.mrb[0].mxu0
      %v1084 = vadd.f32 0.0, %v1083
      %v1085 = vpop.f32.mrb[0].mxu0
      %v1086 = vadd.f32 0.0, %v1085
      %1087 = vmatprep.mubr.bf16.mxu0 0
      %1088 = vmatmul.mubr.bf16.gmra.mrb[0].mxu0 %v838
      %v1089 = vpop.f32.mrb[0].mxu0
      %v1090 = vadd.f32 0.0, %v1089
      %v1091 = vpop.f32.mrb[0].mxu0
      %v1092 = vadd.f32 0.0, %v1091
      %v1093 = vpop.f32.mrb[0].mxu0
      %v1094 = vadd.f32 0.0, %v1093
      %v1095 = vpop.f32.mrb[0].mxu0
      %v1096 = vadd.f32 0.0, %v1095
      %1097 = vmatprep.mubr.bf16.mxu0 0
      %1098 = vmatmul.mubr.bf16.gmra.mrb[0].mxu0 %v839
      %v1099 = vpop.f32.mrb[0].mxu0
      %v1100 = vadd.f32 0.0, %v1099
      %v1101 = vpop.f32.mrb[0].mxu0
      %v1102 = vadd.f32 0.0, %v1101
      %v1103 = vpop.f32.mrb[0].mxu0
      %v1104 = vadd.f32 0.0, %v1103
      %v1105 = vpop.f32.mrb[0].mxu0
      %v1106 = vadd.f32 0.0, %v1105
      %1107 = vmatprep.mubr.bf16.mxu0 0
      %1108 = vmatmul.mubr.bf16.gmra.mrb[0].mxu0 %v840
      %v1109 = vpop.f32.mrb[0].mxu0
      %v1110 = vadd.f32 0.0, %v1109
      %v1111 = vpop.f32.mrb[0].mxu0
      %v1112 = vadd.f32 0.0, %v1111
      %v1113 = vpop.f32.mrb[0].mxu0
      %v1114 = vadd.f32 0.0, %v1113
      %v1115 = vpop.f32.mrb[0].mxu0
      %v1116 = vadd.f32 0.0, %v1115
      %1117 = vmatprep.mubr.bf16.mxu0 0
      %1118 = vmatmul.mubr.bf16.gmra.mrb[0].mxu0 %v841
      %v1119 = vpop.f32.mrb[0].mxu0
      %v1120 = vadd.f32 0.0, %v1119
      %v1121 = vpop.f32.mrb[0].mxu0
      %v1122 = vadd.f32 0.0, %v1121
      %v1123 = vpop.f32.mrb[0].mxu0
      %v1124 = vadd.f32 0.0, %v1123
      %v1125 = vpop.f32.mrb[0].mxu0
      %v1126 = vadd.f32 0.0, %v1125
      %1127 = vmatprep.mubr.bf16.mxu0 0
      %1128 = vmatmul.mubr.bf16.gmra.mrb[0].mxu0 %v842
      %v1129 = vpop.f32.mrb[0].mxu0
      %v1130 = vadd.f32 0.0, %v1129
      %v1131 = vpop.f32.mrb[0].mxu0
      %v1132 = vadd.f32 0.0, %v1131
      %v1133 = vpop.f32.mrb[0].mxu0
      %v1134 = vadd.f32 0.0, %v1133
      %v1135 = vpop.f32.mrb[0].mxu0
      %v1136 = vadd.f32 0.0, %v1135
      %1137 = vmatprep.mubr.bf16.mxu0 0
      %1138 = vmatmul.mubr.bf16.gmra.mrb[0].mxu0 %v843
      %v1139 = vpop.f32.mrb[0].mxu0
      %v1140 = vadd.f32 0.0, %v1139
      %v1141 = vpop.f32.mrb[0].mxu0
      %v1142 = vadd.f32 0.0, %v1141
      %v1143 = vpop.f32.mrb[0].mxu0
      %v1144 = vadd.f32 0.0, %v1143
      %v1145 = vpop.f32.mrb[0].mxu0
      %v1146 = vadd.f32 0.0, %v1145
      %1147 = vmatprep.mubr.bf16.mxu0 0
      %1148 = vmatmul.mubr.bf16.gmra.mrb[0].mxu0 %v844
      %v1149 = vpop.f32.mrb[0].mxu0
      %v1150 = vadd.f32 0.0, %v1149
      %v1151 = vpop.f32.mrb[0].mxu0
      %v1152 = vadd.f32 0.0, %v1151
      %v1153 = vpop.f32.mrb[0].mxu0
      %v1154 = vadd.f32 0.0, %v1153
      %v1155 = vpop.f32.mrb[0].mxu0
      %v1156 = vadd.f32 0.0, %v1155
      %1157 = vmatprep.mubr.bf16.mxu0 0
      %1158 = vmatmul.mubr.bf16.gmra.mrb[0].mxu0 %v845
      %v1159 = vpop.f32.mrb[0].mxu0
      %v1160 = vadd.f32 0.0, %v1159
      %v1161 = vpop.f32.mrb[0].mxu0
      %v1162 = vadd.f32 0.0, %v1161
      %v1163 = vpop.f32.mrb[0].mxu0
      %v1164 = vadd.f32 0.0, %v1163
      %v1165 = vpop.f32.mrb[0].mxu0
      %v1166 = vadd.f32 0.0, %v1165
      %1167 = vmatprep.mubr.bf16.mxu0 0
      %1168 = vmatmul.mubr.bf16.gmra.mrb[0].mxu0 %v846
      %v1169 = vpop.f32.mrb[0].mxu0
      %v1170 = vadd.f32 0.0, %v1169
      %v1171 = vpop.f32.mrb[0].mxu0
      %v1172 = vadd.f32 0.0, %v1171
      %v1173 = vpop.f32.mrb[0].mxu0
      %v1174 = vadd.f32 0.0, %v1173
      %v1175 = vpop.f32.mrb[0].mxu0
      %v1176 = vadd.f32 0.0, %v1175
      %1177 = vmatprep.mubr.bf16.mxu0 0
      %1178 = vmatmul.mubr.bf16.gmra.mrb[0].mxu0 %v847
      %v1179 = vpop.f32.mrb[0].mxu0
      %v1180 = vadd.f32 0.0, %v1179
      %v1181 = vpop.f32.mrb[0].mxu0
      %v1182 = vadd.f32 0.0, %v1181
      %v1183 = vpop.f32.mrb[0].mxu0
      %v1184 = vadd.f32 0.0, %v1183
      %v1185 = vpop.f32.mrb[0].mxu0
      %v1186 = vadd.f32 0.0, %v1185
      %1187 = vmatprep.mubr.bf16.mxu0 0
      %1188 = vmatmul.mubr.bf16.gmra.mrb[0].mxu0 %v848
      %v1189 = vpop.f32.mrb[0].mxu0
      %v1190 = vadd.f32 0.0, %v1189
      %v1191 = vpop.f32.mrb[0].mxu0
      %v1192 = vadd.f32 0.0, %v1191
      %v1193 = vpop.f32.mrb[0].mxu0
      %v1194 = vadd.f32 0.0, %v1193
      %v1195 = vpop.f32.mrb[0].mxu0
      %v1196 = vadd.f32 0.0, %v1195
      %1197 = vmatprep.mubr.bf16.mxu0 0
      %1198 = vmatmul.mubr.bf16.gmra.mrb[0].mxu0 %v849
      %v1199 = vpop.f32.mrb[0].mxu0
      %v1200 = vadd.f32 0.0, %v1199
      %v1201 = vpop.f32.mrb[0].mxu0
      %v1202 = vadd.f32 0.0, %v1201
      %v1203 = vpop.f32.mrb[0].mxu0
      %v1204 = vadd.f32 0.0, %v1203
      %v1205 = vpop.f32.mrb[0].mxu0
      %v1206 = vadd.f32 0.0, %v1205
      %1207 = vmatprep.mubr.bf16.mxu0 0
      %1208 = vmatmul.mubr.bf16.gmra.mrb[0].mxu0 %v850
      %v1209 = vpop.f32.mrb[0].mxu0
      %v1210 = vadd.f32 0.0, %v1209
      %v1211 = vpop.f32.mrb[0].mxu0
      %v1212 = vadd.f32 0.0, %v1211
      %v1213 = vpop.f32.mrb[0].mxu0
      %v1214 = vadd.f32 0.0, %v1213
      %v1215 = vpop.f32.mrb[0].mxu0
      %v1216 = vadd.f32 0.0, %v1215
      %1217 = vmatprep.mubr.bf16.mxu0 0
      %1218 = vmatmul.mubr.bf16.gmra.mrb[0].mxu0 %v851
      %v1219 = vpop.f32.mrb[0].mxu0
      %v1220 = vadd.f32 0.0, %v1219
      %v1221 = vpop.f32.mrb[0].mxu0
      %v1222 = vadd.f32 0.0, %v1221
      %v1223 = vpop.f32.mrb[0].mxu0
      %v1224 = vadd.f32 0.0, %v1223
      %v1225 = vpop.f32.mrb[0].mxu0
      %v1226 = vadd.f32 0.0, %v1225
      %1227 = vmatprep.mubr.bf16.mxu0 0
      %1228 = vmatmul.mubr.bf16.gmra.mrb[0].mxu0 %v852
      %v1229 = vpop.f32.mrb[0].mxu0
      %v1230 = vadd.f32 0.0, %v1229
      %v1231 = vpop.f32.mrb[0].mxu0
      %v1232 = vadd.f32 0.0, %v1231
      %v1233 = vpop.f32.mrb[0].mxu0
      %v1234 = vadd.f32 0.0, %v1233
      %v1235 = vpop.f32.mrb[0].mxu0
      %v1236 = vadd.f32 0.0, %v1235
      %1237 = vdwg.mxu0
      %1238 = vmatprep.subr.bf16.mxu0 0
      %1239 = vmatpush1.bf16.xpose.msra.mxu0 %v997
      %1240 = vmatprep.subr.bf16.mxu0 0
      %1241 = vmatpush1.bf16.xpose.msra.mxu0 %v998
      %1242 = vmatprep.subr.bf16.mxu0 0
      %1243 = vmatpush1.bf16.xpose.msra.mxu0 %v999
      %1244 = vmatprep.subr.bf16.mxu0 0
      %1245 = vmatpush1.bf16.xpose.msra.mxu0 %v1000
      %1246 = vmatprep.subr.bf16.mxu0 0
      %1247 = vmatpush1.bf16.xpose.msra.mxu0 %v1001
      %1248 = vmatprep.subr.bf16.mxu0 0
      %1249 = vmatpush1.bf16.xpose.msra.mxu0 %v1002
      %1250 = vmatprep.subr.bf16.mxu0 0
      %1251 = vmatpush1.bf16.xpose.msra.mxu0 %v1003
      %1252 = vmatprep.subr.bf16.mxu0 0
      %1253 = vmatpush1.bf16.xpose.msra.mxu0 %v1004
      %1254 = vmatprep.subr.bf16.mxu0 0
      %1255 = vmatpush1.bf16.xpose.msra.mxu0 %v1005
      %1256 = vmatprep.subr.bf16.mxu0 0
      %1257 = vmatpush1.bf16.xpose.msra.mxu0 %v1006
      %1258 = vmatprep.subr.bf16.mxu0 0
      %1259 = vmatpush1.bf16.xpose.msra.mxu0 %v1007
      %1260 = vmatprep.subr.bf16.mxu0 0
      %1261 = vmatpush1.bf16.xpose.msra.mxu0 %v1008
      %1262 = vmatprep.subr.bf16.mxu0 0
      %1263 = vmatpush1.bf16.xpose.msra.mxu0 %v1009
      %1264 = vmatprep.subr.bf16.mxu0 0
      %1265 = vmatpush1.bf16.xpose.msra.mxu0 %v1010
      %1266 = vmatprep.subr.bf16.mxu0 0
      %1267 = vmatpush1.bf16.xpose.msra.mxu0 %v1011
      %1268 = vmatprep.subr.bf16.mxu0 0
      %1269 = vmatpush1.bf16.xpose.msra.mxu0 %v1012
      %1270 = vmatprep.mubr.bf16.mxu0 0
      %1271 = vmatmul.mubr.bf16.gmra.mrb[0].mxu0 %v837
      %v1272 = vpop.f32.mrb[0].mxu0
      %v1273 = vadd.f32 0.0, %v1272
      %v1274 = vpop.f32.mrb[0].mxu0
      %v1275 = vadd.f32 0.0, %v1274
      %v1276 = vpop.f32.mrb[0].mxu0
      %v1277 = vadd.f32 0.0, %v1276
      %v1278 = vpop.f32.mrb[0].mxu0
      %v1279 = vadd.f32 0.0, %v1278
      %1280 = vmatprep.mubr.bf16.mxu0 0
      %1281 = vmatmul.mubr.bf16.gmra.mrb[0].mxu0 %v838
      %v1282 = vpop.f32.mrb[0].mxu0
      %v1283 = vadd.f32 0.0, %v1282
      %v1284 = vpop.f32.mrb[0].mxu0
      %v1285 = vadd.f32 0.0, %v1284
      %v1286 = vpop.f32.mrb[0].mxu0
      %v1287 = vadd.f32 0.0, %v1286
      %v1288 = vpop.f32.mrb[0].mxu0
      %v1289 = vadd.f32 0.0, %v1288
      %1290 = vmatprep.mubr.bf16.mxu0 0
      %1291 = vmatmul.mubr.bf16.gmra.mrb[0].mxu0 %v839
      %v1292 = vpop.f32.mrb[0].mxu0
      %v1293 = vadd.f32 0.0, %v1292
      %v1294 = vpop.f32.mrb[0].mxu0
      %v1295 = vadd.f32 0.0, %v1294
      %v1296 = vpop.f32.mrb[0].mxu0
      %v1297 = vadd.f32 0.0, %v1296
      %v1298 = vpop.f32.mrb[0].mxu0
      %v1299 = vadd.f32 0.0, %v1298
      %1300 = vmatprep.mubr.bf16.mxu0 0
      %1301 = vmatmul.mubr.bf16.gmra.mrb[0].mxu0 %v840
      %v1302 = vpop.f32.mrb[0].mxu0
      %v1303 = vadd.f32 0.0, %v1302
      %v1304 = vpop.f32.mrb[0].mxu0
      %v1305 = vadd.f32 0.0, %v1304
      %v1306 = vpop.f32.mrb[0].mxu0
      %v1307 = vadd.f32 0.0, %v1306
      %v1308 = vpop.f32.mrb[0].mxu0
      %v1309 = vadd.f32 0.0, %v1308
      %1310 = vmatprep.mubr.bf16.mxu0 0
      %1311 = vmatmul.mubr.bf16.gmra.mrb[0].mxu0 %v841
      %v1312 = vpop.f32.mrb[0].mxu0
      %v1313 = vadd.f32 0.0, %v1312
      %v1314 = vpop.f32.mrb[0].mxu0
      %v1315 = vadd.f32 0.0, %v1314
      %v1316 = vpop.f32.mrb[0].mxu0
      %v1317 = vadd.f32 0.0, %v1316
      %v1318 = vpop.f32.mrb[0].mxu0
      %v1319 = vadd.f32 0.0, %v1318
      %1320 = vmatprep.mubr.bf16.mxu0 0
      %1321 = vmatmul.mubr.bf16.gmra.mrb[0].mxu0 %v842
      %v1322 = vpop.f32.mrb[0].mxu0
      %v1323 = vadd.f32 0.0, %v1322
      %v1324 = vpop.f32.mrb[0].mxu0
      %v1325 = vadd.f32 0.0, %v1324
      %v1326 = vpop.f32.mrb[0].mxu0
      %v1327 = vadd.f32 0.0, %v1326
      %v1328 = vpop.f32.mrb[0].mxu0
      %v1329 = vadd.f32 0.0, %v1328
      %1330 = vmatprep.mubr.bf16.mxu0 0
      %1331 = vmatmul.mubr.bf16.gmra.mrb[0].mxu0 %v843
      %v1332 = vpop.f32.mrb[0].mxu0
      %v1333 = vadd.f32 0.0, %v1332
      %v1334 = vpop.f32.mrb[0].mxu0
      %v1335 = vadd.f32 0.0, %v1334
      %v1336 = vpop.f32.mrb[0].mxu0
      %v1337 = vadd.f32 0.0, %v1336
      %v1338 = vpop.f32.mrb[0].mxu0
      %v1339 = vadd.f32 0.0, %v1338
      %1340 = vmatprep.mubr.bf16.mxu0 0
      %1341 = vmatmul.mubr.bf16.gmra.mrb[0].mxu0 %v844
      %v1342 = vpop.f32.mrb[0].mxu0
      %v1343 = vadd.f32 0.0, %v1342
      %v1344 = vpop.f32.mrb[0].mxu0
      %v1345 = vadd.f32 0.0, %v1344
      %v1346 = vpop.f32.mrb[0].mxu0
      %v1347 = vadd.f32 0.0, %v1346
      %v1348 = vpop.f32.mrb[0].mxu0
      %v1349 = vadd.f32 0.0, %v1348
      %1350 = vmatprep.mubr.bf16.mxu0 0
      %1351 = vmatmul.mubr.bf16.gmra.mrb[0].mxu0 %v845
      %v1352 = vpop.f32.mrb[0].mxu0
      %v1353 = vadd.f32 0.0, %v1352
      %v1354 = vpop.f32.mrb[0].mxu0
      %v1355 = vadd.f32 0.0, %v1354
      %v1356 = vpop.f32.mrb[0].mxu0
      %v1357 = vadd.f32 0.0, %v1356
      %v1358 = vpop.f32.mrb[0].mxu0
      %v1359 = vadd.f32 0.0, %v1358
      %1360 = vmatprep.mubr.bf16.mxu0 0
      %1361 = vmatmul.mubr.bf16.gmra.mrb[0].mxu0 %v846
      %v1362 = vpop.f32.mrb[0].mxu0
      %v1363 = vadd.f32 0.0, %v1362
      %v1364 = vpop.f32.mrb[0].mxu0
      %v1365 = vadd.f32 0.0, %v1364
      %v1366 = vpop.f32.mrb[0].mxu0
      %v1367 = vadd.f32 0.0, %v1366
      %v1368 = vpop.f32.mrb[0].mxu0
      %v1369 = vadd.f32 0.0, %v1368
      %1370 = vmatprep.mubr.bf16.mxu0 0
      %1371 = vmatmul.mubr.bf16.gmra.mrb[0].mxu0 %v847
      %v1372 = vpop.f32.mrb[0].mxu0
      %v1373 = vadd.f32 0.0, %v1372
      %v1374 = vpop.f32.mrb[0].mxu0
      %v1375 = vadd.f32 0.0, %v1374
      %v1376 = vpop.f32.mrb[0].mxu0
      %v1377 = vadd.f32 0.0, %v1376
      %v1378 = vpop.f32.mrb[0].mxu0
      %v1379 = vadd.f32 0.0, %v1378
      %1380 = vmatprep.mubr.bf16.mxu0 0
      %1381 = vmatmul.mubr.bf16.gmra.mrb[0].mxu0 %v848
      %v1382 = vpop.f32.mrb[0].mxu0
      %v1383 = vadd.f32 0.0, %v1382
      %v1384 = vpop.f32.mrb[0].mxu0
      %v1385 = vadd.f32 0.0, %v1384
      %v1386 = vpop.f32.mrb[0].mxu0
      %v1387 = vadd.f32 0.0, %v1386
      %v1388 = vpop.f32.mrb[0].mxu0
      %v1389 = vadd.f32 0.0, %v1388
      %1390 = vmatprep.mubr.bf16.mxu0 0
      %1391 = vmatmul.mubr.bf16.gmra.mrb[0].mxu0 %v849
      %v1392 = vpop.f32.mrb[0].mxu0
      %v1393 = vadd.f32 0.0, %v1392
      %v1394 = vpop.f32.mrb[0].mxu0
      %v1395 = vadd.f32 0.0, %v1394
      %v1396 = vpop.f32.mrb[0].mxu0
      %v1397 = vadd.f32 0.0, %v1396
      %v1398 = vpop.f32.mrb[0].mxu0
      %v1399 = vadd.f32 0.0, %v1398
      %1400 = vmatprep.mubr.bf16.mxu0 0
      %1401 = vmatmul.mubr.bf16.gmra.mrb[0].mxu0 %v850
      %v1402 = vpop.f32.mrb[0].mxu0
      %v1403 = vadd.f32 0.0, %v1402
      %v1404 = vpop.f32.mrb[0].mxu0
      %v1405 = vadd.f32 0.0, %v1404
      %v1406 = vpop.f32.mrb[0].mxu0
      %v1407 = vadd.f32 0.0, %v1406
      %v1408 = vpop.f32.mrb[0].mxu0
      %v1409 = vadd.f32 0.0, %v1408
      %1410 = vmatprep.mubr.bf16.mxu0 0
      %1411 = vmatmul.mubr.bf16.gmra.mrb[0].mxu0 %v851
      %v1412 = vpop.f32.mrb[0].mxu0
      %v1413 = vadd.f32 0.0, %v1412
      %v1414 = vpop.f32.mrb[0].mxu0
      %v1415 = vadd.f32 0.0, %v1414
      %v1416 = vpop.f32.mrb[0].mxu0
      %v1417 = vadd.f32 0.0, %v1416
      %v1418 = vpop.f32.mrb[0].mxu0
      %v1419 = vadd.f32 0.0, %v1418
      %1420 = vmatprep.mubr.bf16.mxu0 0
      %1421 = vmatmul.mubr.bf16.gmra.mrb[0].mxu0 %v852
      %v1422 = vpop.f32.mrb[0].mxu0
      %v1423 = vadd.f32 0.0, %v1422
      %v1424 = vpop.f32.mrb[0].mxu0
      %v1425 = vadd.f32 0.0, %v1424
      %v1426 = vpop.f32.mrb[0].mxu0
      %v1427 = vadd.f32 0.0, %v1426
      %v1428 = vpop.f32.mrb[0].mxu0
      %v1429 = vadd.f32 0.0, %v1428
      %1430 = vdwg.mxu0
      %v1431 = vld [vmem:[#allocation3] sm:$0xff]
      %v1432 = vld [vmem:[#allocation3 + $0x8] sm:$0xff]
      %v1433 = vld [vmem:[#allocation3 + $0x10] sm:$0xff]
      %v1434 = vld [vmem:[#allocation3 + $0x18] sm:$0xff]
      %v1435 = vld [vmem:[#allocation3 + $0x20] sm:$0xff]
      %v1436 = vld [vmem:[#allocation3 + $0x28] sm:$0xff]
      %v1437 = vld [vmem:[#allocation3 + $0x30] sm:$0xff]
      %v1438 = vld [vmem:[#allocation3 + $0x38] sm:$0xff]
      %v1439 = vld [vmem:[#allocation3 + $0x40] sm:$0xff]
      %v1440 = vld [vmem:[#allocation3 + $0x48] sm:$0xff]
      %v1441 = vld [vmem:[#allocation3 + $0x50] sm:$0xff]
      %v1442 = vld [vmem:[#allocation3 + $0x58] sm:$0xff]
      %v1443 = vld [vmem:[#allocation3 + $0x60] sm:$0xff]
      %v1444 = vld [vmem:[#allocation3 + $0x68] sm:$0xff]
      %v1445 = vld [vmem:[#allocation3 + $0x70] sm:$0xff]
      %v1446 = vld [vmem:[#allocation3 + $0x78] sm:$0xff]
      %v1447 = vld [vmem:[#allocation3 + $0x80] sm:$0xff]
      %v1448 = vld [vmem:[#allocation3 + $0x88] sm:$0xff]
      %v1449 = vld [vmem:[#allocation3 + $0x90] sm:$0xff]
      %v1450 = vld [vmem:[#allocation3 + $0x98] sm:$0xff]
      %v1451 = vld [vmem:[#allocation3 + $0xa0] sm:$0xff]
      %v1452 = vld [vmem:[#allocation3 + $0xa8] sm:$0xff]
      %v1453 = vld [vmem:[#allocation3 + $0xb0] sm:$0xff]
      %v1454 = vld [vmem:[#allocation3 + $0xb8] sm:$0xff]
      %v1455 = vld [vmem:[#allocation3 + $0xc0] sm:$0xff]
      %v1456 = vld [vmem:[#allocation3 + $0xc8] sm:$0xff]
      %v1457 = vld [vmem:[#allocation3 + $0xd0] sm:$0xff]
      %v1458 = vld [vmem:[#allocation3 + $0xd8] sm:$0xff]
      %v1459 = vld [vmem:[#allocation3 + $0xe0] sm:$0xff]
      %v1460 = vld [vmem:[#allocation3 + $0xe8] sm:$0xff]
      %v1461 = vld [vmem:[#allocation3 + $0xf0] sm:$0xff]
      %v1462 = vld [vmem:[#allocation3 + $0xf8] sm:$0xff]
      %v1463 = vmax.f32 %v1080, %v1082
      %v1464 = vmax.f32 %v1463, %v1273
      %v1465 = vmax.f32 %v1464, %v1275
      %1466 = vmax.xlane.f32.xlu0 %v1465
      %v1467 = vpop.xlane.xlu0 %1466
      %v1468 = vmax.f32 %v1084, %v1086
      %v1469 = vmax.f32 %v1468, %v1277
      %v1470 = vmax.f32 %v1469, %v1279
      %1471 = vmax.xlane.f32.xlu0 %v1470
      %v1472 = vpop.xlane.xlu0 %1471
      %v1473 = vmax.f32 %v1090, %v1092
      %v1474 = vmax.f32 %v1473, %v1283
      %v1475 = vmax.f32 %v1474, %v1285
      %1476 = vmax.xlane.f32.xlu0 %v1475
      %v1477 = vpop.xlane.xlu0 %1476
      %v1478 = vmax.f32 %v1094, %v1096
      %v1479 = vmax.f32 %v1478, %v1287
      %v1480 = vmax.f32 %v1479, %v1289
      %1481 = vmax.xlane.f32.xlu0 %v1480
      %v1482 = vpop.xlane.xlu0 %1481
      %v1483 = vmax.f32 %v1100, %v1102
      %v1484 = vmax.f32 %v1483, %v1293
      %v1485 = vmax.f32 %v1484, %v1295
      %1486 = vmax.xlane.f32.xlu0 %v1485
      %v1487 = vpop.xlane.xlu0 %1486
      %v1488 = vmax.f32 %v1104, %v1106
      %v1489 = vmax.f32 %v1488, %v1297
      %v1490 = vmax.f32 %v1489, %v1299
      %1491 = vmax.xlane.f32.xlu0 %v1490
      %v1492 = vpop.xlane.xlu0 %1491
      %v1493 = vmax.f32 %v1110, %v1112
      %v1494 = vmax.f32 %v1493, %v1303
      %v1495 = vmax.f32 %v1494, %v1305
      %1496 = vmax.xlane.f32.xlu0 %v1495
      %v1497 = vpop.xlane.xlu0 %1496
      %v1498 = vmax.f32 %v1114, %v1116
      %v1499 = vmax.f32 %v1498, %v1307
      %v1500 = vmax.f32 %v1499, %v1309
      %1501 = vmax.xlane.f32.xlu0 %v1500
      %v1502 = vpop.xlane.xlu0 %1501
      %v1503 = vmax.f32 %v1120, %v1122
      %v1504 = vmax.f32 %v1503, %v1313
      %v1505 = vmax.f32 %v1504, %v1315
      %1506 = vmax.xlane.f32.xlu0 %v1505
      %v1507 = vpop.xlane.xlu0 %1506
      %v1508 = vmax.f32 %v1124, %v1126
      %v1509 = vmax.f32 %v1508, %v1317
      %v1510 = vmax.f32 %v1509, %v1319
      %1511 = vmax.xlane.f32.xlu0 %v1510
      %v1512 = vpop.xlane.xlu0 %1511
      %v1513 = vmax.f32 %v1130, %v1132
      %v1514 = vmax.f32 %v1513, %v1323
      %v1515 = vmax.f32 %v1514, %v1325
      %1516 = vmax.xlane.f32.xlu0 %v1515
      %v1517 = vpop.xlane.xlu0 %1516
      %v1518 = vmax.f32 %v1134, %v1136
      %v1519 = vmax.f32 %v1518, %v1327
      %v1520 = vmax.f32 %v1519, %v1329
      %1521 = vmax.xlane.f32.xlu0 %v1520
      %v1522 = vpop.xlane.xlu0 %1521
      %v1523 = vmax.f32 %v1140, %v1142
      %v1524 = vmax.f32 %v1523, %v1333
      %v1525 = vmax.f32 %v1524, %v1335
      %1526 = vmax.xlane.f32.xlu0 %v1525
      %v1527 = vpop.xlane.xlu0 %1526
      %v1528 = vmax.f32 %v1144, %v1146
      %v1529 = vmax.f32 %v1528, %v1337
      %v1530 = vmax.f32 %v1529, %v1339
      %1531 = vmax.xlane.f32.xlu0 %v1530
      %v1532 = vpop.xlane.xlu0 %1531
      %v1533 = vmax.f32 %v1150, %v1152
      %v1534 = vmax.f32 %v1533, %v1343
      %v1535 = vmax.f32 %v1534, %v1345
      %1536 = vmax.xlane.f32.xlu0 %v1535
      %v1537 = vpop.xlane.xlu0 %1536
      %v1538 = vmax.f32 %v1154, %v1156
      %v1539 = vmax.f32 %v1538, %v1347
      %v1540 = vmax.f32 %v1539, %v1349
      %1541 = vmax.xlane.f32.xlu0 %v1540
      %v1542 = vpop.xlane.xlu0 %1541
      %v1543 = vmax.f32 %v1160, %v1162
      %v1544 = vmax.f32 %v1543, %v1353
      %v1545 = vmax.f32 %v1544, %v1355
      %1546 = vmax.xlane.f32.xlu0 %v1545
      %v1547 = vpop.xlane.xlu0 %1546
      %v1548 = vmax.f32 %v1164, %v1166
      %v1549 = vmax.f32 %v1548, %v1357
      %v1550 = vmax.f32 %v1549, %v1359
      %1551 = vmax.xlane.f32.xlu0 %v1550
      %v1552 = vpop.xlane.xlu0 %1551
      %v1553 = vmax.f32 %v1170, %v1172
      %v1554 = vmax.f32 %v1553, %v1363
      %v1555 = vmax.f32 %v1554, %v1365
      %1556 = vmax.xlane.f32.xlu0 %v1555
      %v1557 = vpop.xlane.xlu0 %1556
      %v1558 = vmax.f32 %v1174, %v1176
      %v1559 = vmax.f32 %v1558, %v1367
      %v1560 = vmax.f32 %v1559, %v1369
      %1561 = vmax.xlane.f32.xlu0 %v1560
      %v1562 = vpop.xlane.xlu0 %1561
      %v1563 = vmax.f32 %v1180, %v1182
      %v1564 = vmax.f32 %v1563, %v1373
      %v1565 = vmax.f32 %v1564, %v1375
      %1566 = vmax.xlane.f32.xlu0 %v1565
      %v1567 = vpop.xlane.xlu0 %1566
      %v1568 = vmax.f32 %v1184, %v1186
      %v1569 = vmax.f32 %v1568, %v1377
      %v1570 = vmax.f32 %v1569, %v1379
      %1571 = vmax.xlane.f32.xlu0 %v1570
      %v1572 = vpop.xlane.xlu0 %1571
      %v1573 = vmax.f32 %v1190, %v1192
      %v1574 = vmax.f32 %v1573, %v1383
      %v1575 = vmax.f32 %v1574, %v1385
      %1576 = vmax.xlane.f32.xlu0 %v1575
      %v1577 = vpop.xlane.xlu0 %1576
      %v1578 = vmax.f32 %v1194, %v1196
      %v1579 = vmax.f32 %v1578, %v1387
      %v1580 = vmax.f32 %v1579, %v1389
      %1581 = vmax.xlane.f32.xlu0 %v1580
      %v1582 = vpop.xlane.xlu0 %1581
      %v1583 = vmax.f32 %v1200, %v1202
      %v1584 = vmax.f32 %v1583, %v1393
      %v1585 = vmax.f32 %v1584, %v1395
      %1586 = vmax.xlane.f32.xlu0 %v1585
      %v1587 = vpop.xlane.xlu0 %1586
      %v1588 = vmax.f32 %v1204, %v1206
      %v1589 = vmax.f32 %v1588, %v1397
      %v1590 = vmax.f32 %v1589, %v1399
      %1591 = vmax.xlane.f32.xlu0 %v1590
      %v1592 = vpop.xlane.xlu0 %1591
      %v1593 = vmax.f32 %v1210, %v1212
      %v1594 = vmax.f32 %v1593, %v1403
      %v1595 = vmax.f32 %v1594, %v1405
      %1596 = vmax.xlane.f32.xlu0 %v1595
      %v1597 = vpop.xlane.xlu0 %1596
      %v1598 = vmax.f32 %v1214, %v1216
      %v1599 = vmax.f32 %v1598, %v1407
      %v1600 = vmax.f32 %v1599, %v1409
      %1601 = vmax.xlane.f32.xlu0 %v1600
      %v1602 = vpop.xlane.xlu0 %1601
      %v1603 = vmax.f32 %v1220, %v1222
      %v1604 = vmax.f32 %v1603, %v1413
      %v1605 = vmax.f32 %v1604, %v1415
      %1606 = vmax.xlane.f32.xlu0 %v1605
      %v1607 = vpop.xlane.xlu0 %1606
      %v1608 = vmax.f32 %v1224, %v1226
      %v1609 = vmax.f32 %v1608, %v1417
      %v1610 = vmax.f32 %v1609, %v1419
      %1611 = vmax.xlane.f32.xlu0 %v1610
      %v1612 = vpop.xlane.xlu0 %1611
      %v1613 = vmax.f32 %v1230, %v1232
      %v1614 = vmax.f32 %v1613, %v1423
      %v1615 = vmax.f32 %v1614, %v1425
      %1616 = vmax.xlane.f32.xlu0 %v1615
      %v1617 = vpop.xlane.xlu0 %1616
      %v1618 = vmax.f32 %v1234, %v1236
      %v1619 = vmax.f32 %v1618, %v1427
      %v1620 = vmax.f32 %v1619, %v1429
      %1621 = vmax.xlane.f32.xlu0 %v1620
      %v1622 = vpop.xlane.xlu0 %1621
      %v1623 = vmax.f32 %v1431, %v1467
      %v1624 = vmax.f32 %v1432, %v1472
      %v1625 = vmax.f32 %v1433, %v1477
      %v1626 = vmax.f32 %v1434, %v1482
      %v1627 = vmax.f32 %v1435, %v1487
      %v1628 = vmax.f32 %v1436, %v1492
      %v1629 = vmax.f32 %v1437, %v1497
      %v1630 = vmax.f32 %v1438, %v1502
      %v1631 = vmax.f32 %v1439, %v1507
      %v1632 = vmax.f32 %v1440, %v1512
      %v1633 = vmax.f32 %v1441, %v1517
      %v1634 = vmax.f32 %v1442, %v1522
      %v1635 = vmax.f32 %v1443, %v1527
      %v1636 = vmax.f32 %v1444, %v1532
      %v1637 = vmax.f32 %v1445, %v1537
      %v1638 = vmax.f32 %v1446, %v1542
      %v1639 = vmax.f32 %v1447, %v1547
      %v1640 = vmax.f32 %v1448, %v1552
      %v1641 = vmax.f32 %v1449, %v1557
      %v1642 = vmax.f32 %v1450, %v1562
      %v1643 = vmax.f32 %v1451, %v1567
      %v1644 = vmax.f32 %v1452, %v1572
      %v1645 = vmax.f32 %v1453, %v1577
      %v1646 = vmax.f32 %v1454, %v1582
      %v1647 = vmax.f32 %v1455, %v1587
      %v1648 = vmax.f32 %v1456, %v1592
      %v1649 = vmax.f32 %v1457, %v1597
      %v1650 = vmax.f32 %v1458, %v1602
      %v1651 = vmax.f32 %v1459, %v1607
      %v1652 = vmax.f32 %v1460, %v1612
      %v1653 = vmax.f32 %v1461, %v1617
      %v1654 = vmax.f32 %v1462, %v1622
      %v1655 = vsub.f32 %v1431, %v1623
      %v1656 = vsub.f32 %v1432, %v1624
      %v1657 = vsub.f32 %v1433, %v1625
      %v1658 = vsub.f32 %v1434, %v1626
      %v1659 = vsub.f32 %v1435, %v1627
      %v1660 = vsub.f32 %v1436, %v1628
      %v1661 = vsub.f32 %v1437, %v1629
      %v1662 = vsub.f32 %v1438, %v1630
      %v1663 = vsub.f32 %v1439, %v1631
      %v1664 = vsub.f32 %v1440, %v1632
      %v1665 = vsub.f32 %v1441, %v1633
      %v1666 = vsub.f32 %v1442, %v1634
      %v1667 = vsub.f32 %v1443, %v1635
      %v1668 = vsub.f32 %v1444, %v1636
      %v1669 = vsub.f32 %v1445, %v1637
      %v1670 = vsub.f32 %v1446, %v1638
      %v1671 = vsub.f32 %v1447, %v1639
      %v1672 = vsub.f32 %v1448, %v1640
      %v1673 = vsub.f32 %v1449, %v1641
      %v1674 = vsub.f32 %v1450, %v1642
      %v1675 = vsub.f32 %v1451, %v1643
      %v1676 = vsub.f32 %v1452, %v1644
      %v1677 = vsub.f32 %v1453, %v1645
      %v1678 = vsub.f32 %v1454, %v1646
      %v1679 = vsub.f32 %v1455, %v1647
      %v1680 = vsub.f32 %v1456, %v1648
      %v1681 = vsub.f32 %v1457, %v1649
      %v1682 = vsub.f32 %v1458, %v1650
      %v1683 = vsub.f32 %v1459, %v1651
      %v1684 = vsub.f32 %v1460, %v1652
      %v1685 = vsub.f32 %v1461, %v1653
      %v1686 = vsub.f32 %v1462, %v1654
      %v1687 = vmul.f32 %v1655, 1.442695
      %v1688 = vpow.pop %v1687
      %v1689 = vmul.f32 %v1656, 1.442695
      %v1690 = vpow.pop %v1689
      %v1691 = vmul.f32 %v1657, 1.442695
      %v1692 = vpow.pop %v1691
      %v1693 = vmul.f32 %v1658, 1.442695
      %v1694 = vpow.pop %v1693
      %v1695 = vmul.f32 %v1659, 1.442695
      %v1696 = vpow.pop %v1695
      %v1697 = vmul.f32 %v1660, 1.442695
      %v1698 = vpow.pop %v1697
      %v1699 = vmul.f32 %v1661, 1.442695
      %v1700 = vpow.pop %v1699
      %v1701 = vmul.f32 %v1662, 1.442695
      %v1702 = vpow.pop %v1701
      %v1703 = vmul.f32 %v1663, 1.442695
      %v1704 = vpow.pop %v1703
      %v1705 = vmul.f32 %v1664, 1.442695
      %v1706 = vpow.pop %v1705
      %v1707 = vmul.f32 %v1665, 1.442695
      %v1708 = vpow.pop %v1707
      %v1709 = vmul.f32 %v1666, 1.442695
      %v1710 = vpow.pop %v1709
      %v1711 = vmul.f32 %v1667, 1.442695
      %v1712 = vpow.pop %v1711
      %v1713 = vmul.f32 %v1668, 1.442695
      %v1714 = vpow.pop %v1713
      %v1715 = vmul.f32 %v1669, 1.442695
      %v1716 = vpow.pop %v1715
      %v1717 = vmul.f32 %v1670, 1.442695
      %v1718 = vpow.pop %v1717
      %v1719 = vmul.f32 %v1671, 1.442695
      %v1720 = vpow.pop %v1719
      %v1721 = vmul.f32 %v1672, 1.442695
      %v1722 = vpow.pop %v1721
      %v1723 = vmul.f32 %v1673, 1.442695
      %v1724 = vpow.pop %v1723
      %v1725 = vmul.f32 %v1674, 1.442695
      %v1726 = vpow.pop %v1725
      %v1727 = vmul.f32 %v1675, 1.442695
      %v1728 = vpow.pop %v1727
      %v1729 = vmul.f32 %v1676, 1.442695
      %v1730 = vpow.pop %v1729
      %v1731 = vmul.f32 %v1677, 1.442695
      %v1732 = vpow.pop %v1731
      %v1733 = vmul.f32 %v1678, 1.442695
      %v1734 = vpow.pop %v1733
      %v1735 = vmul.f32 %v1679, 1.442695
      %v1736 = vpow.pop %v1735
      %v1737 = vmul.f32 %v1680, 1.442695
      %v1738 = vpow.pop %v1737
      %v1739 = vmul.f32 %v1681, 1.442695
      %v1740 = vpow.pop %v1739
      %v1741 = vmul.f32 %v1682, 1.442695
      %v1742 = vpow.pop %v1741
      %v1743 = vmul.f32 %v1683, 1.442695
      %v1744 = vpow.pop %v1743
      %v1745 = vmul.f32 %v1684, 1.442695
      %v1746 = vpow.pop %v1745
      %v1747 = vmul.f32 %v1685, 1.442695
      %v1748 = vpow.pop %v1747
      %v1749 = vmul.f32 %v1686, 1.442695
      %v1750 = vpow.pop %v1749
      %1752 = vset.pattern.permute.xlu0 0
      %1753 = vperm.xlu0 %1752, %v1623
      %v1754 = vpop.permute.xlu0 %1753
      %1757 = vset.pattern.permute.xlu0 0
      %1758 = vperm.xlu0 %1757, %v1624
      %v1759 = vpop.permute.xlu0 %1758
      %1762 = vset.pattern.permute.xlu0 0
      %1763 = vperm.xlu0 %1762, %v1625
      %v1764 = vpop.permute.xlu0 %1763
      %1767 = vset.pattern.permute.xlu0 0
      %1768 = vperm.xlu0 %1767, %v1626
      %v1769 = vpop.permute.xlu0 %1768
      %1772 = vset.pattern.permute.xlu0 0
      %1773 = vperm.xlu0 %1772, %v1627
      %v1774 = vpop.permute.xlu0 %1773
      %1777 = vset.pattern.permute.xlu0 0
      %1778 = vperm.xlu0 %1777, %v1628
      %v1779 = vpop.permute.xlu0 %1778
      %1782 = vset.pattern.permute.xlu0 0
      %1783 = vperm.xlu0 %1782, %v1629
      %v1784 = vpop.permute.xlu0 %1783
      %1787 = vset.pattern.permute.xlu0 0
      %1788 = vperm.xlu0 %1787, %v1630
      %v1789 = vpop.permute.xlu0 %1788
      %1792 = vset.pattern.permute.xlu0 0
      %1793 = vperm.xlu0 %1792, %v1631
      %v1794 = vpop.permute.xlu0 %1793
      %1797 = vset.pattern.permute.xlu0 0
      %1798 = vperm.xlu0 %1797, %v1632
      %v1799 = vpop.permute.xlu0 %1798
      %1802 = vset.pattern.permute.xlu0 0
      %1803 = vperm.xlu0 %1802, %v1633
      %v1804 = vpop.permute.xlu0 %1803
      %1807 = vset.pattern.permute.xlu0 0
      %1808 = vperm.xlu0 %1807, %v1634
      %v1809 = vpop.permute.xlu0 %1808
      %1812 = vset.pattern.permute.xlu0 0
      %1813 = vperm.xlu0 %1812, %v1635
      %v1814 = vpop.permute.xlu0 %1813
      %1817 = vset.pattern.permute.xlu0 0
      %1818 = vperm.xlu0 %1817, %v1636
      %v1819 = vpop.permute.xlu0 %1818
      %1822 = vset.pattern.permute.xlu0 0
      %1823 = vperm.xlu0 %1822, %v1637
      %v1824 = vpop.permute.xlu0 %1823
      %1827 = vset.pattern.permute.xlu0 0
      %1828 = vperm.xlu0 %1827, %v1638
      %v1829 = vpop.permute.xlu0 %1828
      %1832 = vset.pattern.permute.xlu0 0
      %1833 = vperm.xlu0 %1832, %v1639
      %v1834 = vpop.permute.xlu0 %1833
      %1837 = vset.pattern.permute.xlu0 0
      %1838 = vperm.xlu0 %1837, %v1640
      %v1839 = vpop.permute.xlu0 %1838
      %1842 = vset.pattern.permute.xlu0 0
      %1843 = vperm.xlu0 %1842, %v1641
      %v1844 = vpop.permute.xlu0 %1843
      %1847 = vset.pattern.permute.xlu0 0
      %1848 = vperm.xlu0 %1847, %v1642
      %v1849 = vpop.permute.xlu0 %1848
      %1852 = vset.pattern.permute.xlu0 0
      %1853 = vperm.xlu0 %1852, %v1643
      %v1854 = vpop.permute.xlu0 %1853
      %1857 = vset.pattern.permute.xlu0 0
      %1858 = vperm.xlu0 %1857, %v1644
      %v1859 = vpop.permute.xlu0 %1858
      %1862 = vset.pattern.permute.xlu0 0
      %1863 = vperm.xlu0 %1862, %v1645
      %v1864 = vpop.permute.xlu0 %1863
      %1867 = vset.pattern.permute.xlu0 0
      %1868 = vperm.xlu0 %1867, %v1646
      %v1869 = vpop.permute.xlu0 %1868
      %1872 = vset.pattern.permute.xlu0 0
      %1873 = vperm.xlu0 %1872, %v1647
      %v1874 = vpop.permute.xlu0 %1873
      %1877 = vset.pattern.permute.xlu0 0
      %1878 = vperm.xlu0 %1877, %v1648
      %v1879 = vpop.permute.xlu0 %1878
      %1882 = vset.pattern.permute.xlu0 0
      %1883 = vperm.xlu0 %1882, %v1649
      %v1884 = vpop.permute.xlu0 %1883
      %1887 = vset.pattern.permute.xlu0 0
      %1888 = vperm.xlu0 %1887, %v1650
      %v1889 = vpop.permute.xlu0 %1888
      %1892 = vset.pattern.permute.xlu0 0
      %1893 = vperm.xlu0 %1892, %v1651
      %v1894 = vpop.permute.xlu0 %1893
      %1897 = vset.pattern.permute.xlu0 0
      %1898 = vperm.xlu0 %1897, %v1652
      %v1899 = vpop.permute.xlu0 %1898
      %1902 = vset.pattern.permute.xlu0 0
      %1903 = vperm.xlu0 %1902, %v1653
      %v1904 = vpop.permute.xlu0 %1903
      %1907 = vset.pattern.permute.xlu0 0
      %1908 = vperm.xlu0 %1907, %v1654
      %v1909 = vpop.permute.xlu0 %1908
      %v1911 = vsub.f32 %v1080, %v1754
      %v1912 = vsub.f32 %v1082, %v1754
      %v1913 = vsub.f32 %v1273, %v1754
      %v1914 = vsub.f32 %v1275, %v1754
      %v1915 = vsub.f32 %v1084, %v1759
      %v1916 = vsub.f32 %v1086, %v1759
      %v1917 = vsub.f32 %v1277, %v1759
      %v1918 = vsub.f32 %v1279, %v1759
      %v1919 = vsub.f32 %v1090, %v1764
      %v1920 = vsub.f32 %v1092, %v1764
      %v1921 = vsub.f32 %v1283, %v1764
      %v1922 = vsub.f32 %v1285, %v1764
      %v1923 = vsub.f32 %v1094, %v1769
      %v1924 = vsub.f32 %v1096, %v1769
      %v1925 = vsub.f32 %v1287, %v1769
      %v1926 = vsub.f32 %v1289, %v1769
      %v1927 = vsub.f32 %v1100, %v1774
      %v1928 = vsub.f32 %v1102, %v1774
      %v1929 = vsub.f32 %v1293, %v1774
      %v1930 = vsub.f32 %v1295, %v1774
      %v1931 = vsub.f32 %v1104, %v1779
      %v1932 = vsub.f32 %v1106, %v1779
      %v1933 = vsub.f32 %v1297, %v1779
      %v1934 = vsub.f32 %v1299, %v1779
      %v1935 = vsub.f32 %v1110, %v1784
      %v1936 = vsub.f32 %v1112, %v1784
      %v1937 = vsub.f32 %v1303, %v1784
      %v1938 = vsub.f32 %v1305, %v1784
      %v1939 = vsub.f32 %v1114, %v1789
      %v1940 = vsub.f32 %v1116, %v1789
      %v1941 = vsub.f32 %v1307, %v1789
      %v1942 = vsub.f32 %v1309, %v1789
      %v1943 = vsub.f32 %v1120, %v1794
      %v1944 = vsub.f32 %v1122, %v1794
      %v1945 = vsub.f32 %v1313, %v1794
      %v1946 = vsub.f32 %v1315, %v1794
      %v1947 = vsub.f32 %v1124, %v1799
      %v1948 = vsub.f32 %v1126, %v1799
      %v1949 = vsub.f32 %v1317, %v1799
      %v1950 = vsub.f32 %v1319, %v1799
      %v1951 = vsub.f32 %v1130, %v1804
      %v1952 = vsub.f32 %v1132, %v1804
      %v1953 = vsub.f32 %v1323, %v1804
      %v1954 = vsub.f32 %v1325, %v1804
      %v1955 = vsub.f32 %v1134, %v1809
      %v1956 = vsub.f32 %v1136, %v1809
      %v1957 = vsub.f32 %v1327, %v1809
      %v1958 = vsub.f32 %v1329, %v1809
      %v1959 = vsub.f32 %v1140, %v1814
      %v1960 = vsub.f32 %v1142, %v1814
      %v1961 = vsub.f32 %v1333, %v1814
      %v1962 = vsub.f32 %v1335, %v1814
      %v1963 = vsub.f32 %v1144, %v1819
      %v1964 = vsub.f32 %v1146, %v1819
      %v1965 = vsub.f32 %v1337, %v1819
      %v1966 = vsub.f32 %v1339, %v1819
      %v1967 = vsub.f32 %v1150, %v1824
      %v1968 = vsub.f32 %v1152, %v1824
      %v1969 = vsub.f32 %v1343, %v1824
      %v1970 = vsub.f32 %v1345, %v1824
      %v1971 = vsub.f32 %v1154, %v1829
      %v1972 = vsub.f32 %v1156, %v1829
      %v1973 = vsub.f32 %v1347, %v1829
      %v1974 = vsub.f32 %v1349, %v1829
      %v1975 = vsub.f32 %v1160, %v1834
      %v1976 = vsub.f32 %v1162, %v1834
      %v1977 = vsub.f32 %v1353, %v1834
      %v1978 = vsub.f32 %v1355, %v1834
      %v1979 = vsub.f32 %v1164, %v1839
      %v1980 = vsub.f32 %v1166, %v1839
      %v1981 = vsub.f32 %v1357, %v1839
      %v1982 = vsub.f32 %v1359, %v1839
      %v1983 = vsub.f32 %v1170, %v1844
      %v1984 = vsub.f32 %v1172, %v1844
      %v1985 = vsub.f32 %v1363, %v1844
      %v1986 = vsub.f32 %v1365, %v1844
      %v1987 = vsub.f32 %v1174, %v1849
      %v1988 = vsub.f32 %v1176, %v1849
      %v1989 = vsub.f32 %v1367, %v1849
      %v1990 = vsub.f32 %v1369, %v1849
      %v1991 = vsub.f32 %v1180, %v1854
      %v1992 = vsub.f32 %v1182, %v1854
      %v1993 = vsub.f32 %v1373, %v1854
      %v1994 = vsub.f32 %v1375, %v1854
      %v1995 = vsub.f32 %v1184, %v1859
      %v1996 = vsub.f32 %v1186, %v1859
      %v1997 = vsub.f32 %v1377, %v1859
      %v1998 = vsub.f32 %v1379, %v1859
      %v1999 = vsub.f32 %v1190, %v1864
      %v2000 = vsub.f32 %v1192, %v1864
      %v2001 = vsub.f32 %v1383, %v1864
      %v2002 = vsub.f32 %v1385, %v1864
      %v2003 = vsub.f32 %v1194, %v1869
      %v2004 = vsub.f32 %v1196, %v1869
      %v2005 = vsub.f32 %v1387, %v1869
      %v2006 = vsub.f32 %v1389, %v1869
      %v2007 = vsub.f32 %v1200, %v1874
      %v2008 = vsub.f32 %v1202, %v1874
      %v2009 = vsub.f32 %v1393, %v1874
      %v2010 = vsub.f32 %v1395, %v1874
      %v2011 = vsub.f32 %v1204, %v1879
      %v2012 = vsub.f32 %v1206, %v1879
      %v2013 = vsub.f32 %v1397, %v1879
      %v2014 = vsub.f32 %v1399, %v1879
      %v2015 = vsub.f32 %v1210, %v1884
      %v2016 = vsub.f32 %v1212, %v1884
      %v2017 = vsub.f32 %v1403, %v1884
      %v2018 = vsub.f32 %v1405, %v1884
      %v2019 = vsub.f32 %v1214, %v1889
      %v2020 = vsub.f32 %v1216, %v1889
      %v2021 = vsub.f32 %v1407, %v1889
      %v2022 = vsub.f32 %v1409, %v1889
      %v2023 = vsub.f32 %v1220, %v1894
      %v2024 = vsub.f32 %v1222, %v1894
      %v2025 = vsub.f32 %v1413, %v1894
      %v2026 = vsub.f32 %v1415, %v1894
      %v2027 = vsub.f32 %v1224, %v1899
      %v2028 = vsub.f32 %v1226, %v1899
      %v2029 = vsub.f32 %v1417, %v1899
      %v2030 = vsub.f32 %v1419, %v1899
      %v2031 = vsub.f32 %v1230, %v1904
      %v2032 = vsub.f32 %v1232, %v1904
      %v2033 = vsub.f32 %v1423, %v1904
      %v2034 = vsub.f32 %v1425, %v1904
      %v2035 = vsub.f32 %v1234, %v1909
      %v2036 = vsub.f32 %v1236, %v1909
      %v2037 = vsub.f32 %v1427, %v1909
      %v2038 = vsub.f32 %v1429, %v1909
      %v2039 = vmul.f32 %v1911, 1.442695
      %v2040 = vpow.pop %v2039
      %v2041 = vmul.f32 %v1912, 1.442695
      %v2042 = vpow.pop %v2041
      %v2043 = vmul.f32 %v1913, 1.442695
      %v2044 = vpow.pop %v2043
      %v2045 = vmul.f32 %v1914, 1.442695
      %v2046 = vpow.pop %v2045
      %v2047 = vmul.f32 %v1915, 1.442695
      %v2048 = vpow.pop %v2047
      %v2049 = vmul.f32 %v1916, 1.442695
      %v2050 = vpow.pop %v2049
      %v2051 = vmul.f32 %v1917, 1.442695
      %v2052 = vpow.pop %v2051
      %v2053 = vmul.f32 %v1918, 1.442695
      %v2054 = vpow.pop %v2053
      %v2055 = vmul.f32 %v1919, 1.442695
      %v2056 = vpow.pop %v2055
      %v2057 = vmul.f32 %v1920, 1.442695
      %v2058 = vpow.pop %v2057
      %v2059 = vmul.f32 %v1921, 1.442695
      %v2060 = vpow.pop %v2059
      %v2061 = vmul.f32 %v1922, 1.442695
      %v2062 = vpow.pop %v2061
      %v2063 = vmul.f32 %v1923, 1.442695
      %v2064 = vpow.pop %v2063
      %v2065 = vmul.f32 %v1924, 1.442695
      %v2066 = vpow.pop %v2065
      %v2067 = vmul.f32 %v1925, 1.442695
      %v2068 = vpow.pop %v2067
      %v2069 = vmul.f32 %v1926, 1.442695
      %v2070 = vpow.pop %v2069
      %v2071 = vmul.f32 %v1927, 1.442695
      %v2072 = vpow.pop %v2071
      %v2073 = vmul.f32 %v1928, 1.442695
      %v2074 = vpow.pop %v2073
      %v2075 = vmul.f32 %v1929, 1.442695
      %v2076 = vpow.pop %v2075
      %v2077 = vmul.f32 %v1930, 1.442695
      %v2078 = vpow.pop %v2077
      %v2079 = vmul.f32 %v1931, 1.442695
      %v2080 = vpow.pop %v2079
      %v2081 = vmul.f32 %v1932, 1.442695
      %v2082 = vpow.pop %v2081
      %v2083 = vmul.f32 %v1933, 1.442695
      %v2084 = vpow.pop %v2083
      %v2085 = vmul.f32 %v1934, 1.442695
      %v2086 = vpow.pop %v2085
      %v2087 = vmul.f32 %v1935, 1.442695
      %v2088 = vpow.pop %v2087
      %v2089 = vmul.f32 %v1936, 1.442695
      %v2090 = vpow.pop %v2089
      %v2091 = vmul.f32 %v1937, 1.442695
      %v2092 = vpow.pop %v2091
      %v2093 = vmul.f32 %v1938, 1.442695
      %v2094 = vpow.pop %v2093
      %v2095 = vmul.f32 %v1939, 1.442695
      %v2096 = vpow.pop %v2095
      %v2097 = vmul.f32 %v1940, 1.442695
      %v2098 = vpow.pop %v2097
      %v2099 = vmul.f32 %v1941, 1.442695
      %v2100 = vpow.pop %v2099
      %v2101 = vmul.f32 %v1942, 1.442695
      %v2102 = vpow.pop %v2101
      %v2103 = vmul.f32 %v1943, 1.442695
      %v2104 = vpow.pop %v2103
      %v2105 = vmul.f32 %v1944, 1.442695
      %v2106 = vpow.pop %v2105
      %v2107 = vmul.f32 %v1945, 1.442695
      %v2108 = vpow.pop %v2107
      %v2109 = vmul.f32 %v1946, 1.442695
      %v2110 = vpow.pop %v2109
      %v2111 = vmul.f32 %v1947, 1.442695
      %v2112 = vpow.pop %v2111
      %v2113 = vmul.f32 %v1948, 1.442695
      %v2114 = vpow.pop %v2113
      %v2115 = vmul.f32 %v1949, 1.442695
      %v2116 = vpow.pop %v2115
      %v2117 = vmul.f32 %v1950, 1.442695
      %v2118 = vpow.pop %v2117
      %v2119 = vmul.f32 %v1951, 1.442695
      %v2120 = vpow.pop %v2119
      %v2121 = vmul.f32 %v1952, 1.442695
      %v2122 = vpow.pop %v2121
      %v2123 = vmul.f32 %v1953, 1.442695
      %v2124 = vpow.pop %v2123
      %v2125 = vmul.f32 %v1954, 1.442695
      %v2126 = vpow.pop %v2125
      %v2127 = vmul.f32 %v1955, 1.442695
      %v2128 = vpow.pop %v2127
      %v2129 = vmul.f32 %v1956, 1.442695
      %v2130 = vpow.pop %v2129
      %v2131 = vmul.f32 %v1957, 1.442695
      %v2132 = vpow.pop %v2131
      %v2133 = vmul.f32 %v1958, 1.442695
      %v2134 = vpow.pop %v2133
      %v2135 = vmul.f32 %v1959, 1.442695
      %v2136 = vpow.pop %v2135
      %v2137 = vmul.f32 %v1960, 1.442695
      %v2138 = vpow.pop %v2137
      %v2139 = vmul.f32 %v1961, 1.442695
      %v2140 = vpow.pop %v2139
      %v2141 = vmul.f32 %v1962, 1.442695
      %v2142 = vpow.pop %v2141
      %v2143 = vmul.f32 %v1963, 1.442695
      %v2144 = vpow.pop %v2143
      %v2145 = vmul.f32 %v1964, 1.442695
      %v2146 = vpow.pop %v2145
      %v2147 = vmul.f32 %v1965, 1.442695
      %v2148 = vpow.pop %v2147
      %v2149 = vmul.f32 %v1966, 1.442695
      %v2150 = vpow.pop %v2149
      %v2151 = vmul.f32 %v1967, 1.442695
      %v2152 = vpow.pop %v2151
      %v2153 = vmul.f32 %v1968, 1.442695
      %v2154 = vpow.pop %v2153
      %v2155 = vmul.f32 %v1969, 1.442695
      %v2156 = vpow.pop %v2155
      %v2157 = vmul.f32 %v1970, 1.442695
      %v2158 = vpow.pop %v2157
      %v2159 = vmul.f32 %v1971, 1.442695
      %v2160 = vpow.pop %v2159
      %v2161 = vmul.f32 %v1972, 1.442695
      %v2162 = vpow.pop %v2161
      %v2163 = vmul.f32 %v1973, 1.442695
      %v2164 = vpow.pop %v2163
      %v2165 = vmul.f32 %v1974, 1.442695
      %v2166 = vpow.pop %v2165
      %v2167 = vmul.f32 %v1975, 1.442695
      %v2168 = vpow.pop %v2167
      %v2169 = vmul.f32 %v1976, 1.442695
      %v2170 = vpow.pop %v2169
      %v2171 = vmul.f32 %v1977, 1.442695
      %v2172 = vpow.pop %v2171
      %v2173 = vmul.f32 %v1978, 1.442695
      %v2174 = vpow.pop %v2173
      %v2175 = vmul.f32 %v1979, 1.442695
      %v2176 = vpow.pop %v2175
      %v2177 = vmul.f32 %v1980, 1.442695
      %v2178 = vpow.pop %v2177
      %v2179 = vmul.f32 %v1981, 1.442695
      %v2180 = vpow.pop %v2179
      %v2181 = vmul.f32 %v1982, 1.442695
      %v2182 = vpow.pop %v2181
      %v2183 = vmul.f32 %v1983, 1.442695
      %v2184 = vpow.pop %v2183
      %v2185 = vmul.f32 %v1984, 1.442695
      %v2186 = vpow.pop %v2185
      %v2187 = vmul.f32 %v1985, 1.442695
      %v2188 = vpow.pop %v2187
      %v2189 = vmul.f32 %v1986, 1.442695
      %v2190 = vpow.pop %v2189
      %v2191 = vmul.f32 %v1987, 1.442695
      %v2192 = vpow.pop %v2191
      %v2193 = vmul.f32 %v1988, 1.442695
      %v2194 = vpow.pop %v2193
      %v2195 = vmul.f32 %v1989, 1.442695
      %v2196 = vpow.pop %v2195
      %v2197 = vmul.f32 %v1990, 1.442695
      %v2198 = vpow.pop %v2197
      %v2199 = vmul.f32 %v1991, 1.442695
      %v2200 = vpow.pop %v2199
      %v2201 = vmul.f32 %v1992, 1.442695
      %v2202 = vpow.pop %v2201
      %v2203 = vmul.f32 %v1993, 1.442695
      %v2204 = vpow.pop %v2203
      %v2205 = vmul.f32 %v1994, 1.442695
      %v2206 = vpow.pop %v2205
      %v2207 = vmul.f32 %v1995, 1.442695
      %v2208 = vpow.pop %v2207
      %v2209 = vmul.f32 %v1996, 1.442695
      %v2210 = vpow.pop %v2209
      %v2211 = vmul.f32 %v1997, 1.442695
      %v2212 = vpow.pop %v2211
      %v2213 = vmul.f32 %v1998, 1.442695
      %v2214 = vpow.pop %v2213
      %v2215 = vmul.f32 %v1999, 1.442695
      %v2216 = vpow.pop %v2215
      %v2217 = vmul.f32 %v2000, 1.442695
      %v2218 = vpow.pop %v2217
      %v2219 = vmul.f32 %v2001, 1.442695
      %v2220 = vpow.pop %v2219
      %v2221 = vmul.f32 %v2002, 1.442695
      %v2222 = vpow.pop %v2221
      %v2223 = vmul.f32 %v2003, 1.442695
      %v2224 = vpow.pop %v2223
      %v2225 = vmul.f32 %v2004, 1.442695
      %v2226 = vpow.pop %v2225
      %v2227 = vmul.f32 %v2005, 1.442695
      %v2228 = vpow.pop %v2227
      %v2229 = vmul.f32 %v2006, 1.442695
      %v2230 = vpow.pop %v2229
      %v2231 = vmul.f32 %v2007, 1.442695
      %v2232 = vpow.pop %v2231
      %v2233 = vmul.f32 %v2008, 1.442695
      %v2234 = vpow.pop %v2233
      %v2235 = vmul.f32 %v2009, 1.442695
      %v2236 = vpow.pop %v2235
      %v2237 = vmul.f32 %v2010, 1.442695
      %v2238 = vpow.pop %v2237
      %v2239 = vmul.f32 %v2011, 1.442695
      %v2240 = vpow.pop %v2239
      %v2241 = vmul.f32 %v2012, 1.442695
      %v2242 = vpow.pop %v2241
      %v2243 = vmul.f32 %v2013, 1.442695
      %v2244 = vpow.pop %v2243
      %v2245 = vmul.f32 %v2014, 1.442695
      %v2246 = vpow.pop %v2245
      %v2247 = vmul.f32 %v2015, 1.442695
      %v2248 = vpow.pop %v2247
      %v2249 = vmul.f32 %v2016, 1.442695
      %v2250 = vpow.pop %v2249
      %v2251 = vmul.f32 %v2017, 1.442695
      %v2252 = vpow.pop %v2251
      %v2253 = vmul.f32 %v2018, 1.442695
      %v2254 = vpow.pop %v2253
      %v2255 = vmul.f32 %v2019, 1.442695
      %v2256 = vpow.pop %v2255
      %v2257 = vmul.f32 %v2020, 1.442695
      %v2258 = vpow.pop %v2257
      %v2259 = vmul.f32 %v2021, 1.442695
      %v2260 = vpow.pop %v2259
      %v2261 = vmul.f32 %v2022, 1.442695
      %v2262 = vpow.pop %v2261
      %v2263 = vmul.f32 %v2023, 1.442695
      %v2264 = vpow.pop %v2263
      %v2265 = vmul.f32 %v2024, 1.442695
      %v2266 = vpow.pop %v2265
      %v2267 = vmul.f32 %v2025, 1.442695
      %v2268 = vpow.pop %v2267
      %v2269 = vmul.f32 %v2026, 1.442695
      %v2270 = vpow.pop %v2269
      %v2271 = vmul.f32 %v2027, 1.442695
      %v2272 = vpow.pop %v2271
      %v2273 = vmul.f32 %v2028, 1.442695
      %v2274 = vpow.pop %v2273
      %v2275 = vmul.f32 %v2029, 1.442695
      %v2276 = vpow.pop %v2275
      %v2277 = vmul.f32 %v2030, 1.442695
      %v2278 = vpow.pop %v2277
      %v2279 = vmul.f32 %v2031, 1.442695
      %v2280 = vpow.pop %v2279
      %v2281 = vmul.f32 %v2032, 1.442695
      %v2282 = vpow.pop %v2281
      %v2283 = vmul.f32 %v2033, 1.442695
      %v2284 = vpow.pop %v2283
      %v2285 = vmul.f32 %v2034, 1.442695
      %v2286 = vpow.pop %v2285
      %v2287 = vmul.f32 %v2035, 1.442695
      %v2288 = vpow.pop %v2287
      %v2289 = vmul.f32 %v2036, 1.442695
      %v2290 = vpow.pop %v2289
      %v2291 = vmul.f32 %v2037, 1.442695
      %v2292 = vpow.pop %v2291
      %v2293 = vmul.f32 %v2038, 1.442695
      %v2294 = vpow.pop %v2293
      %v2295 = vld [vmem:[#allocation4] sm:$0xff]
      %v2296 = vld [vmem:[#allocation4 + $0x8] sm:$0xff]
      %v2297 = vld [vmem:[#allocation4 + $0x10] sm:$0xff]
      %v2298 = vld [vmem:[#allocation4 + $0x18] sm:$0xff]
      %v2299 = vld [vmem:[#allocation4 + $0x20] sm:$0xff]
      %v2300 = vld [vmem:[#allocation4 + $0x28] sm:$0xff]
      %v2301 = vld [vmem:[#allocation4 + $0x30] sm:$0xff]
      %v2302 = vld [vmem:[#allocation4 + $0x38] sm:$0xff]
      %v2303 = vld [vmem:[#allocation4 + $0x40] sm:$0xff]
      %v2304 = vld [vmem:[#allocation4 + $0x48] sm:$0xff]
      %v2305 = vld [vmem:[#allocation4 + $0x50] sm:$0xff]
      %v2306 = vld [vmem:[#allocation4 + $0x58] sm:$0xff]
      %v2307 = vld [vmem:[#allocation4 + $0x60] sm:$0xff]
      %v2308 = vld [vmem:[#allocation4 + $0x68] sm:$0xff]
      %v2309 = vld [vmem:[#allocation4 + $0x70] sm:$0xff]
      %v2310 = vld [vmem:[#allocation4 + $0x78] sm:$0xff]
      %v2311 = vld [vmem:[#allocation4 + $0x80] sm:$0xff]
      %v2312 = vld [vmem:[#allocation4 + $0x88] sm:$0xff]
      %v2313 = vld [vmem:[#allocation4 + $0x90] sm:$0xff]
      %v2314 = vld [vmem:[#allocation4 + $0x98] sm:$0xff]
      %v2315 = vld [vmem:[#allocation4 + $0xa0] sm:$0xff]
      %v2316 = vld [vmem:[#allocation4 + $0xa8] sm:$0xff]
      %v2317 = vld [vmem:[#allocation4 + $0xb0] sm:$0xff]
      %v2318 = vld [vmem:[#allocation4 + $0xb8] sm:$0xff]
      %v2319 = vld [vmem:[#allocation4 + $0xc0] sm:$0xff]
      %v2320 = vld [vmem:[#allocation4 + $0xc8] sm:$0xff]
      %v2321 = vld [vmem:[#allocation4 + $0xd0] sm:$0xff]
      %v2322 = vld [vmem:[#allocation4 + $0xd8] sm:$0xff]
      %v2323 = vld [vmem:[#allocation4 + $0xe0] sm:$0xff]
      %v2324 = vld [vmem:[#allocation4 + $0xe8] sm:$0xff]
      %v2325 = vld [vmem:[#allocation4 + $0xf0] sm:$0xff]
      %v2326 = vld [vmem:[#allocation4 + $0xf8] sm:$0xff]
      %v2327 = vmul.f32 %v1688, %v2295
      %v2328 = vmul.f32 %v1690, %v2296
      %v2329 = vmul.f32 %v1692, %v2297
      %v2330 = vmul.f32 %v1694, %v2298
      %v2331 = vmul.f32 %v1696, %v2299
      %v2332 = vmul.f32 %v1698, %v2300
      %v2333 = vmul.f32 %v1700, %v2301
      %v2334 = vmul.f32 %v1702, %v2302
      %v2335 = vmul.f32 %v1704, %v2303
      %v2336 = vmul.f32 %v1706, %v2304
      %v2337 = vmul.f32 %v1708, %v2305
      %v2338 = vmul.f32 %v1710, %v2306
      %v2339 = vmul.f32 %v1712, %v2307
      %v2340 = vmul.f32 %v1714, %v2308
      %v2341 = vmul.f32 %v1716, %v2309
      %v2342 = vmul.f32 %v1718, %v2310
      %v2343 = vmul.f32 %v1720, %v2311
      %v2344 = vmul.f32 %v1722, %v2312
      %v2345 = vmul.f32 %v1724, %v2313
      %v2346 = vmul.f32 %v1726, %v2314
      %v2347 = vmul.f32 %v1728, %v2315
      %v2348 = vmul.f32 %v1730, %v2316
      %v2349 = vmul.f32 %v1732, %v2317
      %v2350 = vmul.f32 %v1734, %v2318
      %v2351 = vmul.f32 %v1736, %v2319
      %v2352 = vmul.f32 %v1738, %v2320
      %v2353 = vmul.f32 %v1740, %v2321
      %v2354 = vmul.f32 %v1742, %v2322
      %v2355 = vmul.f32 %v1744, %v2323
      %v2356 = vmul.f32 %v1746, %v2324
      %v2357 = vmul.f32 %v1748, %v2325
      %v2358 = vmul.f32 %v1750, %v2326
      %v2359 = vadd.f32 %v2040, %v2042
      %v2360 = vadd.f32 %v2359, %v2044
      %v2361 = vadd.f32 %v2360, %v2046
      %2362 = vadd.xlane.f32.xlu0 %v2361
      %v2363 = vpop.xlane.xlu0 %2362
      %v2364 = vadd.f32 %v2048, %v2050
      %v2365 = vadd.f32 %v2364, %v2052
      %v2366 = vadd.f32 %v2365, %v2054
      %2367 = vadd.xlane.f32.xlu0 %v2366
      %v2368 = vpop.xlane.xlu0 %2367
      %v2369 = vadd.f32 %v2056, %v2058
      %v2370 = vadd.f32 %v2369, %v2060
      %v2371 = vadd.f32 %v2370, %v2062
      %2372 = vadd.xlane.f32.xlu0 %v2371
      %v2373 = vpop.xlane.xlu0 %2372
      %v2374 = vadd.f32 %v2064, %v2066
      %v2375 = vadd.f32 %v2374, %v2068
      %v2376 = vadd.f32 %v2375, %v2070
      %2377 = vadd.xlane.f32.xlu0 %v2376
      %v2378 = vpop.xlane.xlu0 %2377
      %v2379 = vadd.f32 %v2072, %v2074
      %v2380 = vadd.f32 %v2379, %v2076
      %v2381 = vadd.f32 %v2380, %v2078
      %2382 = vadd.xlane.f32.xlu0 %v2381
      %v2383 = vpop.xlane.xlu0 %2382
      %v2384 = vadd.f32 %v2080, %v2082
      %v2385 = vadd.f32 %v2384, %v2084
      %v2386 = vadd.f32 %v2385, %v2086
      %2387 = vadd.xlane.f32.xlu0 %v2386
      %v2388 = vpop.xlane.xlu0 %2387
      %v2389 = vadd.f32 %v2088, %v2090
      %v2390 = vadd.f32 %v2389, %v2092
      %v2391 = vadd.f32 %v2390, %v2094
      %2392 = vadd.xlane.f32.xlu0 %v2391
      %v2393 = vpop.xlane.xlu0 %2392
      %v2394 = vadd.f32 %v2096, %v2098
      %v2395 = vadd.f32 %v2394, %v2100
      %v2396 = vadd.f32 %v2395, %v2102
      %2397 = vadd.xlane.f32.xlu0 %v2396
      %v2398 = vpop.xlane.xlu0 %2397
      %v2399 = vadd.f32 %v2104, %v2106
      %v2400 = vadd.f32 %v2399, %v2108
      %v2401 = vadd.f32 %v2400, %v2110
      %2402 = vadd.xlane.f32.xlu0 %v2401
      %v2403 = vpop.xlane.xlu0 %2402
      %v2404 = vadd.f32 %v2112, %v2114
      %v2405 = vadd.f32 %v2404, %v2116
      %v2406 = vadd.f32 %v2405, %v2118
      %2407 = vadd.xlane.f32.xlu0 %v2406
      %v2408 = vpop.xlane.xlu0 %2407
      %v2409 = vadd.f32 %v2120, %v2122
      %v2410 = vadd.f32 %v2409, %v2124
      %v2411 = vadd.f32 %v2410, %v2126
      %2412 = vadd.xlane.f32.xlu0 %v2411
      %v2413 = vpop.xlane.xlu0 %2412
      %v2414 = vadd.f32 %v2128, %v2130
      %v2415 = vadd.f32 %v2414, %v2132
      %v2416 = vadd.f32 %v2415, %v2134
      %2417 = vadd.xlane.f32.xlu0 %v2416
      %v2418 = vpop.xlane.xlu0 %2417
      %v2419 = vadd.f32 %v2136, %v2138
      %v2420 = vadd.f32 %v2419, %v2140
      %v2421 = vadd.f32 %v2420, %v2142
      %2422 = vadd.xlane.f32.xlu0 %v2421
      %v2423 = vpop.xlane.xlu0 %2422
      %v2424 = vadd.f32 %v2144, %v2146
      %v2425 = vadd.f32 %v2424, %v2148
      %v2426 = vadd.f32 %v2425, %v2150
      %2427 = vadd.xlane.f32.xlu0 %v2426
      %v2428 = vpop.xlane.xlu0 %2427
      %v2429 = vadd.f32 %v2152, %v2154
      %v2430 = vadd.f32 %v2429, %v2156
      %v2431 = vadd.f32 %v2430, %v2158
      %2432 = vadd.xlane.f32.xlu0 %v2431
      %v2433 = vpop.xlane.xlu0 %2432
      %v2434 = vadd.f32 %v2160, %v2162
      %v2435 = vadd.f32 %v2434, %v2164
      %v2436 = vadd.f32 %v2435, %v2166
      %2437 = vadd.xlane.f32.xlu0 %v2436
      %v2438 = vpop.xlane.xlu0 %2437
      %v2439 = vadd.f32 %v2168, %v2170
      %v2440 = vadd.f32 %v2439, %v2172
      %v2441 = vadd.f32 %v2440, %v2174
      %2442 = vadd.xlane.f32.xlu0 %v2441
      %v2443 = vpop.xlane.xlu0 %2442
      %v2444 = vadd.f32 %v2176, %v2178
      %v2445 = vadd.f32 %v2444, %v2180
      %v2446 = vadd.f32 %v2445, %v2182
      %2447 = vadd.xlane.f32.xlu0 %v2446
      %v2448 = vpop.xlane.xlu0 %2447
      %v2449 = vadd.f32 %v2184, %v2186
      %v2450 = vadd.f32 %v2449, %v2188
      %v2451 = vadd.f32 %v2450, %v2190
      %2452 = vadd.xlane.f32.xlu0 %v2451
      %v2453 = vpop.xlane.xlu0 %2452
      %v2454 = vadd.f32 %v2192, %v2194
      %v2455 = vadd.f32 %v2454, %v2196
      %v2456 = vadd.f32 %v2455, %v2198
      %2457 = vadd.xlane.f32.xlu0 %v2456
      %v2458 = vpop.xlane.xlu0 %2457
      %v2459 = vadd.f32 %v2200, %v2202
      %v2460 = vadd.f32 %v2459, %v2204
      %v2461 = vadd.f32 %v2460, %v2206
      %2462 = vadd.xlane.f32.xlu0 %v2461
      %v2463 = vpop.xlane.xlu0 %2462
      %v2464 = vadd.f32 %v2208, %v2210
      %v2465 = vadd.f32 %v2464, %v2212
      %v2466 = vadd.f32 %v2465, %v2214
      %2467 = vadd.xlane.f32.xlu0 %v2466
      %v2468 = vpop.xlane.xlu0 %2467
      %v2469 = vadd.f32 %v2216, %v2218
      %v2470 = vadd.f32 %v2469, %v2220
      %v2471 = vadd.f32 %v2470, %v2222
      %2472 = vadd.xlane.f32.xlu0 %v2471
      %v2473 = vpop.xlane.xlu0 %2472
      %v2474 = vadd.f32 %v2224, %v2226
      %v2475 = vadd.f32 %v2474, %v2228
      %v2476 = vadd.f32 %v2475, %v2230
      %2477 = vadd.xlane.f32.xlu0 %v2476
      %v2478 = vpop.xlane.xlu0 %2477
      %v2479 = vadd.f32 %v2232, %v2234
      %v2480 = vadd.f32 %v2479, %v2236
      %v2481 = vadd.f32 %v2480, %v2238
      %2482 = vadd.xlane.f32.xlu0 %v2481
      %v2483 = vpop.xlane.xlu0 %2482
      %v2484 = vadd.f32 %v2240, %v2242
      %v2485 = vadd.f32 %v2484, %v2244
      %v2486 = vadd.f32 %v2485, %v2246
      %2487 = vadd.xlane.f32.xlu0 %v2486
      %v2488 = vpop.xlane.xlu0 %2487
      %v2489 = vadd.f32 %v2248, %v2250
      %v2490 = vadd.f32 %v2489, %v2252
      %v2491 = vadd.f32 %v2490, %v2254
      %2492 = vadd.xlane.f32.xlu0 %v2491
      %v2493 = vpop.xlane.xlu0 %2492
      %v2494 = vadd.f32 %v2256, %v2258
      %v2495 = vadd.f32 %v2494, %v2260
      %v2496 = vadd.f32 %v2495, %v2262
      %2497 = vadd.xlane.f32.xlu0 %v2496
      %v2498 = vpop.xlane.xlu0 %2497
      %v2499 = vadd.f32 %v2264, %v2266
      %v2500 = vadd.f32 %v2499, %v2268
      %v2501 = vadd.f32 %v2500, %v2270
      %2502 = vadd.xlane.f32.xlu0 %v2501
      %v2503 = vpop.xlane.xlu0 %2502
      %v2504 = vadd.f32 %v2272, %v2274
      %v2505 = vadd.f32 %v2504, %v2276
      %v2506 = vadd.f32 %v2505, %v2278
      %2507 = vadd.xlane.f32.xlu0 %v2506
      %v2508 = vpop.xlane.xlu0 %2507
      %v2509 = vadd.f32 %v2280, %v2282
      %v2510 = vadd.f32 %v2509, %v2284
      %v2511 = vadd.f32 %v2510, %v2286
      %2512 = vadd.xlane.f32.xlu0 %v2511
      %v2513 = vpop.xlane.xlu0 %2512
      %v2514 = vadd.f32 %v2288, %v2290
      %v2515 = vadd.f32 %v2514, %v2292
      %v2516 = vadd.f32 %v2515, %v2294
      %2517 = vadd.xlane.f32.xlu0 %v2516
      %v2518 = vpop.xlane.xlu0 %2517
      %v2519 = vadd.f32 %v2327, %v2363
      %v2520 = vadd.f32 %v2328, %v2368
      %v2521 = vadd.f32 %v2329, %v2373
      %v2522 = vadd.f32 %v2330, %v2378
      %v2523 = vadd.f32 %v2331, %v2383
      %v2524 = vadd.f32 %v2332, %v2388
      %v2525 = vadd.f32 %v2333, %v2393
      %v2526 = vadd.f32 %v2334, %v2398
      %v2527 = vadd.f32 %v2335, %v2403
      %v2528 = vadd.f32 %v2336, %v2408
      %v2529 = vadd.f32 %v2337, %v2413
      %v2530 = vadd.f32 %v2338, %v2418
      %v2531 = vadd.f32 %v2339, %v2423
      %v2532 = vadd.f32 %v2340, %v2428
      %v2533 = vadd.f32 %v2341, %v2433
      %v2534 = vadd.f32 %v2342, %v2438
      %v2535 = vadd.f32 %v2343, %v2443
      %v2536 = vadd.f32 %v2344, %v2448
      %v2537 = vadd.f32 %v2345, %v2453
      %v2538 = vadd.f32 %v2346, %v2458
      %v2539 = vadd.f32 %v2347, %v2463
      %v2540 = vadd.f32 %v2348, %v2468
      %v2541 = vadd.f32 %v2349, %v2473
      %v2542 = vadd.f32 %v2350, %v2478
      %v2543 = vadd.f32 %v2351, %v2483
      %v2544 = vadd.f32 %v2352, %v2488
      %v2545 = vadd.f32 %v2353, %v2493
      %v2546 = vadd.f32 %v2354, %v2498
      %v2547 = vadd.f32 %v2355, %v2503
      %v2548 = vadd.f32 %v2356, %v2508
      %v2549 = vadd.f32 %v2357, %v2513
      %v2550 = vadd.f32 %v2358, %v2518
      %vm2551 = vcmask 7168
      %2552 = vst.msk [vmem:[#allocation4] sm:$0xff] %vm2551, %v2519
      %2553 = vst.msk [vmem:[#allocation4 + $0x8] sm:$0xff] %vm2551, %v2520
      %2554 = vst.msk [vmem:[#allocation4 + $0x10] sm:$0xff] %vm2551, %v2521
      %2555 = vst.msk [vmem:[#allocation4 + $0x18] sm:$0xff] %vm2551, %v2522
      %2556 = vst.msk [vmem:[#allocation4 + $0x20] sm:$0xff] %vm2551, %v2523
      %2557 = vst.msk [vmem:[#allocation4 + $0x28] sm:$0xff] %vm2551, %v2524
      %2558 = vst.msk [vmem:[#allocation4 + $0x30] sm:$0xff] %vm2551, %v2525
      %2559 = vst.msk [vmem:[#allocation4 + $0x38] sm:$0xff] %vm2551, %v2526
      %2560 = vst.msk [vmem:[#allocation4 + $0x40] sm:$0xff] %vm2551, %v2527
      %2561 = vst.msk [vmem:[#allocation4 + $0x48] sm:$0xff] %vm2551, %v2528
      %2562 = vst.msk [vmem:[#allocation4 + $0x50] sm:$0xff] %vm2551, %v2529
      %2563 = vst.msk [vmem:[#allocation4 + $0x58] sm:$0xff] %vm2551, %v2530
      %2564 = vst.msk [vmem:[#allocation4 + $0x60] sm:$0xff] %vm2551, %v2531
      %2565 = vst.msk [vmem:[#allocation4 + $0x68] sm:$0xff] %vm2551, %v2532
      %2566 = vst.msk [vmem:[#allocation4 + $0x70] sm:$0xff] %vm2551, %v2533
      %2567 = vst.msk [vmem:[#allocation4 + $0x78] sm:$0xff] %vm2551, %v2534
      %2568 = vst.msk [vmem:[#allocation4 + $0x80] sm:$0xff] %vm2551, %v2535
      %2569 = vst.msk [vmem:[#allocation4 + $0x88] sm:$0xff] %vm2551, %v2536
      %2570 = vst.msk [vmem:[#allocation4 + $0x90] sm:$0xff] %vm2551, %v2537
      %2571 = vst.msk [vmem:[#allocation4 + $0x98] sm:$0xff] %vm2551, %v2538
      %2572 = vst.msk [vmem:[#allocation4 + $0xa0] sm:$0xff] %vm2551, %v2539
      %2573 = vst.msk [vmem:[#allocation4 + $0xa8] sm:$0xff] %vm2551, %v2540
      %2574 = vst.msk [vmem:[#allocation4 + $0xb0] sm:$0xff] %vm2551, %v2541
      %2575 = vst.msk [vmem:[#allocation4 + $0xb8] sm:$0xff] %vm2551, %v2542
      %2576 = vst.msk [vmem:[#allocation4 + $0xc0] sm:$0xff] %vm2551, %v2543
      %2577 = vst.msk [vmem:[#allocation4 + $0xc8] sm:$0xff] %vm2551, %v2544
      %2578 = vst.msk [vmem:[#allocation4 + $0xd0] sm:$0xff] %vm2551, %v2545
      %2579 = vst.msk [vmem:[#allocation4 + $0xd8] sm:$0xff] %vm2551, %v2546
      %2580 = vst.msk [vmem:[#allocation4 + $0xe0] sm:$0xff] %vm2551, %v2547
      %2581 = vst.msk [vmem:[#allocation4 + $0xe8] sm:$0xff] %vm2551, %v2548
      %2582 = vst.msk [vmem:[#allocation4 + $0xf0] sm:$0xff] %vm2551, %v2549
      %2583 = vst.msk [vmem:[#allocation4 + $0xf8] sm:$0xff] %vm2551, %v2550
      %v2584 = vld [vmem:[#allocation5] sm:$0xff]
      %v2585 = vld [vmem:[#allocation5 + $0x8] sm:$0xff]
      %v2586 = vld [vmem:[#allocation5 + $0x10] sm:$0xff]
      %v2587 = vld [vmem:[#allocation5 + $0x18] sm:$0xff]
      %v2588 = vld [vmem:[#allocation5 + $0x20] sm:$0xff]
      %v2589 = vld [vmem:[#allocation5 + $0x28] sm:$0xff]
      %v2590 = vld [vmem:[#allocation5 + $0x30] sm:$0xff]
      %v2591 = vld [vmem:[#allocation5 + $0x38] sm:$0xff]
      %v2592 = vld [vmem:[#allocation5 + $0x40] sm:$0xff]
      %v2593 = vld [vmem:[#allocation5 + $0x48] sm:$0xff]
      %v2594 = vld [vmem:[#allocation5 + $0x50] sm:$0xff]
      %v2595 = vld [vmem:[#allocation5 + $0x58] sm:$0xff]
      %v2596 = vld [vmem:[#allocation5 + $0x60] sm:$0xff]
      %v2597 = vld [vmem:[#allocation5 + $0x68] sm:$0xff]
      %v2598 = vld [vmem:[#allocation5 + $0x70] sm:$0xff]
      %v2599 = vld [vmem:[#allocation5 + $0x78] sm:$0xff]
      %v2600 = vld [vmem:[#allocation5 + $0x80] sm:$0xff]
      %v2601 = vld [vmem:[#allocation5 + $0x88] sm:$0xff]
      %v2602 = vld [vmem:[#allocation5 + $0x90] sm:$0xff]
      %v2603 = vld [vmem:[#allocation5 + $0x98] sm:$0xff]
      %v2604 = vld [vmem:[#allocation5 + $0xa0] sm:$0xff]
      %v2605 = vld [vmem:[#allocation5 + $0xa8] sm:$0xff]
      %v2606 = vld [vmem:[#allocation5 + $0xb0] sm:$0xff]
      %v2607 = vld [vmem:[#allocation5 + $0xb8] sm:$0xff]
      %v2608 = vld [vmem:[#allocation5 + $0xc0] sm:$0xff]
      %v2609 = vld [vmem:[#allocation5 + $0xc8] sm:$0xff]
      %v2610 = vld [vmem:[#allocation5 + $0xd0] sm:$0xff]
      %v2611 = vld [vmem:[#allocation5 + $0xd8] sm:$0xff]
      %v2612 = vld [vmem:[#allocation5 + $0xe0] sm:$0xff]
      %v2613 = vld [vmem:[#allocation5 + $0xe8] sm:$0xff]
      %v2614 = vld [vmem:[#allocation5 + $0xf0] sm:$0xff]
      %v2615 = vld [vmem:[#allocation5 + $0xf8] sm:$0xff]
      %2617 = vset.pattern.permute.xlu0 0
      %2618 = vperm.xlu0 %2617, %v1688
      %v2619 = vpop.permute.xlu0 %2618
      %2622 = vset.pattern.permute.xlu0 0
      %2623 = vperm.xlu0 %2622, %v1690
      %v2624 = vpop.permute.xlu0 %2623
      %2627 = vset.pattern.permute.xlu0 0
      %2628 = vperm.xlu0 %2627, %v1692
      %v2629 = vpop.permute.xlu0 %2628
      %2632 = vset.pattern.permute.xlu0 0
      %2633 = vperm.xlu0 %2632, %v1694
      %v2634 = vpop.permute.xlu0 %2633
      %2637 = vset.pattern.permute.xlu0 0
      %2638 = vperm.xlu0 %2637, %v1696
      %v2639 = vpop.permute.xlu0 %2638
      %2642 = vset.pattern.permute.xlu0 0
      %2643 = vperm.xlu0 %2642, %v1698
      %v2644 = vpop.permute.xlu0 %2643
      %2647 = vset.pattern.permute.xlu0 0
      %2648 = vperm.xlu0 %2647, %v1700
      %v2649 = vpop.permute.xlu0 %2648
      %2652 = vset.pattern.permute.xlu0 0
      %2653 = vperm.xlu0 %2652, %v1702
      %v2654 = vpop.permute.xlu0 %2653
      %2657 = vset.pattern.permute.xlu0 0
      %2658 = vperm.xlu0 %2657, %v1704
      %v2659 = vpop.permute.xlu0 %2658
      %2662 = vset.pattern.permute.xlu0 0
      %2663 = vperm.xlu0 %2662, %v1706
      %v2664 = vpop.permute.xlu0 %2663
      %2667 = vset.pattern.permute.xlu0 0
      %2668 = vperm.xlu0 %2667, %v1708
      %v2669 = vpop.permute.xlu0 %2668
      %2672 = vset.pattern.permute.xlu0 0
      %2673 = vperm.xlu0 %2672, %v1710
      %v2674 = vpop.permute.xlu0 %2673
      %2677 = vset.pattern.permute.xlu0 0
      %2678 = vperm.xlu0 %2677, %v1712
      %v2679 = vpop.permute.xlu0 %2678
      %2682 = vset.pattern.permute.xlu0 0
      %2683 = vperm.xlu0 %2682, %v1714
      %v2684 = vpop.permute.xlu0 %2683
      %2687 = vset.pattern.permute.xlu0 0
      %2688 = vperm.xlu0 %2687, %v1716
      %v2689 = vpop.permute.xlu0 %2688
      %2692 = vset.pattern.permute.xlu0 0
      %2693 = vperm.xlu0 %2692, %v1718
      %v2694 = vpop.permute.xlu0 %2693
      %2697 = vset.pattern.permute.xlu0 0
      %2698 = vperm.xlu0 %2697, %v1720
      %v2699 = vpop.permute.xlu0 %2698
      %2702 = vset.pattern.permute.xlu0 0
      %2703 = vperm.xlu0 %2702, %v1722
      %v2704 = vpop.permute.xlu0 %2703
      %2707 = vset.pattern.permute.xlu0 0
      %2708 = vperm.xlu0 %2707, %v1724
      %v2709 = vpop.permute.xlu0 %2708
      %2712 = vset.pattern.permute.xlu0 0
      %2713 = vperm.xlu0 %2712, %v1726
      %v2714 = vpop.permute.xlu0 %2713
      %2717 = vset.pattern.permute.xlu0 0
      %2718 = vperm.xlu0 %2717, %v1728
      %v2719 = vpop.permute.xlu0 %2718
      %2722 = vset.pattern.permute.xlu0 0
      %2723 = vperm.xlu0 %2722, %v1730
      %v2724 = vpop.permute.xlu0 %2723
      %2727 = vset.pattern.permute.xlu0 0
      %2728 = vperm.xlu0 %2727, %v1732
      %v2729 = vpop.permute.xlu0 %2728
      %2732 = vset.pattern.permute.xlu0 0
      %2733 = vperm.xlu0 %2732, %v1734
      %v2734 = vpop.permute.xlu0 %2733
      %2737 = vset.pattern.permute.xlu0 0
      %2738 = vperm.xlu0 %2737, %v1736
      %v2739 = vpop.permute.xlu0 %2738
      %2742 = vset.pattern.permute.xlu0 0
      %2743 = vperm.xlu0 %2742, %v1738
      %v2744 = vpop.permute.xlu0 %2743
      %2747 = vset.pattern.permute.xlu0 0
      %2748 = vperm.xlu0 %2747, %v1740
      %v2749 = vpop.permute.xlu0 %2748
      %2752 = vset.pattern.permute.xlu0 0
      %2753 = vperm.xlu0 %2752, %v1742
      %v2754 = vpop.permute.xlu0 %2753
      %2757 = vset.pattern.permute.xlu0 0
      %2758 = vperm.xlu0 %2757, %v1744
      %v2759 = vpop.permute.xlu0 %2758
      %2762 = vset.pattern.permute.xlu0 0
      %2763 = vperm.xlu0 %2762, %v1746
      %v2764 = vpop.permute.xlu0 %2763
      %2767 = vset.pattern.permute.xlu0 0
      %2768 = vperm.xlu0 %2767, %v1748
      %v2769 = vpop.permute.xlu0 %2768
      %2772 = vset.pattern.permute.xlu0 0
      %2773 = vperm.xlu0 %2772, %v1750
      %v2774 = vpop.permute.xlu0 %2773
      %v2776 = vmul.f32 %v2619, %v2584
      %v2777 = vmul.f32 %v2624, %v2585
      %v2778 = vmul.f32 %v2629, %v2586
      %v2779 = vmul.f32 %v2634, %v2587
      %v2780 = vmul.f32 %v2639, %v2588
      %v2781 = vmul.f32 %v2644, %v2589
      %v2782 = vmul.f32 %v2649, %v2590
      %v2783 = vmul.f32 %v2654, %v2591
      %v2784 = vmul.f32 %v2659, %v2592
      %v2785 = vmul.f32 %v2664, %v2593
      %v2786 = vmul.f32 %v2669, %v2594
      %v2787 = vmul.f32 %v2674, %v2595
      %v2788 = vmul.f32 %v2679, %v2596
      %v2789 = vmul.f32 %v2684, %v2597
      %v2790 = vmul.f32 %v2689, %v2598
      %v2791 = vmul.f32 %v2694, %v2599
      %v2792 = vmul.f32 %v2699, %v2600
      %v2793 = vmul.f32 %v2704, %v2601
      %v2794 = vmul.f32 %v2709, %v2602
      %v2795 = vmul.f32 %v2714, %v2603
      %v2796 = vmul.f32 %v2719, %v2604
      %v2797 = vmul.f32 %v2724, %v2605
      %v2798 = vmul.f32 %v2729, %v2606
      %v2799 = vmul.f32 %v2734, %v2607
      %v2800 = vmul.f32 %v2739, %v2608
      %v2801 = vmul.f32 %v2744, %v2609
      %v2802 = vmul.f32 %v2749, %v2610
      %v2803 = vmul.f32 %v2754, %v2611
      %v2804 = vmul.f32 %v2759, %v2612
      %v2805 = vmul.f32 %v2764, %v2613
      %v2806 = vmul.f32 %v2769, %v2614
      %v2807 = vmul.f32 %v2774, %v2615
      %v2808 = vpack.c.bf16 %v2048, %v2040
      %v2809 = vpack.c.bf16 %v2050, %v2042
      %v2810 = vpack.c.bf16 %v2052, %v2044
      %v2811 = vpack.c.bf16 %v2054, %v2046
      %v2812 = vpack.c.bf16 %v2064, %v2056
      %v2813 = vpack.c.bf16 %v2066, %v2058
      %v2814 = vpack.c.bf16 %v2068, %v2060
      %v2815 = vpack.c.bf16 %v2070, %v2062
      %v2816 = vpack.c.bf16 %v2080, %v2072
      %v2817 = vpack.c.bf16 %v2082, %v2074
      %v2818 = vpack.c.bf16 %v2084, %v2076
      %v2819 = vpack.c.bf16 %v2086, %v2078
      %v2820 = vpack.c.bf16 %v2096, %v2088
      %v2821 = vpack.c.bf16 %v2098, %v2090
      %v2822 = vpack.c.bf16 %v2100, %v2092
      %v2823 = vpack.c.bf16 %v2102, %v2094
      %v2824 = vpack.c.bf16 %v2112, %v2104
      %v2825 = vpack.c.bf16 %v2114, %v2106
      %v2826 = vpack.c.bf16 %v2116, %v2108
      %v2827 = vpack.c.bf16 %v2118, %v2110
      %v2828 = vpack.c.bf16 %v2128, %v2120
      %v2829 = vpack.c.bf16 %v2130, %v2122
      %v2830 = vpack.c.bf16 %v2132, %v2124
      %v2831 = vpack.c.bf16 %v2134, %v2126
      %v2832 = vpack.c.bf16 %v2144, %v2136
      %v2833 = vpack.c.bf16 %v2146, %v2138
      %v2834 = vpack.c.bf16 %v2148, %v2140
      %v2835 = vpack.c.bf16 %v2150, %v2142
      %v2836 = vpack.c.bf16 %v2160, %v2152
      %v2837 = vpack.c.bf16 %v2162, %v2154
      %v2838 = vpack.c.bf16 %v2164, %v2156
      %v2839 = vpack.c.bf16 %v2166, %v2158
      %v2840 = vpack.c.bf16 %v2176, %v2168
      %v2841 = vpack.c.bf16 %v2178, %v2170
      %v2842 = vpack.c.bf16 %v2180, %v2172
      %v2843 = vpack.c.bf16 %v2182, %v2174
      %v2844 = vpack.c.bf16 %v2192, %v2184
      %v2845 = vpack.c.bf16 %v2194, %v2186
      %v2846 = vpack.c.bf16 %v2196, %v2188
      %v2847 = vpack.c.bf16 %v2198, %v2190
      %v2848 = vpack.c.bf16 %v2208, %v2200
      %v2849 = vpack.c.bf16 %v2210, %v2202
      %v2850 = vpack.c.bf16 %v2212, %v2204
      %v2851 = vpack.c.bf16 %v2214, %v2206
      %v2852 = vpack.c.bf16 %v2224, %v2216
      %v2853 = vpack.c.bf16 %v2226, %v2218
      %v2854 = vpack.c.bf16 %v2228, %v2220
      %v2855 = vpack.c.bf16 %v2230, %v2222
      %v2856 = vpack.c.bf16 %v2240, %v2232
      %v2857 = vpack.c.bf16 %v2242, %v2234
      %v2858 = vpack.c.bf16 %v2244, %v2236
      %v2859 = vpack.c.bf16 %v2246, %v2238
      %v2860 = vpack.c.bf16 %v2256, %v2248
      %v2861 = vpack.c.bf16 %v2258, %v2250
      %v2862 = vpack.c.bf16 %v2260, %v2252
      %v2863 = vpack.c.bf16 %v2262, %v2254
      %v2864 = vpack.c.bf16 %v2272, %v2264
      %v2865 = vpack.c.bf16 %v2274, %v2266
      %v2866 = vpack.c.bf16 %v2276, %v2268
      %v2867 = vpack.c.bf16 %v2278, %v2270
      %v2868 = vpack.c.bf16 %v2288, %v2280
      %v2869 = vpack.c.bf16 %v2290, %v2282
      %v2870 = vpack.c.bf16 %v2292, %v2284
      %v2871 = vpack.c.bf16 %v2294, %v2286
      %2872 = vmatprep.subr.bf16.mxu0 0
      %2873 = vmatpush1.bf16.msra.mxu0 %v981
      %2874 = vmatprep.subr.bf16.mxu0 0
      %2875 = vmatpush1.bf16.msra.mxu0 %v982
      %2876 = vmatprep.subr.bf16.mxu0 0
      %2877 = vmatpush1.bf16.msra.mxu0 %v983
      %2878 = vmatprep.subr.bf16.mxu0 0
      %2879 = vmatpush1.bf16.msra.mxu0 %v984
      %2880 = vmatprep.subr.bf16.mxu0 0
      %2881 = vmatpush1.bf16.msra.mxu0 %v985
      %2882 = vmatprep.subr.bf16.mxu0 0
      %2883 = vmatpush1.bf16.msra.mxu0 %v986
      %2884 = vmatprep.subr.bf16.mxu0 0
      %2885 = vmatpush1.bf16.msra.mxu0 %v987
      %2886 = vmatprep.subr.bf16.mxu0 0
      %2887 = vmatpush1.bf16.msra.mxu0 %v988
      %2888 = vmatprep.subr.bf16.mxu0 0
      %2889 = vmatpush1.bf16.msra.mxu0 %v989
      %2890 = vmatprep.subr.bf16.mxu0 0
      %2891 = vmatpush1.bf16.msra.mxu0 %v990
      %2892 = vmatprep.subr.bf16.mxu0 0
      %2893 = vmatpush1.bf16.msra.mxu0 %v991
      %2894 = vmatprep.subr.bf16.mxu0 0
      %2895 = vmatpush1.bf16.msra.mxu0 %v992
      %2896 = vmatprep.subr.bf16.mxu0 0
      %2897 = vmatpush1.bf16.msra.mxu0 %v993
      %2898 = vmatprep.subr.bf16.mxu0 0
      %2899 = vmatpush1.bf16.msra.mxu0 %v994
      %2900 = vmatprep.subr.bf16.mxu0 0
      %2901 = vmatpush1.bf16.msra.mxu0 %v995
      %2902 = vmatprep.subr.bf16.mxu0 0
      %2903 = vmatpush1.bf16.msra.mxu0 %v996
      %2904 = vmatprep.mubr.bf16.mxu0 %v2809
      %2905 = vmatmul.mubr.bf16.gmra.mrb[0].mxu0 %v2808
      %v2906 = vpop.f32.mrb[0].mxu0
      %v2907 = vadd.f32 0.0, %v2906
      %v2908 = vpop.f32.mrb[0].mxu0
      %v2909 = vpop.f32.mrb[0].mxu0
      %v2910 = vadd.f32 0.0, %v2909
      %v2911 = vpop.f32.mrb[0].mxu0
      %2912 = vmatprep.mubr.bf16.mxu0 %v2813
      %2913 = vmatmul.mubr.bf16.gmra.mrb[0].mxu0 %v2812
      %v2914 = vpop.f32.mrb[0].mxu0
      %v2915 = vadd.f32 0.0, %v2914
      %v2916 = vpop.f32.mrb[0].mxu0
      %v2917 = vpop.f32.mrb[0].mxu0
      %v2918 = vadd.f32 0.0, %v2917
      %v2919 = vpop.f32.mrb[0].mxu0
      %2920 = vmatprep.mubr.bf16.mxu0 %v2817
      %2921 = vmatmul.mubr.bf16.gmra.mrb[0].mxu0 %v2816
      %v2922 = vpop.f32.mrb[0].mxu0
      %v2923 = vadd.f32 0.0, %v2922
      %v2924 = vpop.f32.mrb[0].mxu0
      %v2925 = vpop.f32.mrb[0].mxu0
      %v2926 = vadd.f32 0.0, %v2925
      %v2927 = vpop.f32.mrb[0].mxu0
      %2928 = vmatprep.mubr.bf16.mxu0 %v2821
      %2929 = vmatmul.mubr.bf16.gmra.mrb[0].mxu0 %v2820
      %v2930 = vpop.f32.mrb[0].mxu0
      %v2931 = vadd.f32 0.0, %v2930
      %v2932 = vpop.f32.mrb[0].mxu0
      %v2933 = vpop.f32.mrb[0].mxu0
      %v2934 = vadd.f32 0.0, %v2933
      %v2935 = vpop.f32.mrb[0].mxu0
      %2936 = vmatprep.mubr.bf16.mxu0 %v2825
      %2937 = vmatmul.mubr.bf16.gmra.mrb[0].mxu0 %v2824
      %v2938 = vpop.f32.mrb[0].mxu0
      %v2939 = vadd.f32 0.0, %v2938
      %v2940 = vpop.f32.mrb[0].mxu0
      %v2941 = vpop.f32.mrb[0].mxu0
      %v2942 = vadd.f32 0.0, %v2941
      %v2943 = vpop.f32.mrb[0].mxu0
      %2944 = vmatprep.mubr.bf16.mxu0 %v2829
      %2945 = vmatmul.mubr.bf16.gmra.mrb[0].mxu0 %v2828
      %v2946 = vpop.f32.mrb[0].mxu0
      %v2947 = vadd.f32 0.0, %v2946
      %v2948 = vpop.f32.mrb[0].mxu0
      %v2949 = vpop.f32.mrb[0].mxu0
      %v2950 = vadd.f32 0.0, %v2949
      %v2951 = vpop.f32.mrb[0].mxu0
      %2952 = vmatprep.mubr.bf16.mxu0 %v2833
      %2953 = vmatmul.mubr.bf16.gmra.mrb[0].mxu0 %v2832
      %v2954 = vpop.f32.mrb[0].mxu0
      %v2955 = vadd.f32 0.0, %v2954
      %v2956 = vpop.f32.mrb[0].mxu0
      %v2957 = vpop.f32.mrb[0].mxu0
      %v2958 = vadd.f32 0.0, %v2957
      %v2959 = vpop.f32.mrb[0].mxu0
      %2960 = vmatprep.mubr.bf16.mxu0 %v2837
      %2961 = vmatmul.mubr.bf16.gmra.mrb[0].mxu0 %v2836
      %v2962 = vpop.f32.mrb[0].mxu0
      %v2963 = vadd.f32 0.0, %v2962
      %v2964 = vpop.f32.mrb[0].mxu0
      %v2965 = vpop.f32.mrb[0].mxu0
      %v2966 = vadd.f32 0.0, %v2965
      %v2967 = vpop.f32.mrb[0].mxu0
      %2968 = vmatprep.mubr.bf16.mxu0 %v2841
      %2969 = vmatmul.mubr.bf16.gmra.mrb[0].mxu0 %v2840
      %v2970 = vpop.f32.mrb[0].mxu0
      %v2971 = vadd.f32 0.0, %v2970
      %v2972 = vpop.f32.mrb[0].mxu0
      %v2973 = vpop.f32.mrb[0].mxu0
      %v2974 = vadd.f32 0.0, %v2973
      %v2975 = vpop.f32.mrb[0].mxu0
      %2976 = vmatprep.mubr.bf16.mxu0 %v2845
      %2977 = vmatmul.mubr.bf16.gmra.mrb[0].mxu0 %v2844
      %v2978 = vpop.f32.mrb[0].mxu0
      %v2979 = vadd.f32 0.0, %v2978
      %v2980 = vpop.f32.mrb[0].mxu0
      %v2981 = vpop.f32.mrb[0].mxu0
      %v2982 = vadd.f32 0.0, %v2981
      %v2983 = vpop.f32.mrb[0].mxu0
      %2984 = vmatprep.mubr.bf16.mxu0 %v2849
      %2985 = vmatmul.mubr.bf16.gmra.mrb[0].mxu0 %v2848
      %v2986 = vpop.f32.mrb[0].mxu0
      %v2987 = vadd.f32 0.0, %v2986
      %v2988 = vpop.f32.mrb[0].mxu0
      %v2989 = vpop.f32.mrb[0].mxu0
      %v2990 = vadd.f32 0.0, %v2989
      %v2991 = vpop.f32.mrb[0].mxu0
      %2992 = vmatprep.mubr.bf16.mxu0 %v2853
      %2993 = vmatmul.mubr.bf16.gmra.mrb[0].mxu0 %v2852
      %v2994 = vpop.f32.mrb[0].mxu0
      %v2995 = vadd.f32 0.0, %v2994
      %v2996 = vpop.f32.mrb[0].mxu0
      %v2997 = vpop.f32.mrb[0].mxu0
      %v2998 = vadd.f32 0.0, %v2997
      %v2999 = vpop.f32.mrb[0].mxu0
      %3000 = vmatprep.mubr.bf16.mxu0 %v2857
      %3001 = vmatmul.mubr.bf16.gmra.mrb[0].mxu0 %v2856
      %v3002 = vpop.f32.mrb[0].mxu0
      %v3003 = vadd.f32 0.0, %v3002
      %v3004 = vpop.f32.mrb[0].mxu0
      %v3005 = vpop.f32.mrb[0].mxu0
      %v3006 = vadd.f32 0.0, %v3005
      %v3007 = vpop.f32.mrb[0].mxu0
      %3008 = vmatprep.mubr.bf16.mxu0 %v2861
      %3009 = vmatmul.mubr.bf16.gmra.mrb[0].mxu0 %v2860
      %v3010 = vpop.f32.mrb[0].mxu0
      %v3011 = vadd.f32 0.0, %v3010
      %v3012 = vpop.f32.mrb[0].mxu0
      %v3013 = vpop.f32.mrb[0].mxu0
      %v3014 = vadd.f32 0.0, %v3013
      %v3015 = vpop.f32.mrb[0].mxu0
      %3016 = vmatprep.mubr.bf16.mxu0 %v2865
      %3017 = vmatmul.mubr.bf16.gmra.mrb[0].mxu0 %v2864
      %v3018 = vpop.f32.mrb[0].mxu0
      %v3019 = vadd.f32 0.0, %v3018
      %v3020 = vpop.f32.mrb[0].mxu0
      %v3021 = vpop.f32.mrb[0].mxu0
      %v3022 = vadd.f32 0.0, %v3021
      %v3023 = vpop.f32.mrb[0].mxu0
      %3024 = vmatprep.mubr.bf16.mxu0 %v2869
      %3025 = vmatmul.mubr.bf16.gmra.mrb[0].mxu0 %v2868
      %v3026 = vpop.f32.mrb[0].mxu0
      %v3027 = vadd.f32 0.0, %v3026
      %v3028 = vpop.f32.mrb[0].mxu0
      %v3029 = vpop.f32.mrb[0].mxu0
      %v3030 = vadd.f32 0.0, %v3029
      %v3031 = vpop.f32.mrb[0].mxu0
      %3032 = vdwg.mxu0
      %3033 = vmatprep.subr.bf16.mxu0 0
      %3034 = vmatpush1.bf16.msra.mxu0 %v997
      %3035 = vmatprep.subr.bf16.mxu0 0
      %3036 = vmatpush1.bf16.msra.mxu0 %v998
      %3037 = vmatprep.subr.bf16.mxu0 0
      %3038 = vmatpush1.bf16.msra.mxu0 %v999
      %3039 = vmatprep.subr.bf16.mxu0 0
      %3040 = vmatpush1.bf16.msra.mxu0 %v1000
      %3041 = vmatprep.subr.bf16.mxu0 0
      %3042 = vmatpush1.bf16.msra.mxu0 %v1001
      %3043 = vmatprep.subr.bf16.mxu0 0
      %3044 = vmatpush1.bf16.msra.mxu0 %v1002
      %3045 = vmatprep.subr.bf16.mxu0 0
      %3046 = vmatpush1.bf16.msra.mxu0 %v1003
      %3047 = vmatprep.subr.bf16.mxu0 0
      %3048 = vmatpush1.bf16.msra.mxu0 %v1004
      %3049 = vmatprep.subr.bf16.mxu0 0
      %3050 = vmatpush1.bf16.msra.mxu0 %v1005
      %3051 = vmatprep.subr.bf16.mxu0 0
      %3052 = vmatpush1.bf16.msra.mxu0 %v1006
      %3053 = vmatprep.subr.bf16.mxu0 0
      %3054 = vmatpush1.bf16.msra.mxu0 %v1007
      %3055 = vmatprep.subr.bf16.mxu0 0
      %3056 = vmatpush1.bf16.msra.mxu0 %v1008
      %3057 = vmatprep.subr.bf16.mxu0 0
      %3058 = vmatpush1.bf16.msra.mxu0 %v1009
      %3059 = vmatprep.subr.bf16.mxu0 0
      %3060 = vmatpush1.bf16.msra.mxu0 %v1010
      %3061 = vmatprep.subr.bf16.mxu0 0
      %3062 = vmatpush1.bf16.msra.mxu0 %v1011
      %3063 = vmatprep.subr.bf16.mxu0 0
      %3064 = vmatpush1.bf16.msra.mxu0 %v1012
      %3065 = vmatprep.mubr.bf16.mxu0 %v2811
      %3066 = vmatmul.mubr.bf16.gmra.mrb[0].mxu0 %v2810
      %v3067 = vpop.f32.mrb[0].mxu0
      %v3068 = vadd.f32 %v2907, %v3067
      %v3069 = vpop.f32.mrb[0].mxu0
      %v3070 = vpop.f32.mrb[0].mxu0
      %v3071 = vadd.f32 %v2910, %v3070
      %v3072 = vpop.f32.mrb[0].mxu0
      %3073 = vmatprep.mubr.bf16.mxu0 %v2815
      %3074 = vmatmul.mubr.bf16.gmra.mrb[0].mxu0 %v2814
      %v3075 = vpop.f32.mrb[0].mxu0
      %v3076 = vadd.f32 %v2915, %v3075
      %v3077 = vpop.f32.mrb[0].mxu0
      %v3078 = vpop.f32.mrb[0].mxu0
      %v3079 = vadd.f32 %v2918, %v3078
      %v3080 = vpop.f32.mrb[0].mxu0
      %3081 = vmatprep.mubr.bf16.mxu0 %v2819
      %3082 = vmatmul.mubr.bf16.gmra.mrb[0].mxu0 %v2818
      %v3083 = vpop.f32.mrb[0].mxu0
      %v3084 = vadd.f32 %v2923, %v3083
      %v3085 = vpop.f32.mrb[0].mxu0
      %v3086 = vpop.f32.mrb[0].mxu0
      %v3087 = vadd.f32 %v2926, %v3086
      %v3088 = vpop.f32.mrb[0].mxu0
      %3089 = vmatprep.mubr.bf16.mxu0 %v2823
      %3090 = vmatmul.mubr.bf16.gmra.mrb[0].mxu0 %v2822
      %v3091 = vpop.f32.mrb[0].mxu0
      %v3092 = vadd.f32 %v2931, %v3091
      %v3093 = vpop.f32.mrb[0].mxu0
      %v3094 = vpop.f32.mrb[0].mxu0
      %v3095 = vadd.f32 %v2934, %v3094
      %v3096 = vpop.f32.mrb[0].mxu0
      %3097 = vmatprep.mubr.bf16.mxu0 %v2827
      %3098 = vmatmul.mubr.bf16.gmra.mrb[0].mxu0 %v2826
      %v3099 = vpop.f32.mrb[0].mxu0
      %v3100 = vadd.f32 %v2939, %v3099
      %v3101 = vpop.f32.mrb[0].mxu0
      %v3102 = vpop.f32.mrb[0].mxu0
      %v3103 = vadd.f32 %v2942, %v3102
      %v3104 = vpop.f32.mrb[0].mxu0
      %3105 = vmatprep.mubr.bf16.mxu0 %v2831
      %3106 = vmatmul.mubr.bf16.gmra.mrb[0].mxu0 %v2830
      %v3107 = vpop.f32.mrb[0].mxu0
      %v3108 = vadd.f32 %v2947, %v3107
      %v3109 = vpop.f32.mrb[0].mxu0
      %v3110 = vpop.f32.mrb[0].mxu0
      %v3111 = vadd.f32 %v2950, %v3110
      %v3112 = vpop.f32.mrb[0].mxu0
      %3113 = vmatprep.mubr.bf16.mxu0 %v2835
      %3114 = vmatmul.mubr.bf16.gmra.mrb[0].mxu0 %v2834
      %v3115 = vpop.f32.mrb[0].mxu0
      %v3116 = vadd.f32 %v2955, %v3115
      %v3117 = vpop.f32.mrb[0].mxu0
      %v3118 = vpop.f32.mrb[0].mxu0
      %v3119 = vadd.f32 %v2958, %v3118
      %v3120 = vpop.f32.mrb[0].mxu0
      %3121 = vmatprep.mubr.bf16.mxu0 %v2839
      %3122 = vmatmul.mubr.bf16.gmra.mrb[0].mxu0 %v2838
      %v3123 = vpop.f32.mrb[0].mxu0
      %v3124 = vadd.f32 %v2963, %v3123
      %v3125 = vpop.f32.mrb[0].mxu0
      %v3126 = vpop.f32.mrb[0].mxu0
      %v3127 = vadd.f32 %v2966, %v3126
      %v3128 = vpop.f32.mrb[0].mxu0
      %3129 = vmatprep.mubr.bf16.mxu0 %v2843
      %3130 = vmatmul.mubr.bf16.gmra.mrb[0].mxu0 %v2842
      %v3131 = vpop.f32.mrb[0].mxu0
      %v3132 = vadd.f32 %v2971, %v3131
      %v3133 = vpop.f32.mrb[0].mxu0
      %v3134 = vpop.f32.mrb[0].mxu0
      %v3135 = vadd.f32 %v2974, %v3134
      %v3136 = vpop.f32.mrb[0].mxu0
      %3137 = vmatprep.mubr.bf16.mxu0 %v2847
      %3138 = vmatmul.mubr.bf16.gmra.mrb[0].mxu0 %v2846
      %v3139 = vpop.f32.mrb[0].mxu0
      %v3140 = vadd.f32 %v2979, %v3139
      %v3141 = vpop.f32.mrb[0].mxu0
      %v3142 = vpop.f32.mrb[0].mxu0
      %v3143 = vadd.f32 %v2982, %v3142
      %v3144 = vpop.f32.mrb[0].mxu0
      %3145 = vmatprep.mubr.bf16.mxu0 %v2851
      %3146 = vmatmul.mubr.bf16.gmra.mrb[0].mxu0 %v2850
      %v3147 = vpop.f32.mrb[0].mxu0
      %v3148 = vadd.f32 %v2987, %v3147
      %v3149 = vpop.f32.mrb[0].mxu0
      %v3150 = vpop.f32.mrb[0].mxu0
      %v3151 = vadd.f32 %v2990, %v3150
      %v3152 = vpop.f32.mrb[0].mxu0
      %3153 = vmatprep.mubr.bf16.mxu0 %v2855
      %3154 = vmatmul.mubr.bf16.gmra.mrb[0].mxu0 %v2854
      %v3155 = vpop.f32.mrb[0].mxu0
      %v3156 = vadd.f32 %v2995, %v3155
      %v3157 = vpop.f32.mrb[0].mxu0
      %v3158 = vpop.f32.mrb[0].mxu0
      %v3159 = vadd.f32 %v2998, %v3158
      %v3160 = vpop.f32.mrb[0].mxu0
      %3161 = vmatprep.mubr.bf16.mxu0 %v2859
      %3162 = vmatmul.mubr.bf16.gmra.mrb[0].mxu0 %v2858
      %v3163 = vpop.f32.mrb[0].mxu0
      %v3164 = vadd.f32 %v3003, %v3163
      %v3165 = vpop.f32.mrb[0].mxu0
      %v3166 = vpop.f32.mrb[0].mxu0
      %v3167 = vadd.f32 %v3006, %v3166
      %v3168 = vpop.f32.mrb[0].mxu0
      %3169 = vmatprep.mubr.bf16.mxu0 %v2863
      %3170 = vmatmul.mubr.bf16.gmra.mrb[0].mxu0 %v2862
      %v3171 = vpop.f32.mrb[0].mxu0
      %v3172 = vadd.f32 %v3011, %v3171
      %v3173 = vpop.f32.mrb[0].mxu0
      %v3174 = vpop.f32.mrb[0].mxu0
      %v3175 = vadd.f32 %v3014, %v3174
      %v3176 = vpop.f32.mrb[0].mxu0
      %3177 = vmatprep.mubr.bf16.mxu0 %v2867
      %3178 = vmatmul.mubr.bf16.gmra.mrb[0].mxu0 %v2866
      %v3179 = vpop.f32.mrb[0].mxu0
      %v3180 = vadd.f32 %v3019, %v3179
      %v3181 = vpop.f32.mrb[0].mxu0
      %v3182 = vpop.f32.mrb[0].mxu0
      %v3183 = vadd.f32 %v3022, %v3182
      %v3184 = vpop.f32.mrb[0].mxu0
      %3185 = vmatprep.mubr.bf16.mxu0 %v2871
      %3186 = vmatmul.mubr.bf16.gmra.mrb[0].mxu0 %v2870
      %v3187 = vpop.f32.mrb[0].mxu0
      %v3188 = vadd.f32 %v3027, %v3187
      %v3189 = vpop.f32.mrb[0].mxu0
      %v3190 = vpop.f32.mrb[0].mxu0
      %v3191 = vadd.f32 %v3030, %v3190
      %v3192 = vpop.f32.mrb[0].mxu0
      %3193 = vdwg.mxu0
      %v3194 = vadd.f32 %v2776, %v3068
      %v3195 = vadd.f32 %v2777, %v3071
      %v3196 = vadd.f32 %v2778, %v3076
      %v3197 = vadd.f32 %v2779, %v3079
      %v3198 = vadd.f32 %v2780, %v3084
      %v3199 = vadd.f32 %v2781, %v3087
      %v3200 = vadd.f32 %v2782, %v3092
      %v3201 = vadd.f32 %v2783, %v3095
      %v3202 = vadd.f32 %v2784, %v3100
      %v3203 = vadd.f32 %v2785, %v3103
      %v3204 = vadd.f32 %v2786, %v3108
      %v3205 = vadd.f32 %v2787, %v3111
      %v3206 = vadd.f32 %v2788, %v3116
      %v3207 = vadd.f32 %v2789, %v3119
      %v3208 = vadd.f32 %v2790, %v3124
      %v3209 = vadd.f32 %v2791, %v3127
      %v3210 = vadd.f32 %v2792, %v3132
      %v3211 = vadd.f32 %v2793, %v3135
      %v3212 = vadd.f32 %v2794, %v3140
      %v3213 = vadd.f32 %v2795, %v3143
      %v3214 = vadd.f32 %v2796, %v3148
      %v3215 = vadd.f32 %v2797, %v3151
      %v3216 = vadd.f32 %v2798, %v3156
      %v3217 = vadd.f32 %v2799, %v3159
      %v3218 = vadd.f32 %v2800, %v3164
      %v3219 = vadd.f32 %v2801, %v3167
      %v3220 = vadd.f32 %v2802, %v3172
      %v3221 = vadd.f32 %v2803, %v3175
      %v3222 = vadd.f32 %v2804, %v3180
      %v3223 = vadd.f32 %v2805, %v3183
      %v3224 = vadd.f32 %v2806, %v3188
      %v3225 = vadd.f32 %v2807, %v3191
      %3226 = vst [vmem:[#allocation5] sm:$0xff] %v3194
      %3227 = vst [vmem:[#allocation5 + $0x8] sm:$0xff] %v3195
      %3228 = vst [vmem:[#allocation5 + $0x10] sm:$0xff] %v3196
      %3229 = vst [vmem:[#allocation5 + $0x18] sm:$0xff] %v3197
      %3230 = vst [vmem:[#allocation5 + $0x20] sm:$0xff] %v3198
      %3231 = vst [vmem:[#allocation5 + $0x28] sm:$0xff] %v3199
      %3232 = vst [vmem:[#allocation5 + $0x30] sm:$0xff] %v3200
      %3233 = vst [vmem:[#allocation5 + $0x38] sm:$0xff] %v3201
      %3234 = vst [vmem:[#allocation5 + $0x40] sm:$0xff] %v3202
      %3235 = vst [vmem:[#allocation5 + $0x48] sm:$0xff] %v3203
      %3236 = vst [vmem:[#allocation5 + $0x50] sm:$0xff] %v3204
      %3237 = vst [vmem:[#allocation5 + $0x58] sm:$0xff] %v3205
      %3238 = vst [vmem:[#allocation5 + $0x60] sm:$0xff] %v3206
      %3239 = vst [vmem:[#allocation5 + $0x68] sm:$0xff] %v3207
      %3240 = vst [vmem:[#allocation5 + $0x70] sm:$0xff] %v3208
      %3241 = vst [vmem:[#allocation5 + $0x78] sm:$0xff] %v3209
      %3242 = vst [vmem:[#allocation5 + $0x80] sm:$0xff] %v3210
      %3243 = vst [vmem:[#allocation5 + $0x88] sm:$0xff] %v3211
      %3244 = vst [vmem:[#allocation5 + $0x90] sm:$0xff] %v3212
      %3245 = vst [vmem:[#allocation5 + $0x98] sm:$0xff] %v3213
      %3246 = vst [vmem:[#allocation5 + $0xa0] sm:$0xff] %v3214
      %3247 = vst [vmem:[#allocation5 + $0xa8] sm:$0xff] %v3215
      %3248 = vst [vmem:[#allocation5 + $0xb0] sm:$0xff] %v3216
      %3249 = vst [vmem:[#allocation5 + $0xb8] sm:$0xff] %v3217
      %3250 = vst [vmem:[#allocation5 + $0xc0] sm:$0xff] %v3218
      %3251 = vst [vmem:[#allocation5 + $0xc8] sm:$0xff] %v3219
      %3252 = vst [vmem:[#allocation5 + $0xd0] sm:$0xff] %v3220
      %3253 = vst [vmem:[#allocation5 + $0xd8] sm:$0xff] %v3221
      %3254 = vst [vmem:[#allocation5 + $0xe0] sm:$0xff] %v3222
      %3255 = vst [vmem:[#allocation5 + $0xe8] sm:$0xff] %v3223
      %3256 = vst [vmem:[#allocation5 + $0xf0] sm:$0xff] %v3224
      %3257 = vst [vmem:[#allocation5 + $0xf8] sm:$0xff] %v3225
      %3258 = vst.msk [vmem:[#allocation3] sm:$0xff] %vm2551, %v1623
      %3259 = vst.msk [vmem:[#allocation3 + $0x8] sm:$0xff] %vm2551, %v1624
      %3260 = vst.msk [vmem:[#allocation3 + $0x10] sm:$0xff] %vm2551, %v1625
      %3261 = vst.msk [vmem:[#allocation3 + $0x18] sm:$0xff] %vm2551, %v1626
      %3262 = vst.msk [vmem:[#allocation3 + $0x20] sm:$0xff] %vm2551, %v1627
      %3263 = vst.msk [vmem:[#allocation3 + $0x28] sm:$0xff] %vm2551, %v1628
      %3264 = vst.msk [vmem:[#allocation3 + $0x30] sm:$0xff] %vm2551, %v1629
      %3265 = vst.msk [vmem:[#allocation3 + $0x38] sm:$0xff] %vm2551, %v1630
      %3266 = vst.msk [vmem:[#allocation3 + $0x40] sm:$0xff] %vm2551, %v1631
      %3267 = vst.msk [vmem:[#allocation3 + $0x48] sm:$0xff] %vm2551, %v1632
      %3268 = vst.msk [vmem:[#allocation3 + $0x50] sm:$0xff] %vm2551, %v1633
      %3269 = vst.msk [vmem:[#allocation3 + $0x58] sm:$0xff] %vm2551, %v1634
      %3270 = vst.msk [vmem:[#allocation3 + $0x60] sm:$0xff] %vm2551, %v1635
      %3271 = vst.msk [vmem:[#allocation3 + $0x68] sm:$0xff] %vm2551, %v1636
      %3272 = vst.msk [vmem:[#allocation3 + $0x70] sm:$0xff] %vm2551, %v1637
      %3273 = vst.msk [vmem:[#allocation3 + $0x78] sm:$0xff] %vm2551, %v1638
      %3274 = vst.msk [vmem:[#allocation3 + $0x80] sm:$0xff] %vm2551, %v1639
      %3275 = vst.msk [vmem:[#allocation3 + $0x88] sm:$0xff] %vm2551, %v1640
      %3276 = vst.msk [vmem:[#allocation3 + $0x90] sm:$0xff] %vm2551, %v1641
      %3277 = vst.msk [vmem:[#allocation3 + $0x98] sm:$0xff] %vm2551, %v1642
      %3278 = vst.msk [vmem:[#allocation3 + $0xa0] sm:$0xff] %vm2551, %v1643
      %3279 = vst.msk [vmem:[#allocation3 + $0xa8] sm:$0xff] %vm2551, %v1644
      %3280 = vst.msk [vmem:[#allocation3 + $0xb0] sm:$0xff] %vm2551, %v1645
      %3281 = vst.msk [vmem:[#allocation3 + $0xb8] sm:$0xff] %vm2551, %v1646
      %3282 = vst.msk [vmem:[#allocation3 + $0xc0] sm:$0xff] %vm2551, %v1647
      %3283 = vst.msk [vmem:[#allocation3 + $0xc8] sm:$0xff] %vm2551, %v1648
      %3284 = vst.msk [vmem:[#allocation3 + $0xd0] sm:$0xff] %vm2551, %v1649
      %3285 = vst.msk [vmem:[#allocation3 + $0xd8] sm:$0xff] %vm2551, %v1650
      %3286 = vst.msk [vmem:[#allocation3 + $0xe0] sm:$0xff] %vm2551, %v1651
      %3287 = vst.msk [vmem:[#allocation3 + $0xe8] sm:$0xff] %vm2551, %v1652
      %3288 = vst.msk [vmem:[#allocation3 + $0xf0] sm:$0xff] %vm2551, %v1653
      %3289 = vst.msk [vmem:[#allocation3 + $0xf8] sm:$0xff] %vm2551, %v1654
      %p3290 = scmp.eq.s32.totalorder %s24, 1
      // Predicated region
      $region49: #{_level_forward.1} parent=43 // pred_check
        %p3291 = pneg %p3290
      $region50: #{_level_forward.1} parent=43 // pred_check_branch
        %3293 = sbr.rel (%p3291) target = $region52
      $region51: #{_level_forward.1} parent=43 // pred_region
        %v3294 = vld [vmem:[#allocation5] sm:$0xff]
        %v3295 = vld [vmem:[#allocation5 + $0x8] sm:$0xff]
        %v3296 = vld [vmem:[#allocation5 + $0x10] sm:$0xff]
        %v3297 = vld [vmem:[#allocation5 + $0x18] sm:$0xff]
        %v3298 = vld [vmem:[#allocation5 + $0x20] sm:$0xff]
        %v3299 = vld [vmem:[#allocation5 + $0x28] sm:$0xff]
        %v3300 = vld [vmem:[#allocation5 + $0x30] sm:$0xff]
        %v3301 = vld [vmem:[#allocation5 + $0x38] sm:$0xff]
        %v3302 = vld [vmem:[#allocation5 + $0x40] sm:$0xff]
        %v3303 = vld [vmem:[#allocation5 + $0x48] sm:$0xff]
        %v3304 = vld [vmem:[#allocation5 + $0x50] sm:$0xff]
        %v3305 = vld [vmem:[#allocation5 + $0x58] sm:$0xff]
        %v3306 = vld [vmem:[#allocation5 + $0x60] sm:$0xff]
        %v3307 = vld [vmem:[#allocation5 + $0x68] sm:$0xff]
        %v3308 = vld [vmem:[#allocation5 + $0x70] sm:$0xff]
        %v3309 = vld [vmem:[#allocation5 + $0x78] sm:$0xff]
        %v3310 = vld [vmem:[#allocation5 + $0x80] sm:$0xff]
        %v3311 = vld [vmem:[#allocation5 + $0x88] sm:$0xff]
        %v3312 = vld [vmem:[#allocation5 + $0x90] sm:$0xff]
        %v3313 = vld [vmem:[#allocation5 + $0x98] sm:$0xff]
        %v3314 = vld [vmem:[#allocation5 + $0xa0] sm:$0xff]
        %v3315 = vld [vmem:[#allocation5 + $0xa8] sm:$0xff]
        %v3316 = vld [vmem:[#allocation5 + $0xb0] sm:$0xff]
        %v3317 = vld [vmem:[#allocation5 + $0xb8] sm:$0xff]
        %v3318 = vld [vmem:[#allocation5 + $0xc0] sm:$0xff]
        %v3319 = vld [vmem:[#allocation5 + $0xc8] sm:$0xff]
        %v3320 = vld [vmem:[#allocation5 + $0xd0] sm:$0xff]
        %v3321 = vld [vmem:[#allocation5 + $0xd8] sm:$0xff]
        %v3322 = vld [vmem:[#allocation5 + $0xe0] sm:$0xff]
        %v3323 = vld [vmem:[#allocation5 + $0xe8] sm:$0xff]
        %v3324 = vld [vmem:[#allocation5 + $0xf0] sm:$0xff]
        %v3325 = vld [vmem:[#allocation5 + $0xf8] sm:$0xff]
        %v3326 = vld [vmem:[#allocation4] sm:$0xff]
        %v3327 = vld [vmem:[#allocation4 + $0x8] sm:$0xff]
        %v3328 = vld [vmem:[#allocation4 + $0x10] sm:$0xff]
        %v3329 = vld [vmem:[#allocation4 + $0x18] sm:$0xff]
        %v3330 = vld [vmem:[#allocation4 + $0x20] sm:$0xff]
        %v3331 = vld [vmem:[#allocation4 + $0x28] sm:$0xff]
        %v3332 = vld [vmem:[#allocation4 + $0x30] sm:$0xff]
        %v3333 = vld [vmem:[#allocation4 + $0x38] sm:$0xff]
        %v3334 = vld [vmem:[#allocation4 + $0x40] sm:$0xff]
        %v3335 = vld [vmem:[#allocation4 + $0x48] sm:$0xff]
        %v3336 = vld [vmem:[#allocation4 + $0x50] sm:$0xff]
        %v3337 = vld [vmem:[#allocation4 + $0x58] sm:$0xff]
        %v3338 = vld [vmem:[#allocation4 + $0x60] sm:$0xff]
        %v3339 = vld [vmem:[#allocation4 + $0x68] sm:$0xff]
        %v3340 = vld [vmem:[#allocation4 + $0x70] sm:$0xff]
        %v3341 = vld [vmem:[#allocation4 + $0x78] sm:$0xff]
        %v3342 = vld [vmem:[#allocation4 + $0x80] sm:$0xff]
        %v3343 = vld [vmem:[#allocation4 + $0x88] sm:$0xff]
        %v3344 = vld [vmem:[#allocation4 + $0x90] sm:$0xff]
        %v3345 = vld [vmem:[#allocation4 + $0x98] sm:$0xff]
        %v3346 = vld [vmem:[#allocation4 + $0xa0] sm:$0xff]
        %v3347 = vld [vmem:[#allocation4 + $0xa8] sm:$0xff]
        %v3348 = vld [vmem:[#allocation4 + $0xb0] sm:$0xff]
        %v3349 = vld [vmem:[#allocation4 + $0xb8] sm:$0xff]
        %v3350 = vld [vmem:[#allocation4 + $0xc0] sm:$0xff]
        %v3351 = vld [vmem:[#allocation4 + $0xc8] sm:$0xff]
        %v3352 = vld [vmem:[#allocation4 + $0xd0] sm:$0xff]
        %v3353 = vld [vmem:[#allocation4 + $0xd8] sm:$0xff]
        %v3354 = vld [vmem:[#allocation4 + $0xe0] sm:$0xff]
        %v3355 = vld [vmem:[#allocation4 + $0xe8] sm:$0xff]
        %v3356 = vld [vmem:[#allocation4 + $0xf0] sm:$0xff]
        %v3357 = vld [vmem:[#allocation4 + $0xf8] sm:$0xff]
        %3359 = vset.pattern.permute.xlu0 0
        %3360 = vperm.xlu0 %3359, %v3326
        %v3361 = vpop.permute.xlu0 %3360
        %3364 = vset.pattern.permute.xlu0 0
        %3365 = vperm.xlu0 %3364, %v3327
        %v3366 = vpop.permute.xlu0 %3365
        %3369 = vset.pattern.permute.xlu0 0
        %3370 = vperm.xlu0 %3369, %v3328
        %v3371 = vpop.permute.xlu0 %3370
        %3374 = vset.pattern.permute.xlu0 0
        %3375 = vperm.xlu0 %3374, %v3329
        %v3376 = vpop.permute.xlu0 %3375
        %3379 = vset.pattern.permute.xlu0 0
        %3380 = vperm.xlu0 %3379, %v3330
        %v3381 = vpop.permute.xlu0 %3380
        %3384 = vset.pattern.permute.xlu0 0
        %3385 = vperm.xlu0 %3384, %v3331
        %v3386 = vpop.permute.xlu0 %3385
        %3389 = vset.pattern.permute.xlu0 0
        %3390 = vperm.xlu0 %3389, %v3332
        %v3391 = vpop.permute.xlu0 %3390
        %3394 = vset.pattern.permute.xlu0 0
        %3395 = vperm.xlu0 %3394, %v3333
        %v3396 = vpop.permute.xlu0 %3395
        %3399 = vset.pattern.permute.xlu0 0
        %3400 = vperm.xlu0 %3399, %v3334
        %v3401 = vpop.permute.xlu0 %3400
        %3404 = vset.pattern.permute.xlu0 0
        %3405 = vperm.xlu0 %3404, %v3335
        %v3406 = vpop.permute.xlu0 %3405
        %3409 = vset.pattern.permute.xlu0 0
        %3410 = vperm.xlu0 %3409, %v3336
        %v3411 = vpop.permute.xlu0 %3410
        %3414 = vset.pattern.permute.xlu0 0
        %3415 = vperm.xlu0 %3414, %v3337
        %v3416 = vpop.permute.xlu0 %3415
        %3419 = vset.pattern.permute.xlu0 0
        %3420 = vperm.xlu0 %3419, %v3338
        %v3421 = vpop.permute.xlu0 %3420
        %3424 = vset.pattern.permute.xlu0 0
        %3425 = vperm.xlu0 %3424, %v3339
        %v3426 = vpop.permute.xlu0 %3425
        %3429 = vset.pattern.permute.xlu0 0
        %3430 = vperm.xlu0 %3429, %v3340
        %v3431 = vpop.permute.xlu0 %3430
        %3434 = vset.pattern.permute.xlu0 0
        %3435 = vperm.xlu0 %3434, %v3341
        %v3436 = vpop.permute.xlu0 %3435
        %3439 = vset.pattern.permute.xlu0 0
        %3440 = vperm.xlu0 %3439, %v3342
        %v3441 = vpop.permute.xlu0 %3440
        %3444 = vset.pattern.permute.xlu0 0
        %3445 = vperm.xlu0 %3444, %v3343
        %v3446 = vpop.permute.xlu0 %3445
        %3449 = vset.pattern.permute.xlu0 0
        %3450 = vperm.xlu0 %3449, %v3344
        %v3451 = vpop.permute.xlu0 %3450
        %3454 = vset.pattern.permute.xlu0 0
        %3455 = vperm.xlu0 %3454, %v3345
        %v3456 = vpop.permute.xlu0 %3455
        %3459 = vset.pattern.permute.xlu0 0
        %3460 = vperm.xlu0 %3459, %v3346
        %v3461 = vpop.permute.xlu0 %3460
        %3464 = vset.pattern.permute.xlu0 0
        %3465 = vperm.xlu0 %3464, %v3347
        %v3466 = vpop.permute.xlu0 %3465
        %3469 = vset.pattern.permute.xlu0 0
        %3470 = vperm.xlu0 %3469, %v3348
        %v3471 = vpop.permute.xlu0 %3470
        %3474 = vset.pattern.permute.xlu0 0
        %3475 = vperm.xlu0 %3474, %v3349
        %v3476 = vpop.permute.xlu0 %3475
        %3479 = vset.pattern.permute.xlu0 0
        %3480 = vperm.xlu0 %3479, %v3350
        %v3481 = vpop.permute.xlu0 %3480
        %3484 = vset.pattern.permute.xlu0 0
        %3485 = vperm.xlu0 %3484, %v3351
        %v3486 = vpop.permute.xlu0 %3485
        %3489 = vset.pattern.permute.xlu0 0
        %3490 = vperm.xlu0 %3489, %v3352
        %v3491 = vpop.permute.xlu0 %3490
        %3494 = vset.pattern.permute.xlu0 0
        %3495 = vperm.xlu0 %3494, %v3353
        %v3496 = vpop.permute.xlu0 %3495
        %3499 = vset.pattern.permute.xlu0 0
        %3500 = vperm.xlu0 %3499, %v3354
        %v3501 = vpop.permute.xlu0 %3500
        %3504 = vset.pattern.permute.xlu0 0
        %3505 = vperm.xlu0 %3504, %v3355
        %v3506 = vpop.permute.xlu0 %3505
        %3509 = vset.pattern.permute.xlu0 0
        %3510 = vperm.xlu0 %3509, %v3356
        %v3511 = vpop.permute.xlu0 %3510
        %3514 = vset.pattern.permute.xlu0 0
        %3515 = vperm.xlu0 %3514, %v3357
        %v3516 = vpop.permute.xlu0 %3515
        %v3518 = vrcp.pop %v3361
        %v3519 = vmul.f32 %v3294, %v3518
        %v3520 = vrcp.pop %v3366
        %v3521 = vmul.f32 %v3295, %v3520
        %v3522 = vrcp.pop %v3371
        %v3523 = vmul.f32 %v3296, %v3522
        %v3524 = vrcp.pop %v3376
        %v3525 = vmul.f32 %v3297, %v3524
        %v3526 = vrcp.pop %v3381
        %v3527 = vmul.f32 %v3298, %v3526
        %v3528 = vrcp.pop %v3386
        %v3529 = vmul.f32 %v3299, %v3528
        %v3530 = vrcp.pop %v3391
        %v3531 = vmul.f32 %v3300, %v3530
        %v3532 = vrcp.pop %v3396
        %v3533 = vmul.f32 %v3301, %v3532
        %v3534 = vrcp.pop %v3401
        %v3535 = vmul.f32 %v3302, %v3534
        %v3536 = vrcp.pop %v3406
        %v3537 = vmul.f32 %v3303, %v3536
        %v3538 = vrcp.pop %v3411
        %v3539 = vmul.f32 %v3304, %v3538
        %v3540 = vrcp.pop %v3416
        %v3541 = vmul.f32 %v3305, %v3540
        %v3542 = vrcp.pop %v3421
        %v3543 = vmul.f32 %v3306, %v3542
        %v3544 = vrcp.pop %v3426
        %v3545 = vmul.f32 %v3307, %v3544
        %v3546 = vrcp.pop %v3431
        %v3547 = vmul.f32 %v3308, %v3546
        %v3548 = vrcp.pop %v3436
        %v3549 = vmul.f32 %v3309, %v3548
        %v3550 = vrcp.pop %v3441
        %v3551 = vmul.f32 %v3310, %v3550
        %v3552 = vrcp.pop %v3446
        %v3553 = vmul.f32 %v3311, %v3552
        %v3554 = vrcp.pop %v3451
        %v3555 = vmul.f32 %v3312, %v3554
        %v3556 = vrcp.pop %v3456
        %v3557 = vmul.f32 %v3313, %v3556
        %v3558 = vrcp.pop %v3461
        %v3559 = vmul.f32 %v3314, %v3558
        %v3560 = vrcp.pop %v3466
        %v3561 = vmul.f32 %v3315, %v3560
        %v3562 = vrcp.pop %v3471
        %v3563 = vmul.f32 %v3316, %v3562
        %v3564 = vrcp.pop %v3476
        %v3565 = vmul.f32 %v3317, %v3564
        %v3566 = vrcp.pop %v3481
        %v3567 = vmul.f32 %v3318, %v3566
        %v3568 = vrcp.pop %v3486
        %v3569 = vmul.f32 %v3319, %v3568
        %v3570 = vrcp.pop %v3491
        %v3571 = vmul.f32 %v3320, %v3570
        %v3572 = vrcp.pop %v3496
        %v3573 = vmul.f32 %v3321, %v3572
        %v3574 = vrcp.pop %v3501
        %v3575 = vmul.f32 %v3322, %v3574
        %v3576 = vrcp.pop %v3506
        %v3577 = vmul.f32 %v3323, %v3576
        %v3578 = vrcp.pop %v3511
        %v3579 = vmul.f32 %v3324, %v3578
        %v3580 = vrcp.pop %v3516
        %v3581 = vmul.f32 %v3325, %v3580
        %v3582 = vpack.c.bf16 %v3521, %v3519
        %v3583 = vpack.c.bf16 %v3525, %v3523
        %v3584 = vpack.c.bf16 %v3529, %v3527
        %v3585 = vpack.c.bf16 %v3533, %v3531
        %v3586 = vpack.c.bf16 %v3537, %v3535
        %v3587 = vpack.c.bf16 %v3541, %v3539
        %v3588 = vpack.c.bf16 %v3545, %v3543
        %v3589 = vpack.c.bf16 %v3549, %v3547
        %v3590 = vpack.c.bf16 %v3553, %v3551
        %v3591 = vpack.c.bf16 %v3557, %v3555
        %v3592 = vpack.c.bf16 %v3561, %v3559
        %v3593 = vpack.c.bf16 %v3565, %v3563
        %v3594 = vpack.c.bf16 %v3569, %v3567
        %v3595 = vpack.c.bf16 %v3573, %v3571
        %v3596 = vpack.c.bf16 %v3577, %v3575
        %v3597 = vpack.c.bf16 %v3581, %v3579
        %v3598 = vld [vmem:[%s3] sm:$0xf]
        %v3599 = vld [vmem:[%s3 + $0x4] sm:$0xf]
        %v3600 = vld [vmem:[%s3 + $0x8] sm:$0xf]
        %v3601 = vld [vmem:[%s3 + $0xc] sm:$0xf]
        %v3602 = vld [vmem:[%s3 + $0x10] sm:$0xf]
        %v3603 = vld [vmem:[%s3 + $0x14] sm:$0xf]
        %v3604 = vld [vmem:[%s3 + $0x18] sm:$0xf]
        %v3605 = vld [vmem:[%s3 + $0x1c] sm:$0xf]
        %v3606 = vld [vmem:[%s3 + $0x20] sm:$0xf]
        %v3607 = vld [vmem:[%s3 + $0x24] sm:$0xf]
        %v3608 = vld [vmem:[%s3 + $0x28] sm:$0xf]
        %v3609 = vld [vmem:[%s3 + $0x2c] sm:$0xf]
        %v3610 = vld [vmem:[%s3 + $0x30] sm:$0xf]
        %v3611 = vld [vmem:[%s3 + $0x34] sm:$0xf]
        %v3612 = vld [vmem:[%s3 + $0x38] sm:$0xf]
        %v3613 = vld [vmem:[%s3 + $0x3c] sm:$0xf]
        %v3614 = vld [vmem:[%s312] sm:$0xf]
        %v3615 = vld [vmem:[%s312 + $0x4] sm:$0xf]
        %v3616 = vld [vmem:[%s312 + $0x8] sm:$0xf]
        %v3617 = vld [vmem:[%s312 + $0xc] sm:$0xf]
        %v3618 = vld [vmem:[%s312 + $0x10] sm:$0xf]
        %v3619 = vld [vmem:[%s312 + $0x14] sm:$0xf]
        %v3620 = vld [vmem:[%s312 + $0x18] sm:$0xf]
        %v3621 = vld [vmem:[%s312 + $0x1c] sm:$0xf]
        %v3622 = vld [vmem:[%s312 + $0x20] sm:$0xf]
        %v3623 = vld [vmem:[%s312 + $0x24] sm:$0xf]
        %v3624 = vld [vmem:[%s312 + $0x28] sm:$0xf]
        %v3625 = vld [vmem:[%s312 + $0x2c] sm:$0xf]
        %v3626 = vld [vmem:[%s312 + $0x30] sm:$0xf]
        %v3627 = vld [vmem:[%s312 + $0x34] sm:$0xf]
        %v3628 = vld [vmem:[%s312 + $0x38] sm:$0xf]
        %v3629 = vld [vmem:[%s312 + $0x3c] sm:$0xf]
        %v3630 = vld [vmem:[%s312 + $0x40] sm:$0xf]
        %v3631 = vld [vmem:[%s312 + $0x44] sm:$0xf]
        %v3632 = vld [vmem:[%s312 + $0x48] sm:$0xf]
        %v3633 = vld [vmem:[%s312 + $0x4c] sm:$0xf]
        %v3634 = vld [vmem:[%s312 + $0x50] sm:$0xf]
        %v3635 = vld [vmem:[%s312 + $0x54] sm:$0xf]
        %v3636 = vld [vmem:[%s312 + $0x58] sm:$0xf]
        %v3637 = vld [vmem:[%s312 + $0x5c] sm:$0xf]
        %v3638 = vld [vmem:[%s312 + $0x60] sm:$0xf]
        %v3639 = vld [vmem:[%s312 + $0x64] sm:$0xf]
        %v3640 = vld [vmem:[%s312 + $0x68] sm:$0xf]
        %v3641 = vld [vmem:[%s312 + $0x6c] sm:$0xf]
        %v3642 = vld [vmem:[%s312 + $0x70] sm:$0xf]
        %v3643 = vld [vmem:[%s312 + $0x74] sm:$0xf]
        %v3644 = vld [vmem:[%s312 + $0x78] sm:$0xf]
        %v3645 = vld [vmem:[%s312 + $0x7c] sm:$0xf]
        %v3646 = vunpack.c.l.bf16 %v3614
        %v3647 = vunpack.c.l.bf16 %v3615
        %v3648 = vunpack.c.l.bf16 %v3616
        %v3649 = vunpack.c.l.bf16 %v3617
        %v3650 = vunpack.c.l.bf16 %v3618
        %v3651 = vunpack.c.l.bf16 %v3619
        %v3652 = vunpack.c.l.bf16 %v3620
        %v3653 = vunpack.c.l.bf16 %v3621
        %v3654 = vunpack.c.l.bf16 %v3622
        %v3655 = vunpack.c.l.bf16 %v3623
        %v3656 = vunpack.c.l.bf16 %v3624
        %v3657 = vunpack.c.l.bf16 %v3625
        %v3658 = vunpack.c.l.bf16 %v3626
        %v3659 = vunpack.c.l.bf16 %v3627
        %v3660 = vunpack.c.l.bf16 %v3628
        %v3661 = vunpack.c.l.bf16 %v3629
        %v3662 = vunpack.c.l.bf16 %v3630
        %v3663 = vunpack.c.l.bf16 %v3631
        %v3664 = vunpack.c.l.bf16 %v3632
        %v3665 = vunpack.c.l.bf16 %v3633
        %v3666 = vunpack.c.l.bf16 %v3634
        %v3667 = vunpack.c.l.bf16 %v3635
        %v3668 = vunpack.c.l.bf16 %v3636
        %v3669 = vunpack.c.l.bf16 %v3637
        %v3670 = vunpack.c.l.bf16 %v3638
        %v3671 = vunpack.c.l.bf16 %v3639
        %v3672 = vunpack.c.l.bf16 %v3640
        %v3673 = vunpack.c.l.bf16 %v3641
        %v3674 = vunpack.c.l.bf16 %v3642
        %v3675 = vunpack.c.l.bf16 %v3643
        %v3676 = vunpack.c.l.bf16 %v3644
        %v3677 = vunpack.c.l.bf16 %v3645
        %v3694 = vunpack.c.l.b16 %v3598
        %v3695 = vunpack.c.l.b16 %v3599
        %v3696 = vunpack.c.l.b16 %v3600
        %v3697 = vunpack.c.l.b16 %v3601
        %v3698 = vunpack.c.l.b16 %v3602
        %v3699 = vunpack.c.l.b16 %v3603
        %v3700 = vunpack.c.l.b16 %v3604
        %v3701 = vunpack.c.l.b16 %v3605
        %v3702 = vunpack.c.l.b16 %v3606
        %v3703 = vunpack.c.l.b16 %v3607
        %v3704 = vunpack.c.l.b16 %v3608
        %v3705 = vunpack.c.l.b16 %v3609
        %v3706 = vunpack.c.l.b16 %v3610
        %v3707 = vunpack.c.l.b16 %v3611
        %v3708 = vunpack.c.l.b16 %v3612
        %v3709 = vunpack.c.l.b16 %v3613
        %v3710 = vpack.c.b16 %v3695, %v3694
        %v3711 = vpack.c.b16 %v3697, %v3696
        %v3712 = vpack.c.b16 %v3699, %v3698
        %v3713 = vpack.c.b16 %v3701, %v3700
        %v3714 = vpack.c.b16 %v3703, %v3702
        %v3715 = vpack.c.b16 %v3705, %v3704
        %v3716 = vpack.c.b16 %v3707, %v3706
        %v3717 = vpack.c.b16 %v3709, %v3708
        %3726 = vmatprep.subr.bf16.mxu0 0
        %3727 = vmatpush1.bf16.msra.mxu0 %v3710
        %3728 = vmatprep.subr.bf16.mxu0 0
        %3729 = vmatpush1.bf16.msra.mxu0 %v3711
        %3730 = vmatprep.subr.bf16.mxu0 0
        %3731 = vmatpush1.bf16.msra.mxu0 %v3712
        %3732 = vmatprep.subr.bf16.mxu0 0
        %3733 = vmatpush1.bf16.msra.mxu0 %v3713
        %3734 = vmatprep.subr.bf16.mxu0 0
        %3735 = vmatpush1.bf16.msra.mxu0 %v3714
        %3736 = vmatprep.subr.bf16.mxu0 0
        %3737 = vmatpush1.bf16.msra.mxu0 %v3715
        %3738 = vmatprep.subr.bf16.mxu0 0
        %3739 = vmatpush1.bf16.msra.mxu0 %v3716
        %3740 = vmatprep.subr.bf16.mxu0 0
        %3741 = vmatpush1.bf16.msra.mxu0 %v3717
        %3742 = vmatprep.subr.bf16.mxu0 0
        %3743 = vmatpush1.bf16.msra.mxu0 0
        %3744 = vmatprep.subr.bf16.mxu0 0
        %3745 = vmatpush1.bf16.msra.mxu0 0
        %3746 = vmatprep.subr.bf16.mxu0 0
        %3747 = vmatpush1.bf16.msra.mxu0 0
        %3748 = vmatprep.subr.bf16.mxu0 0
        %3749 = vmatpush1.bf16.msra.mxu0 0
        %3750 = vmatprep.subr.bf16.mxu0 0
        %3751 = vmatpush1.bf16.msra.mxu0 0
        %3752 = vmatprep.subr.bf16.mxu0 0
        %3753 = vmatpush1.bf16.msra.mxu0 0
        %3754 = vmatprep.subr.bf16.mxu0 0
        %3755 = vmatpush1.bf16.msra.mxu0 0
        %3756 = vmatprep.subr.bf16.mxu0 0
        %3757 = vmatpush1.bf16.msra.mxu0 0
        %3758 = vmatprep.mubr.bf16.mxu0 0
        %3759 = vmatmul.mubr.bf16.gmra.mrb[0].mxu0 %v3582
        %v3760 = vpop.f32.mrb[0].mxu0
        %v3761 = vadd.f32 %v3646, %v3760
        %v3762 = vpop.f32.mrb[0].mxu0
        %v3763 = vpop.f32.mrb[0].mxu0
        %v3764 = vadd.f32 %v3647, %v3763
        %v3765 = vpop.f32.mrb[0].mxu0
        %3766 = vmatprep.mubr.bf16.mxu0 0
        %3767 = vmatmul.mubr.bf16.gmra.mrb[0].mxu0 %v3583
        %v3768 = vpop.f32.mrb[0].mxu0
        %v3769 = vadd.f32 %v3648, %v3768
        %v3770 = vpop.f32.mrb[0].mxu0
        %v3771 = vpop.f32.mrb[0].mxu0
        %v3772 = vadd.f32 %v3649, %v3771
        %v3773 = vpop.f32.mrb[0].mxu0
        %3774 = vmatprep.mubr.bf16.mxu0 0
        %3775 = vmatmul.mubr.bf16.gmra.mrb[0].mxu0 %v3584
        %v3776 = vpop.f32.mrb[0].mxu0
        %v3777 = vadd.f32 %v3650, %v3776
        %v3778 = vpop.f32.mrb[0].mxu0
        %v3779 = vpop.f32.mrb[0].mxu0
        %v3780 = vadd.f32 %v3651, %v3779
        %v3781 = vpop.f32.mrb[0].mxu0
        %3782 = vmatprep.mubr.bf16.mxu0 0
        %3783 = vmatmul.mubr.bf16.gmra.mrb[0].mxu0 %v3585
        %v3784 = vpop.f32.mrb[0].mxu0
        %v3785 = vadd.f32 %v3652, %v3784
        %v3786 = vpop.f32.mrb[0].mxu0
        %v3787 = vpop.f32.mrb[0].mxu0
        %v3788 = vadd.f32 %v3653, %v3787
        %v3789 = vpop.f32.mrb[0].mxu0
        %3790 = vmatprep.mubr.bf16.mxu0 0
        %3791 = vmatmul.mubr.bf16.gmra.mrb[0].mxu0 %v3586
        %v3792 = vpop.f32.mrb[0].mxu0
        %v3793 = vadd.f32 %v3654, %v3792
        %v3794 = vpop.f32.mrb[0].mxu0
        %v3795 = vpop.f32.mrb[0].mxu0
        %v3796 = vadd.f32 %v3655, %v3795
        %v3797 = vpop.f32.mrb[0].mxu0
        %3798 = vmatprep.mubr.bf16.mxu0 0
        %3799 = vmatmul.mubr.bf16.gmra.mrb[0].mxu0 %v3587
        %v3800 = vpop.f32.mrb[0].mxu0
        %v3801 = vadd.f32 %v3656, %v3800
        %v3802 = vpop.f32.mrb[0].mxu0
        %v3803 = vpop.f32.mrb[0].mxu0
        %v3804 = vadd.f32 %v3657, %v3803
        %v3805 = vpop.f32.mrb[0].mxu0
        %3806 = vmatprep.mubr.bf16.mxu0 0
        %3807 = vmatmul.mubr.bf16.gmra.mrb[0].mxu0 %v3588
        %v3808 = vpop.f32.mrb[0].mxu0
        %v3809 = vadd.f32 %v3658, %v3808
        %v3810 = vpop.f32.mrb[0].mxu0
        %v3811 = vpop.f32.mrb[0].mxu0
        %v3812 = vadd.f32 %v3659, %v3811
        %v3813 = vpop.f32.mrb[0].mxu0
        %3814 = vmatprep.mubr.bf16.mxu0 0
        %3815 = vmatmul.mubr.bf16.gmra.mrb[0].mxu0 %v3589
        %v3816 = vpop.f32.mrb[0].mxu0
        %v3817 = vadd.f32 %v3660, %v3816
        %v3818 = vpop.f32.mrb[0].mxu0
        %v3819 = vpop.f32.mrb[0].mxu0
        %v3820 = vadd.f32 %v3661, %v3819
        %v3821 = vpop.f32.mrb[0].mxu0
        %3822 = vmatprep.mubr.bf16.mxu0 0
        %3823 = vmatmul.mubr.bf16.gmra.mrb[0].mxu0 %v3590
        %v3824 = vpop.f32.mrb[0].mxu0
        %v3825 = vadd.f32 %v3662, %v3824
        %v3826 = vpop.f32.mrb[0].mxu0
        %v3827 = vpop.f32.mrb[0].mxu0
        %v3828 = vadd.f32 %v3663, %v3827
        %v3829 = vpop.f32.mrb[0].mxu0
        %3830 = vmatprep.mubr.bf16.mxu0 0
        %3831 = vmatmul.mubr.bf16.gmra.mrb[0].mxu0 %v3591
        %v3832 = vpop.f32.mrb[0].mxu0
        %v3833 = vadd.f32 %v3664, %v3832
        %v3834 = vpop.f32.mrb[0].mxu0
        %v3835 = vpop.f32.mrb[0].mxu0
        %v3836 = vadd.f32 %v3665, %v3835
        %v3837 = vpop.f32.mrb[0].mxu0
        %3838 = vmatprep.mubr.bf16.mxu0 0
        %3839 = vmatmul.mubr.bf16.gmra.mrb[0].mxu0 %v3592
        %v3840 = vpop.f32.mrb[0].mxu0
        %v3841 = vadd.f32 %v3666, %v3840
        %v3842 = vpop.f32.mrb[0].mxu0
        %v3843 = vpop.f32.mrb[0].mxu0
        %v3844 = vadd.f32 %v3667, %v3843
        %v3845 = vpop.f32.mrb[0].mxu0
        %3846 = vmatprep.mubr.bf16.mxu0 0
        %3847 = vmatmul.mubr.bf16.gmra.mrb[0].mxu0 %v3593
        %v3848 = vpop.f32.mrb[0].mxu0
        %v3849 = vadd.f32 %v3668, %v3848
        %v3850 = vpop.f32.mrb[0].mxu0
        %v3851 = vpop.f32.mrb[0].mxu0
        %v3852 = vadd.f32 %v3669, %v3851
        %v3853 = vpop.f32.mrb[0].mxu0
        %3854 = vmatprep.mubr.bf16.mxu0 0
        %3855 = vmatmul.mubr.bf16.gmra.mrb[0].mxu0 %v3594
        %v3856 = vpop.f32.mrb[0].mxu0
        %v3857 = vadd.f32 %v3670, %v3856
        %v3858 = vpop.f32.mrb[0].mxu0
        %v3859 = vpop.f32.mrb[0].mxu0
        %v3860 = vadd.f32 %v3671, %v3859
        %v3861 = vpop.f32.mrb[0].mxu0
        %3862 = vmatprep.mubr.bf16.mxu0 0
        %3863 = vmatmul.mubr.bf16.gmra.mrb[0].mxu0 %v3595
        %v3864 = vpop.f32.mrb[0].mxu0
        %v3865 = vadd.f32 %v3672, %v3864
        %v3866 = vpop.f32.mrb[0].mxu0
        %v3867 = vpop.f32.mrb[0].mxu0
        %v3868 = vadd.f32 %v3673, %v3867
        %v3869 = vpop.f32.mrb[0].mxu0
        %3870 = vmatprep.mubr.bf16.mxu0 0
        %3871 = vmatmul.mubr.bf16.gmra.mrb[0].mxu0 %v3596
        %v3872 = vpop.f32.mrb[0].mxu0
        %v3873 = vadd.f32 %v3674, %v3872
        %v3874 = vpop.f32.mrb[0].mxu0
        %v3875 = vpop.f32.mrb[0].mxu0
        %v3876 = vadd.f32 %v3675, %v3875
        %v3877 = vpop.f32.mrb[0].mxu0
        %3878 = vmatprep.mubr.bf16.mxu0 0
        %3879 = vmatmul.mubr.bf16.gmra.mrb[0].mxu0 %v3597
        %v3880 = vpop.f32.mrb[0].mxu0
        %v3881 = vadd.f32 %v3676, %v3880
        %v3882 = vpop.f32.mrb[0].mxu0
        %v3883 = vpop.f32.mrb[0].mxu0
        %v3884 = vadd.f32 %v3677, %v3883
        %v3885 = vpop.f32.mrb[0].mxu0
        %3886 = vdwg.mxu0
        %v3887 = vpack.c.bf16 %v3764, %v3761
        %v3888 = vpack.c.bf16 %v3772, %v3769
        %v3889 = vpack.c.bf16 %v3780, %v3777
        %v3890 = vpack.c.bf16 %v3788, %v3785
        %v3891 = vpack.c.bf16 %v3796, %v3793
        %v3892 = vpack.c.bf16 %v3804, %v3801
        %v3893 = vpack.c.bf16 %v3812, %v3809
        %v3894 = vpack.c.bf16 %v3820, %v3817
        %v3895 = vpack.c.bf16 %v3828, %v3825
        %v3896 = vpack.c.bf16 %v3836, %v3833
        %v3897 = vpack.c.bf16 %v3844, %v3841
        %v3898 = vpack.c.bf16 %v3852, %v3849
        %v3899 = vpack.c.bf16 %v3860, %v3857
        %v3900 = vpack.c.bf16 %v3868, %v3865
        %v3901 = vpack.c.bf16 %v3876, %v3873
        %v3902 = vpack.c.bf16 %v3884, %v3881
        %v3903 = vld [vmem:[%s4] sm:$0xf]
        %v3904 = vld [vmem:[%s4 + $0x4] sm:$0xf]
        %v3905 = vld [vmem:[%s4 + $0x8] sm:$0xf]
        %v3906 = vld [vmem:[%s4 + $0xc] sm:$0xf]
        %v3907 = vld [vmem:[%s4 + $0x10] sm:$0xf]
        %v3908 = vld [vmem:[%s4 + $0x14] sm:$0xf]
        %v3909 = vld [vmem:[%s4 + $0x18] sm:$0xf]
        %v3910 = vld [vmem:[%s4 + $0x1c] sm:$0xf]
        %v3911 = vld [vmem:[%s4 + $0x20] sm:$0xf]
        %v3912 = vld [vmem:[%s4 + $0x24] sm:$0xf]
        %v3913 = vld [vmem:[%s4 + $0x28] sm:$0xf]
        %v3914 = vld [vmem:[%s4 + $0x2c] sm:$0xf]
        %v3915 = vld [vmem:[%s4 + $0x30] sm:$0xf]
        %v3916 = vld [vmem:[%s4 + $0x34] sm:$0xf]
        %v3917 = vld [vmem:[%s4 + $0x38] sm:$0xf]
        %v3918 = vld [vmem:[%s4 + $0x3c] sm:$0xf]
        %v3919 = vld [vmem:[%s5] sm:$0x1]
        %v3921 = vlaneseq
        %v3922 = vshrl.u32 %v3921, 7
        %v3923 = vsub.s32 0, %v3922
        %v3924 = vrot.slane %v3919, %v3923
        %v3942 = vunpack.c.l.b16 %v3903
        %v3943 = vunpack.c.l.b16 %v3904
        %v3944 = vunpack.c.l.b16 %v3905
        %v3945 = vunpack.c.l.b16 %v3906
        %v3946 = vunpack.c.l.b16 %v3907
        %v3947 = vunpack.c.l.b16 %v3908
        %v3948 = vunpack.c.l.b16 %v3909
        %v3949 = vunpack.c.l.b16 %v3910
        %v3950 = vunpack.c.l.b16 %v3911
        %v3951 = vunpack.c.l.b16 %v3912
        %v3952 = vunpack.c.l.b16 %v3913
        %v3953 = vunpack.c.l.b16 %v3914
        %v3954 = vunpack.c.l.b16 %v3915
        %v3955 = vunpack.c.l.b16 %v3916
        %v3956 = vunpack.c.l.b16 %v3917
        %v3957 = vunpack.c.l.b16 %v3918
        %v3958 = vpack.c.b16 %v3943, %v3942
        %v3959 = vpack.c.b16 %v3945, %v3944
        %v3960 = vpack.c.b16 %v3947, %v3946
        %v3961 = vpack.c.b16 %v3949, %v3948
        %v3962 = vpack.c.b16 %v3951, %v3950
        %v3963 = vpack.c.b16 %v3953, %v3952
        %v3964 = vpack.c.b16 %v3955, %v3954
        %v3965 = vpack.c.b16 %v3957, %v3956
        %3974 = vmatprep.subr.bf16.mxu0 0
        %3975 = vmatpush1.bf16.msra.mxu0 %v3958
        %3976 = vmatprep.subr.bf16.mxu0 0
        %3977 = vmatpush1.bf16.msra.mxu0 %v3959
        %3978 = vmatprep.subr.bf16.mxu0 0
        %3979 = vmatpush1.bf16.msra.mxu0 %v3960
        %3980 = vmatprep.subr.bf16.mxu0 0
        %3981 = vmatpush1.bf16.msra.mxu0 %v3961
        %3982 = vmatprep.subr.bf16.mxu0 0
        %3983 = vmatpush1.bf16.msra.mxu0 %v3962
        %3984 = vmatprep.subr.bf16.mxu0 0
        %3985 = vmatpush1.bf16.msra.mxu0 %v3963
        %3986 = vmatprep.subr.bf16.mxu0 0
        %3987 = vmatpush1.bf16.msra.mxu0 %v3964
        %3988 = vmatprep.subr.bf16.mxu0 0
        %3989 = vmatpush1.bf16.msra.mxu0 %v3965
        %3990 = vmatprep.subr.bf16.mxu0 0
        %3991 = vmatpush1.bf16.msra.mxu0 0
        %3992 = vmatprep.subr.bf16.mxu0 0
        %3993 = vmatpush1.bf16.msra.mxu0 0
        %3994 = vmatprep.subr.bf16.mxu0 0
        %3995 = vmatpush1.bf16.msra.mxu0 0
        %3996 = vmatprep.subr.bf16.mxu0 0
        %3997 = vmatpush1.bf16.msra.mxu0 0
        %3998 = vmatprep.subr.bf16.mxu0 0
        %3999 = vmatpush1.bf16.msra.mxu0 0
        %4000 = vmatprep.subr.bf16.mxu0 0
        %4001 = vmatpush1.bf16.msra.mxu0 0
        %4002 = vmatprep.subr.bf16.mxu0 0
        %4003 = vmatpush1.bf16.msra.mxu0 0
        %4004 = vmatprep.subr.bf16.mxu0 0
        %4005 = vmatpush1.bf16.msra.mxu0 0
        %4006 = vmatprep.mubr.bf16.mxu0 0
        %4007 = vmatmul.mubr.bf16.gmra.mrb[0].mxu0 %v3887
        %v4008 = vpop.f32.mrb[0].mxu0
        %v4009 = vadd.f32 %v3924, %v4008
        %v4010 = vpop.f32.mrb[0].mxu0
        %v4011 = vpop.f32.mrb[0].mxu0
        %v4012 = vadd.f32 %v3924, %v4011
        %v4013 = vpop.f32.mrb[0].mxu0
        %4014 = vmatprep.mubr.bf16.mxu0 0
        %4015 = vmatmul.mubr.bf16.gmra.mrb[0].mxu0 %v3888
        %v4016 = vpop.f32.mrb[0].mxu0
        %v4017 = vadd.f32 %v3924, %v4016
        %v4018 = vpop.f32.mrb[0].mxu0
        %v4019 = vpop.f32.mrb[0].mxu0
        %v4020 = vadd.f32 %v3924, %v4019
        %v4021 = vpop.f32.mrb[0].mxu0
        %4022 = vmatprep.mubr.bf16.mxu0 0
        %4023 = vmatmul.mubr.bf16.gmra.mrb[0].mxu0 %v3889
        %v4024 = vpop.f32.mrb[0].mxu0
        %v4025 = vadd.f32 %v3924, %v4024
        %v4026 = vpop.f32.mrb[0].mxu0
        %v4027 = vpop.f32.mrb[0].mxu0
        %v4028 = vadd.f32 %v3924, %v4027
        %v4029 = vpop.f32.mrb[0].mxu0
        %4030 = vmatprep.mubr.bf16.mxu0 0
        %4031 = vmatmul.mubr.bf16.gmra.mrb[0].mxu0 %v3890
        %v4032 = vpop.f32.mrb[0].mxu0
        %v4033 = vadd.f32 %v3924, %v4032
        %v4034 = vpop.f32.mrb[0].mxu0
        %v4035 = vpop.f32.mrb[0].mxu0
        %v4036 = vadd.f32 %v3924, %v4035
        %v4037 = vpop.f32.mrb[0].mxu0
        %4038 = vmatprep.mubr.bf16.mxu0 0
        %4039 = vmatmul.mubr.bf16.gmra.mrb[0].mxu0 %v3891
        %v4040 = vpop.f32.mrb[0].mxu0
        %v4041 = vadd.f32 %v3924, %v4040
        %v4042 = vpop.f32.mrb[0].mxu0
        %v4043 = vpop.f32.mrb[0].mxu0
        %v4044 = vadd.f32 %v3924, %v4043
        %v4045 = vpop.f32.mrb[0].mxu0
        %4046 = vmatprep.mubr.bf16.mxu0 0
        %4047 = vmatmul.mubr.bf16.gmra.mrb[0].mxu0 %v3892
        %v4048 = vpop.f32.mrb[0].mxu0
        %v4049 = vadd.f32 %v3924, %v4048
        %v4050 = vpop.f32.mrb[0].mxu0
        %v4051 = vpop.f32.mrb[0].mxu0
        %v4052 = vadd.f32 %v3924, %v4051
        %v4053 = vpop.f32.mrb[0].mxu0
        %4054 = vmatprep.mubr.bf16.mxu0 0
        %4055 = vmatmul.mubr.bf16.gmra.mrb[0].mxu0 %v3893
        %v4056 = vpop.f32.mrb[0].mxu0
        %v4057 = vadd.f32 %v3924, %v4056
        %v4058 = vpop.f32.mrb[0].mxu0
        %v4059 = vpop.f32.mrb[0].mxu0
        %v4060 = vadd.f32 %v3924, %v4059
        %v4061 = vpop.f32.mrb[0].mxu0
        %4062 = vmatprep.mubr.bf16.mxu0 0
        %4063 = vmatmul.mubr.bf16.gmra.mrb[0].mxu0 %v3894
        %v4064 = vpop.f32.mrb[0].mxu0
        %v4065 = vadd.f32 %v3924, %v4064
        %v4066 = vpop.f32.mrb[0].mxu0
        %v4067 = vpop.f32.mrb[0].mxu0
        %v4068 = vadd.f32 %v3924, %v4067
        %v4069 = vpop.f32.mrb[0].mxu0
        %4070 = vmatprep.mubr.bf16.mxu0 0
        %4071 = vmatmul.mubr.bf16.gmra.mrb[0].mxu0 %v3895
        %v4072 = vpop.f32.mrb[0].mxu0
        %v4073 = vadd.f32 %v3924, %v4072
        %v4074 = vpop.f32.mrb[0].mxu0
        %v4075 = vpop.f32.mrb[0].mxu0
        %v4076 = vadd.f32 %v3924, %v4075
        %v4077 = vpop.f32.mrb[0].mxu0
        %4078 = vmatprep.mubr.bf16.mxu0 0
        %4079 = vmatmul.mubr.bf16.gmra.mrb[0].mxu0 %v3896
        %v4080 = vpop.f32.mrb[0].mxu0
        %v4081 = vadd.f32 %v3924, %v4080
        %v4082 = vpop.f32.mrb[0].mxu0
        %v4083 = vpop.f32.mrb[0].mxu0
        %v4084 = vadd.f32 %v3924, %v4083
        %v4085 = vpop.f32.mrb[0].mxu0
        %4086 = vmatprep.mubr.bf16.mxu0 0
        %4087 = vmatmul.mubr.bf16.gmra.mrb[0].mxu0 %v3897
        %v4088 = vpop.f32.mrb[0].mxu0
        %v4089 = vadd.f32 %v3924, %v4088
        %v4090 = vpop.f32.mrb[0].mxu0
        %v4091 = vpop.f32.mrb[0].mxu0
        %v4092 = vadd.f32 %v3924, %v4091
        %v4093 = vpop.f32.mrb[0].mxu0
        %4094 = vmatprep.mubr.bf16.mxu0 0
        %4095 = vmatmul.mubr.bf16.gmra.mrb[0].mxu0 %v3898
        %v4096 = vpop.f32.mrb[0].mxu0
        %v4097 = vadd.f32 %v3924, %v4096
        %v4098 = vpop.f32.mrb[0].mxu0
        %v4099 = vpop.f32.mrb[0].mxu0
        %v4100 = vadd.f32 %v3924, %v4099
        %v4101 = vpop.f32.mrb[0].mxu0
        %4102 = vmatprep.mubr.bf16.mxu0 0
        %4103 = vmatmul.mubr.bf16.gmra.mrb[0].mxu0 %v3899
        %v4104 = vpop.f32.mrb[0].mxu0
        %v4105 = vadd.f32 %v3924, %v4104
        %v4106 = vpop.f32.mrb[0].mxu0
        %v4107 = vpop.f32.mrb[0].mxu0
        %v4108 = vadd.f32 %v3924, %v4107
        %v4109 = vpop.f32.mrb[0].mxu0
        %4110 = vmatprep.mubr.bf16.mxu0 0
        %4111 = vmatmul.mubr.bf16.gmra.mrb[0].mxu0 %v3900
        %v4112 = vpop.f32.mrb[0].mxu0
        %v4113 = vadd.f32 %v3924, %v4112
        %v4114 = vpop.f32.mrb[0].mxu0
        %v4115 = vpop.f32.mrb[0].mxu0
        %v4116 = vadd.f32 %v3924, %v4115
        %v4117 = vpop.f32.mrb[0].mxu0
        %4118 = vmatprep.mubr.bf16.mxu0 0
        %4119 = vmatmul.mubr.bf16.gmra.mrb[0].mxu0 %v3901
        %v4120 = vpop.f32.mrb[0].mxu0
        %v4121 = vadd.f32 %v3924, %v4120
        %v4122 = vpop.f32.mrb[0].mxu0
        %v4123 = vpop.f32.mrb[0].mxu0
        %v4124 = vadd.f32 %v3924, %v4123
        %v4125 = vpop.f32.mrb[0].mxu0
        %4126 = vmatprep.mubr.bf16.mxu0 0
        %4127 = vmatmul.mubr.bf16.gmra.mrb[0].mxu0 %v3902
        %v4128 = vpop.f32.mrb[0].mxu0
        %v4129 = vadd.f32 %v3924, %v4128
        %v4130 = vpop.f32.mrb[0].mxu0
        %v4131 = vpop.f32.mrb[0].mxu0
        %v4132 = vadd.f32 %v3924, %v4131
        %v4133 = vpop.f32.mrb[0].mxu0
        %4134 = vdwg.mxu0
        %4135 = vst [vmem:[%s332] sm:$0xff] %v4009
        %4136 = vst [vmem:[%s332 + $0x8] sm:$0xff] %v4012
        %4137 = vst [vmem:[%s332 + $0x10] sm:$0xff] %v4017
        %4138 = vst [vmem:[%s332 + $0x18] sm:$0xff] %v4020
        %4139 = vst [vmem:[%s332 + $0x20] sm:$0xff] %v4025
        %4140 = vst [vmem:[%s332 + $0x28] sm:$0xff] %v4028
        %4141 = vst [vmem:[%s332 + $0x30] sm:$0xff] %v4033
        %4142 = vst [vmem:[%s332 + $0x38] sm:$0xff] %v4036
        %4143 = vst [vmem:[%s332 + $0x40] sm:$0xff] %v4041
        %4144 = vst [vmem:[%s332 + $0x48] sm:$0xff] %v4044
        %4145 = vst [vmem:[%s332 + $0x50] sm:$0xff] %v4049
        %4146 = vst [vmem:[%s332 + $0x58] sm:$0xff] %v4052
        %4147 = vst [vmem:[%s332 + $0x60] sm:$0xff] %v4057
        %4148 = vst [vmem:[%s332 + $0x68] sm:$0xff] %v4060
        %4149 = vst [vmem:[%s332 + $0x70] sm:$0xff] %v4065
        %4150 = vst [vmem:[%s332 + $0x78] sm:$0xff] %v4068
        %4151 = vst [vmem:[%s332 + $0x80] sm:$0xff] %v4073
        %4152 = vst [vmem:[%s332 + $0x88] sm:$0xff] %v4076
        %4153 = vst [vmem:[%s332 + $0x90] sm:$0xff] %v4081
        %4154 = vst [vmem:[%s332 + $0x98] sm:$0xff] %v4084
        %4155 = vst [vmem:[%s332 + $0xa0] sm:$0xff] %v4089
        %4156 = vst [vmem:[%s332 + $0xa8] sm:$0xff] %v4092
        %4157 = vst [vmem:[%s332 + $0xb0] sm:$0xff] %v4097
        %4158 = vst [vmem:[%s332 + $0xb8] sm:$0xff] %v4100
        %4159 = vst [vmem:[%s332 + $0xc0] sm:$0xff] %v4105
        %4160 = vst [vmem:[%s332 + $0xc8] sm:$0xff] %v4108
        %4161 = vst [vmem:[%s332 + $0xd0] sm:$0xff] %v4113
        %4162 = vst [vmem:[%s332 + $0xd8] sm:$0xff] %v4116
        %4163 = vst [vmem:[%s332 + $0xe0] sm:$0xff] %v4121
        %4164 = vst [vmem:[%s332 + $0xe8] sm:$0xff] %v4124
        %4165 = vst [vmem:[%s332 + $0xf0] sm:$0xff] %v4129
        %4166 = vst [vmem:[%s332 + $0xf8] sm:$0xff] %v4132
      $region52: #{_level_forward.1} parent=43 // pred_fallthru
        _
      %s4167 = smul.u32 32, %s23
      %p4168 = scmp.lt.s32.totalorder %s22, 1
      %s4169 = scalar_select %p4168, %s22, 1
      %p4170 = scmp.lt.s32.totalorder %s4167, 127
      %s4171 = scalar_select %p4170, %s4167, 127
      %s4172 = smul.addr %s4169, 128
      %s4173 = sadd.s32 %s4171, %s4172
      %s4174 = smul.addr %s4173, 8
      %s4175 = scalar_lea.vmem %s6, %s4174
      // Predicated region
      $region53: #{_level_forward.1} parent=43 // pred_check
        %p4176 = pneg %p196
      $region54: #{_level_forward.1} parent=43 // pred_check_branch
        %4178 = sbr.rel (%p4176) target = $region56
      $region55: #{_level_forward.1} parent=43 // pred_region
        %s4179 = smul.u32 32, %s23
      $region56: #{_level_forward.1} parent=43 // pred_fallthru
        _
    $region44: #{_level_forward.1} parent=5 // pred_fallthru
      _
    %p4180 = scmp.le.s32.totalorder 2, %s12
    // Predicated region
    $region57: #{_level_forward.1} parent=5 // pred_check
      %p4181 = pneg %p4180
    $region58: #{_level_forward.1} parent=5 // pred_check_branch
      %4183 = sbr.rel (%p4181) target = $region60
    $region59: #{_level_forward.1} parent=5 // pred_region
      %s4184 = ssub.s32 %s12, 2
      // Predicated region
      $region61: #{_level_forward.1} parent=59 // pred_check
        %p4185 = pneg %p202
      $region62: #{_level_forward.1} parent=59 // pred_check_branch
        %4187 = sbr.rel (%p4185) target = $region64
      $region63: #{_level_forward.1} parent=59 // pred_region
        %s4188 = smul.u32 32, %s26
        %p4189 = scmp.lt.s32.totalorder %s25, 1
        %s4190 = scalar_select %p4189, %s25, 1
        %p4191 = scmp.lt.s32.totalorder %s4188, 127
        %s4192 = scalar_select %p4191, %s4188, 127
        %s4193 = smul.addr %s4190, 128
        %s4194 = sadd.s32 %s4192, %s4193
        %s4195 = smul.addr %s4194, 8
        %s4196 = scalar_lea.vmem %s6, %s4195
      $region64: #{_level_forward.1} parent=59 // pred_fallthru
        _
    $region60: #{_level_forward.1} parent=5 // pred_fallthru
      _
  $region6: #{_level_forward.1} parent=0 // loop_footer
    %s16 = sadd.s32 1, %s12
  $region7: #{_level_forward.1} parent=0 // loop_footer_branch
    %11 = sbr.rel target = $region3
  $region8: #{_level_forward.1} parent=0 // loop_exit
    _

</llo_original>
